<compile_context>
chip_gen: v5e
topology: v5e:2x2
jax: 0.10.0
libtpu: 0.0.40
codegen_flags: <defaults>
</compile_context>

<pallas_src>
import functools

import jax
import jax.numpy as jnp
from jax.experimental import pallas as pl
from jax.experimental.pallas import tpu as pltpu


# ----------------------------------------------------------------------------
# Pallas kernel: the entire forward pass (grid-less, everything in VMEM)
# ----------------------------------------------------------------------------
def dnalstm_kernel(xp1_ref,                      # [T, B, 8H]  hoisted layer-1 input projection (+bias)
                   w1fhh_ref, w1rhh_ref,         # [H, 4H] each
                   w2ihf_ref, w2ihr_ref,         # [H, 8H] each (layer-2 input proj, split by input half)
                   w2fhh_ref, w2rhh_ref,         # [H, 4H] each
                   b2_ref,                       # [1, 8H]
                   w3ihf_ref, w3ihr_ref,         # [H, 4H] each
                   w3hh_ref,                     # [H, 4H]
                   b3_ref,                       # [1, 4H]
                   fc1w_ref, fc1b_ref,           # [H, H], [1, H]
                   fc2w_ref, fc2b_ref,           # [H, O], [1, O]
                   out_ref,                      # [B, O]
                   *, T, B, H):
    f32 = jnp.float32

    def lstm_cell(xg, h, c, whh):
        # xg already contains x_t @ W_ih^T + b (input projection hoisted off the
        # recurrent critical path); only h @ W_hh remains per serial step.
        gates = xg + jnp.dot(h, whh, preferred_element_type=f32)      # [B, 4H]
        # NOTE: 32-lane gate slices are a known (minor) relayout cost at H=32.
        i = jax.nn.sigmoid(gates[:, 0 * H:1 * H])
        f = jax.nn.sigmoid(gates[:, 1 * H:2 * H])
        g = jnp.tanh(gates[:, 2 * H:3 * H])
        o = jax.nn.sigmoid(gates[:, 3 * H:4 * H])
        c = f * c + i * g
        return o * jnp.tanh(c), c

    def bidir_layer(xp_rows, whh_f, whh_r, w_next_f, w_next_r, b_next):
        """Fused fwd+rev bidirectional LSTM over T (fully unrolled).

        xp_rows[t] : [B, 8H] precomputed input projection ([:4H]=fwd, [4H:]=rev).
        While the recurrence runs, the NEXT layer's input projection is
        accumulated online (it only depends on already-produced h), so those
        matmuls never sit on the serial dependency chain.
        Returns xp_next: list of T arrays [B, G_next] (bias already included).
        """
        zero = jnp.zeros((B, H), f32)
        hf, cf, hr, cr = zero, zero, zero, zero
        xp_next = [b_next] * T
        for t in range(T):                       # T is small & static -> unrolled
            tr = T - 1 - t
            hf, cf = lstm_cell(xp_rows[t][:, :4 * H], hf, cf, whh_f)
            hr, cr = lstm_cell(xp_rows[tr][:, 4 * H:], hr, cr, whh_r)
            xp_next[t] = xp_next[t] + jnp.dot(hf, w_next_f,
                                              preferred_element_type=f32)
            xp_next[tr] = xp_next[tr] + jnp.dot(hr, w_next_r,
                                                preferred_element_type=f32)
        return xp_next

    # ---- layer 1 (bidirectional): input projection already hoisted ----------
    xp1_rows = [xp1_ref[t] for t in range(T)]                         # [B, 8H] each
    xp2_rows = bidir_layer(xp1_rows, w1fhh_ref[...], w1rhh_ref[...],
                           w2ihf_ref[...], w2ihr_ref[...], b2_ref[...])

    # ---- layer 2 (bidirectional) --------------------------------------------
    xp3_rows = bidir_layer(xp2_rows, w2fhh_ref[...], w2rhh_ref[...],
                           w3ihf_ref[...], w3ihr_ref[...], b3_ref[...])

    # ---- layer 3 (unidirectional): only the final hidden state is needed ----
    h3 = jnp.zeros((B, H), f32)
    c3 = jnp.zeros((B, H), f32)
    w3hh = w3hh_ref[...]
    for t in range(T):
        h3, c3 = lstm_cell(xp3_rows[t], h3, c3, w3hh)

    # ---- head: fc1 -> ELU -> dropout(eval: identity) -> fc2 -> softmax(dim=1)
    z = jnp.dot(h3, fc1w_ref[...], preferred_element_type=f32) + fc1b_ref[...]
    z = jnp.where(z > 0, z, jnp.exp(z) - 1.0)                         # ELU(alpha=1)
    # TODO(synk): nn.Dropout is identity in eval mode; train-mode RNG dropout not implemented.
    logits = jnp.dot(z, fc2w_ref[...], preferred_element_type=f32) + fc2b_ref[...]
    m = jnp.max(logits, axis=1, keepdims=True)
    e = jnp.exp(logits - m)
    denom = jnp.sum(e, axis=1, keepdims=True)
    out_ref[...] = e * pl.reciprocal(denom, approx=True)


# ----------------------------------------------------------------------------
# Wrapper
# ----------------------------------------------------------------------------
@jax.jit
def dnalstm_forward(x, kparams):
    """x: [B, T, input_dim] (batch_first, like PyTorch).  Returns [B, output_dim]."""
    (w1ih, w1fhh, w1rhh, b1,
     w2ihf, w2ihr, w2fhh, w2rhh, b2,
     w3ihf, w3ihr, w3hh, b3,
     fc1_w, fc1_b, fc2_w, fc2_b) = kparams
    B, T, D = x.shape
    H = w1fhh.shape[0]
    O = fc2_w.shape[1]

    # Hoisted layer-1 input projection: ONE [T*B, D] x [D, 8H] matmul (XLA),
    # instead of T tiny per-step matmuls inside the serial recurrence.
    x_tbd = jnp.swapaxes(x, 0, 1)                                     # [T, B, D]
    xp1 = (x_tbd.reshape(T * B, D) @ w1ih + b1).reshape(T, B, 8 * H)

    kernel = functools.partial(dnalstm_kernel, T=T, B=B, H=H)
    vmem = pl.BlockSpec(memory_space=pltpu.MemorySpace.VMEM)
    return pl.pallas_call(
        kernel,
        out_shape=jax.ShapeDtypeStruct((B, O), jnp.float32),
        in_specs=[vmem] * 16,
        out_specs=vmem,
    )(xp1, w1fhh, w1rhh, w2ihf, w2ihr, w2fhh, w2rhh, b2,
      w3ihf, w3ihr, w3hh, b3, fc1_w, fc1_b, fc2_w, fc2_b)


# ----------------------------------------------------------------------------
# Parameter construction (PyTorch-shaped) + kernel-operand preparation
# ----------------------------------------------------------------------------
def make_lstm_dir_params(key, in_dim, H):
    s = float(H) ** -0.5
    k1, k2, k3, k4 = jax.random.split(key, 4)
    return {
        "w_ih": jax.random.uniform(k1, (4 * H, in_dim), jnp.float32, -s, s),
        "w_hh": jax.random.uniform(k2, (4 * H, H), jnp.float32, -s, s),
        "b_ih": jax.random.uniform(k3, (4 * H,), jnp.float32, -s, s),
        "b_hh": jax.random.uniform(k4, (4 * H,), jnp.float32, -s, s),
    }


def make_params(key, D, H, O):
    keys = jax.random.split(key, 7)
    s = float(H) ** -0.5
    ka, kb = jax.random.split(keys[5])
    kc, kd = jax.random.split(keys[6])
    return {
        "l1f": make_lstm_dir_params(keys[0], D, H),
        "l1r": make_lstm_dir_params(keys[1], D, H),
        "l2f": make_lstm_dir_params(keys[2], 2 * H, H),
        "l2r": make_lstm_dir_params(keys[3], 2 * H, H),
        "l3":  make_lstm_dir_params(keys[4], 2 * H, H),
        "fc1_w": jax.random.uniform(ka, (H, H), jnp.float32, -s, s),
        "fc1_b": jax.random.uniform(kb, (1, H), jnp.float32, -s, s),
        "fc2_w": jax.random.uniform(kc, (H, O), jnp.float32, -s, s),
        "fc2_b": jax.random.uniform(kd, (1, O), jnp.float32, -s, s),
    }


def prepare_kernel_params(p):
    """Re-arrange PyTorch-shaped weights into kernel operands (done once)."""
    H = p["l1f"]["w_hh"].shape[1]

    def wihT(name): return p[name]["w_ih"].T
    def whhT(name): return p[name]["w_hh"].T
    def bias(name): return p[name]["b_ih"] + p[name]["b_hh"]

    # layer 1: fwd|rev gate columns side by side -> [D, 8H], bias [1, 8H]
    w1ih = jnp.concatenate([wihT("l1f"), wihT("l1r")], axis=1)
    b1 = jnp.concatenate([bias("l1f"), bias("l1r")])[None, :]
    # layer 2: split input-weight rows by (fwd-half, rev-half) of the 2H input
    w2f, w2r = wihT("l2f"), wihT("l2r")                               # [2H, 4H]
    w2ihf = jnp.concatenate([w2f[:H], w2r[:H]], axis=1)               # [H, 8H]
    w2ihr = jnp.concatenate([w2f[H:], w2r[H:]], axis=1)               # [H, 8H]
    b2 = jnp.concatenate([bias("l2f"), bias("l2r")])[None, :]
    # layer 3
    w3 = wihT("l3")                                                   # [2H, 4H]
    b3 = bias("l3")[None, :]

    return (w1ih, whhT("l1f"), whhT("l1r"), b1,
            w2ihf, w2ihr, whhT("l2f"), whhT("l2r"), b2,
            w3[:H], w3[H:], whhT("l3"), b3,
            p["fc1_w"], p["fc1_b"], p["fc2_w"], p["fc2_b"])


# ----------------------------------------------------------------------------
# Pure-JAX reference (mirrors PyTorch nn.LSTM / nn.Linear semantics)
# ----------------------------------------------------------------------------
def _lstm_ref_dir(x_tbd, p):
    H = p["w_hh"].shape[1]
    B = x_tbd.shape[1]
    wihT, whhT, b = p["w_ih"].T, p["w_hh"].T, p["b_ih"] + p["b_hh"]

    def step(carry, xt):
        h, c = carry
        gates = xt @ wihT + h @ whhT + b
        i, f, g, o = jnp.split(gates, 4, axis=-1)
        i, f, g, o = jax.nn.sigmoid(i), jax.nn.sigmoid(f), jnp.tanh(g), jax.nn.sigmoid(o)
        c = f * c + i * g
        h = o * jnp.tanh(c)
        return (h, c), h

    init = (jnp.zeros((B, H), jnp.float32), jnp.zeros((B, H), jnp.float32))
    _, hs = jax.lax.scan(step, init, x_tbd)
    return hs


def dnalstm_ref(x, raw):
    x_t = jnp.swapaxes(x, 0, 1)

    def bidir(xt, pf, pr):
        f = _lstm_ref_dir(xt, pf)
        r = _lstm_ref_dir(xt[::-1], pr)[::-1]
        return jnp.concatenate([f, r], axis=-1)

    h1 = bidir(x_t, raw["l1f"], raw["l1r"])
    h2 = bidir(h1, raw["l2f"], raw["l2r"])
    h3 = _lstm_ref_dir(h2, raw["l3"])
    last = h3[-1]
    z = last @ raw["fc1_w"] + raw["fc1_b"]
    z = jnp.where(z > 0, z, jnp.exp(z) - 1.0)
    logits = z @ raw["fc2_w"] + raw["fc2_b"]
    return jax.nn.softmax(logits, axis=1)


# ----------------------------------------------------------------------------
if __name__ == "__main__":
    B, T = 2, 8
    input_dim, hidden_dim, output_dim = 4, 32, 3   # DNA one-hot -> hidden -> classes

    key = jax.random.PRNGKey(0)
    kx, kp = jax.random.split(key)
    x = jax.random.normal(kx, (B, T, input_dim), jnp.float32)
    raw = make_params(kp, input_dim, hidden_dim, output_dim)
    kparams = prepare_kernel_params(raw)

    out = jax.block_until_ready(dnalstm_forward(x, kparams))
    ref = jax.block_until_ready(dnalstm_ref(x, raw))

    assert out.shape == (B, output_dim)
    assert jnp.allclose(out, ref, atol=2e-3, rtol=2e-3), (out, ref)
    # approx reciprocal in the softmax denominator -> allow a slightly looser sum check
    assert jnp.allclose(jnp.sum(out, axis=1), jnp.ones((B,)), atol=5e-3)

    print("KERNEL_OK")
</pallas_src>

<mosaic_0001>
module attributes {stable_mosaic.version = 11 : i64} {
  func.func @dnalstm_kernel(%arg0: memref<8x2x256xf32, #tpu.memory_space<vmem>>, %arg1: memref<32x128xf32, #tpu.memory_space<vmem>>, %arg2: memref<32x128xf32, #tpu.memory_space<vmem>>, %arg3: memref<32x256xf32, #tpu.memory_space<vmem>>, %arg4: memref<32x256xf32, #tpu.memory_space<vmem>>, %arg5: memref<32x128xf32, #tpu.memory_space<vmem>>, %arg6: memref<32x128xf32, #tpu.memory_space<vmem>>, %arg7: memref<1x256xf32, #tpu.memory_space<vmem>>, %arg8: memref<32x128xf32, #tpu.memory_space<vmem>>, %arg9: memref<32x128xf32, #tpu.memory_space<vmem>>, %arg10: memref<32x128xf32, #tpu.memory_space<vmem>>, %arg11: memref<1x128xf32, #tpu.memory_space<vmem>>, %arg12: memref<32x32xf32, #tpu.memory_space<vmem>>, %arg13: memref<1x32xf32, #tpu.memory_space<vmem>>, %arg14: memref<32x3xf32, #tpu.memory_space<vmem>>, %arg15: memref<1x3xf32, #tpu.memory_space<vmem>>, %arg16: memref<2x3xf32, #tpu.memory_space<vmem>>) attributes {dimension_semantics = [], scalar_prefetch = 0 : i64, scratch_operands = 0 : i64, tpu.core_type = #tpu.core_type<tc>} {
    %c0 = arith.constant 0 : index
    %c0_0 = arith.constant 0 : index
    %c0_1 = arith.constant 0 : index
    %0 = vector.load %arg0[%c0, %c0_0, %c0_1] : memref<8x2x256xf32, #tpu.memory_space<vmem>>, vector<1x2x256xf32>
    %1 = vector.shape_cast %0 : vector<1x2x256xf32> to vector<2x256xf32>
    %c1 = arith.constant 1 : index
    %c0_2 = arith.constant 0 : index
    %c0_3 = arith.constant 0 : index
    %2 = vector.load %arg0[%c1, %c0_2, %c0_3] : memref<8x2x256xf32, #tpu.memory_space<vmem>>, vector<1x2x256xf32>
    %3 = vector.shape_cast %2 : vector<1x2x256xf32> to vector<2x256xf32>
    %c2 = arith.constant 2 : index
    %c0_4 = arith.constant 0 : index
    %c0_5 = arith.constant 0 : index
    %4 = vector.load %arg0[%c2, %c0_4, %c0_5] : memref<8x2x256xf32, #tpu.memory_space<vmem>>, vector<1x2x256xf32>
    %5 = vector.shape_cast %4 : vector<1x2x256xf32> to vector<2x256xf32>
    %c3 = arith.constant 3 : index
    %c0_6 = arith.constant 0 : index
    %c0_7 = arith.constant 0 : index
    %6 = vector.load %arg0[%c3, %c0_6, %c0_7] : memref<8x2x256xf32, #tpu.memory_space<vmem>>, vector<1x2x256xf32>
    %7 = vector.shape_cast %6 : vector<1x2x256xf32> to vector<2x256xf32>
    %c4 = arith.constant 4 : index
    %c0_8 = arith.constant 0 : index
    %c0_9 = arith.constant 0 : index
    %8 = vector.load %arg0[%c4, %c0_8, %c0_9] : memref<8x2x256xf32, #tpu.memory_space<vmem>>, vector<1x2x256xf32>
    %9 = vector.shape_cast %8 : vector<1x2x256xf32> to vector<2x256xf32>
    %c5 = arith.constant 5 : index
    %c0_10 = arith.constant 0 : index
    %c0_11 = arith.constant 0 : index
    %10 = vector.load %arg0[%c5, %c0_10, %c0_11] : memref<8x2x256xf32, #tpu.memory_space<vmem>>, vector<1x2x256xf32>
    %11 = vector.shape_cast %10 : vector<1x2x256xf32> to vector<2x256xf32>
    %c6 = arith.constant 6 : index
    %c0_12 = arith.constant 0 : index
    %c0_13 = arith.constant 0 : index
    %12 = vector.load %arg0[%c6, %c0_12, %c0_13] : memref<8x2x256xf32, #tpu.memory_space<vmem>>, vector<1x2x256xf32>
    %13 = vector.shape_cast %12 : vector<1x2x256xf32> to vector<2x256xf32>
    %c7 = arith.constant 7 : index
    %c0_14 = arith.constant 0 : index
    %c0_15 = arith.constant 0 : index
    %14 = vector.load %arg0[%c7, %c0_14, %c0_15] : memref<8x2x256xf32, #tpu.memory_space<vmem>>, vector<1x2x256xf32>
    %15 = vector.shape_cast %14 : vector<1x2x256xf32> to vector<2x256xf32>
    %c0_16 = arith.constant 0 : index
    %c0_17 = arith.constant 0 : index
    %16 = vector.load %arg1[%c0_16, %c0_17] : memref<32x128xf32, #tpu.memory_space<vmem>>, vector<32x128xf32>
    %c0_18 = arith.constant 0 : index
    %c0_19 = arith.constant 0 : index
    %17 = vector.load %arg2[%c0_18, %c0_19] : memref<32x128xf32, #tpu.memory_space<vmem>>, vector<32x128xf32>
    %c0_20 = arith.constant 0 : index
    %c0_21 = arith.constant 0 : index
    %18 = vector.load %arg3[%c0_20, %c0_21] : memref<32x256xf32, #tpu.memory_space<vmem>>, vector<32x256xf32>
    %c0_22 = arith.constant 0 : index
    %c0_23 = arith.constant 0 : index
    %19 = vector.load %arg4[%c0_22, %c0_23] : memref<32x256xf32, #tpu.memory_space<vmem>>, vector<32x256xf32>
    %c0_24 = arith.constant 0 : index
    %c0_25 = arith.constant 0 : index
    %20 = vector.load %arg7[%c0_24, %c0_25] : memref<1x256xf32, #tpu.memory_space<vmem>>, vector<1x256xf32>
    %cst = arith.constant 0.000000e+00 : f32
    %21 = vector.broadcast %cst : f32 to vector<2x32xf32>
    %22 = vector.extract_strided_slice %1 {offsets = [0, 0], sizes = [2, 128], strides = [1, 1]} : vector<2x256xf32> to vector<2x128xf32>
    %cst_26 = arith.constant dense<0.000000e+00> : vector<2x128xf32>
    %23 = tpu.matmul %21, %16, %cst_26 {dimension_numbers = #tpu.dot_dimension_numbers<[1], [0], [0], [1], [0, 0, 1, 1], [], []>} : vector<2x32xf32>, vector<32x128xf32>, vector<2x128xf32> -> vector<2x128xf32>
    %24 = arith.addf %22, %23 : vector<2x128xf32>
    %25 = vector.extract_strided_slice %24 {offsets = [0, 0], sizes = [2, 32], strides = [1, 1]} : vector<2x128xf32> to vector<2x32xf32>
    %26 = arith.negf %25 : vector<2x32xf32>
    %27 = math.exp %26 : vector<2x32xf32>
    %cst_27 = arith.constant 1.000000e+00 : f32
    %28 = vector.broadcast %cst_27 : f32 to vector<2x32xf32>
    %29 = arith.addf %28, %27 : vector<2x32xf32>
    %30 = arith.divf %28, %29 : vector<2x32xf32>
    %31 = vector.extract_strided_slice %24 {offsets = [0, 32], sizes = [2, 32], strides = [1, 1]} : vector<2x128xf32> to vector<2x32xf32>
    %32 = arith.negf %31 : vector<2x32xf32>
    %33 = math.exp %32 : vector<2x32xf32>
    %cst_28 = arith.constant 1.000000e+00 : f32
    %34 = vector.broadcast %cst_28 : f32 to vector<2x32xf32>
    %35 = arith.addf %34, %33 : vector<2x32xf32>
    %36 = arith.divf %34, %35 : vector<2x32xf32>
    %37 = vector.extract_strided_slice %24 {offsets = [0, 64], sizes = [2, 32], strides = [1, 1]} : vector<2x128xf32> to vector<2x32xf32>
    %38 = math.tanh %37 : vector<2x32xf32>
    %39 = vector.extract_strided_slice %24 {offsets = [0, 96], sizes = [2, 32], strides = [1, 1]} : vector<2x128xf32> to vector<2x32xf32>
    %40 = arith.negf %39 : vector<2x32xf32>
    %41 = math.exp %40 : vector<2x32xf32>
    %cst_29 = arith.constant 1.000000e+00 : f32
    %42 = vector.broadcast %cst_29 : f32 to vector<2x32xf32>
    %43 = arith.addf %42, %41 : vector<2x32xf32>
    %44 = arith.divf %42, %43 : vector<2x32xf32>
    %45 = arith.mulf %36, %21 : vector<2x32xf32>
    %46 = arith.mulf %30, %38 : vector<2x32xf32>
    %47 = arith.addf %45, %46 : vector<2x32xf32>
    %48 = math.tanh %47 : vector<2x32xf32>
    %49 = arith.mulf %44, %48 : vector<2x32xf32>
    %50 = vector.extract_strided_slice %15 {offsets = [0, 128], sizes = [2, 128], strides = [1, 1]} : vector<2x256xf32> to vector<2x128xf32>
    %cst_30 = arith.constant dense<0.000000e+00> : vector<2x128xf32>
    %51 = tpu.matmul %21, %17, %cst_30 {dimension_numbers = #tpu.dot_dimension_numbers<[1], [0], [0], [1], [0, 0, 1, 1], [], []>} : vector<2x32xf32>, vector<32x128xf32>, vector<2x128xf32> -> vector<2x128xf32>
    %52 = arith.addf %50, %51 : vector<2x128xf32>
    %53 = vector.extract_strided_slice %52 {offsets = [0, 0], sizes = [2, 32], strides = [1, 1]} : vector<2x128xf32> to vector<2x32xf32>
    %54 = arith.negf %53 : vector<2x32xf32>
    %55 = math.exp %54 : vector<2x32xf32>
    %cst_31 = arith.constant 1.000000e+00 : f32
    %56 = vector.broadcast %cst_31 : f32 to vector<2x32xf32>
    %57 = arith.addf %56, %55 : vector<2x32xf32>
    %58 = arith.divf %56, %57 : vector<2x32xf32>
    %59 = vector.extract_strided_slice %52 {offsets = [0, 32], sizes = [2, 32], strides = [1, 1]} : vector<2x128xf32> to vector<2x32xf32>
    %60 = arith.negf %59 : vector<2x32xf32>
    %61 = math.exp %60 : vector<2x32xf32>
    %cst_32 = arith.constant 1.000000e+00 : f32
    %62 = vector.broadcast %cst_32 : f32 to vector<2x32xf32>
    %63 = arith.addf %62, %61 : vector<2x32xf32>
    %64 = arith.divf %62, %63 : vector<2x32xf32>
    %65 = vector.extract_strided_slice %52 {offsets = [0, 64], sizes = [2, 32], strides = [1, 1]} : vector<2x128xf32> to vector<2x32xf32>
    %66 = math.tanh %65 : vector<2x32xf32>
    %67 = vector.extract_strided_slice %52 {offsets = [0, 96], sizes = [2, 32], strides = [1, 1]} : vector<2x128xf32> to vector<2x32xf32>
    %68 = arith.negf %67 : vector<2x32xf32>
    %69 = math.exp %68 : vector<2x32xf32>
    %cst_33 = arith.constant 1.000000e+00 : f32
    %70 = vector.broadcast %cst_33 : f32 to vector<2x32xf32>
    %71 = arith.addf %70, %69 : vector<2x32xf32>
    %72 = arith.divf %70, %71 : vector<2x32xf32>
    %73 = arith.mulf %64, %21 : vector<2x32xf32>
    %74 = arith.mulf %58, %66 : vector<2x32xf32>
    %75 = arith.addf %73, %74 : vector<2x32xf32>
    %76 = math.tanh %75 : vector<2x32xf32>
    %77 = arith.mulf %72, %76 : vector<2x32xf32>
    %cst_34 = arith.constant dense<0.000000e+00> : vector<2x256xf32>
    %78 = tpu.matmul %49, %18, %cst_34 {dimension_numbers = #tpu.dot_dimension_numbers<[1], [0], [0], [1], [0, 0, 1, 1], [], []>} : vector<2x32xf32>, vector<32x256xf32>, vector<2x256xf32> -> vector<2x256xf32>
    %79 = vector.broadcast %20 : vector<1x256xf32> to vector<2x256xf32>
    %80 = arith.addf %79, %78 : vector<2x256xf32>
    %cst_35 = arith.constant dense<0.000000e+00> : vector<2x256xf32>
    %81 = tpu.matmul %77, %19, %cst_35 {dimension_numbers = #tpu.dot_dimension_numbers<[1], [0], [0], [1], [0, 0, 1, 1], [], []>} : vector<2x32xf32>, vector<32x256xf32>, vector<2x256xf32> -> vector<2x256xf32>
    %82 = vector.broadcast %20 : vector<1x256xf32> to vector<2x256xf32>
    %83 = arith.addf %82, %81 : vector<2x256xf32>
    %84 = vector.extract_strided_slice %3 {offsets = [0, 0], sizes = [2, 128], strides = [1, 1]} : vector<2x256xf32> to vector<2x128xf32>
    %cst_36 = arith.constant dense<0.000000e+00> : vector<2x128xf32>
    %85 = tpu.matmul %49, %16, %cst_36 {dimension_numbers = #tpu.dot_dimension_numbers<[1], [0], [0], [1], [0, 0, 1, 1], [], []>} : vector<2x32xf32>, vector<32x128xf32>, vector<2x128xf32> -> vector<2x128xf32>
    %86 = arith.addf %84, %85 : vector<2x128xf32>
    %87 = vector.extract_strided_slice %86 {offsets = [0, 0], sizes = [2, 32], strides = [1, 1]} : vector<2x128xf32> to vector<2x32xf32>
    %88 = arith.negf %87 : vector<2x32xf32>
    %89 = math.exp %88 : vector<2x32xf32>
    %cst_37 = arith.constant 1.000000e+00 : f32
    %90 = vector.broadcast %cst_37 : f32 to vector<2x32xf32>
    %91 = arith.addf %90, %89 : vector<2x32xf32>
    %92 = arith.divf %90, %91 : vector<2x32xf32>
    %93 = vector.extract_strided_slice %86 {offsets = [0, 32], sizes = [2, 32], strides = [1, 1]} : vector<2x128xf32> to vector<2x32xf32>
    %94 = arith.negf %93 : vector<2x32xf32>
    %95 = math.exp %94 : vector<2x32xf32>
    %cst_38 = arith.constant 1.000000e+00 : f32
    %96 = vector.broadcast %cst_38 : f32 to vector<2x32xf32>
    %97 = arith.addf %96, %95 : vector<2x32xf32>
    %98 = arith.divf %96, %97 : vector<2x32xf32>
    %99 = vector.extract_strided_slice %86 {offsets = [0, 64], sizes = [2, 32], strides = [1, 1]} : vector<2x128xf32> to vector<2x32xf32>
    %100 = math.tanh %99 : vector<2x32xf32>
    %101 = vector.extract_strided_slice %86 {offsets = [0, 96], sizes = [2, 32], strides = [1, 1]} : vector<2x128xf32> to vector<2x32xf32>
    %102 = arith.negf %101 : vector<2x32xf32>
    %103 = math.exp %102 : vector<2x32xf32>
    %cst_39 = arith.constant 1.000000e+00 : f32
    %104 = vector.broadcast %cst_39 : f32 to vector<2x32xf32>
    %105 = arith.addf %104, %103 : vector<2x32xf32>
    %106 = arith.divf %104, %105 : vector<2x32xf32>
    %107 = arith.mulf %98, %47 : vector<2x32xf32>
    %108 = arith.mulf %92, %100 : vector<2x32xf32>
    %109 = arith.addf %107, %108 : vector<2x32xf32>
    %110 = math.tanh %109 : vector<2x32xf32>
    %111 = arith.mulf %106, %110 : vector<2x32xf32>
    %112 = vector.extract_strided_slice %13 {offsets = [0, 128], sizes = [2, 128], strides = [1, 1]} : vector<2x256xf32> to vector<2x128xf32>
    %cst_40 = arith.constant dense<0.000000e+00> : vector<2x128xf32>
    %113 = tpu.matmul %77, %17, %cst_40 {dimension_numbers = #tpu.dot_dimension_numbers<[1], [0], [0], [1], [0, 0, 1, 1], [], []>} : vector<2x32xf32>, vector<32x128xf32>, vector<2x128xf32> -> vector<2x128xf32>
    %114 = arith.addf %112, %113 : vector<2x128xf32>
    %115 = vector.extract_strided_slice %114 {offsets = [0, 0], sizes = [2, 32], strides = [1, 1]} : vector<2x128xf32> to vector<2x32xf32>
    %116 = arith.negf %115 : vector<2x32xf32>
    %117 = math.exp %116 : vector<2x32xf32>
    %cst_41 = arith.constant 1.000000e+00 : f32
    %118 = vector.broadcast %cst_41 : f32 to vector<2x32xf32>
    %119 = arith.addf %118, %117 : vector<2x32xf32>
    %120 = arith.divf %118, %119 : vector<2x32xf32>
    %121 = vector.extract_strided_slice %114 {offsets = [0, 32], sizes = [2, 32], strides = [1, 1]} : vector<2x128xf32> to vector<2x32xf32>
    %122 = arith.negf %121 : vector<2x32xf32>
    %123 = math.exp %122 : vector<2x32xf32>
    %cst_42 = arith.constant 1.000000e+00 : f32
    %124 = vector.broadcast %cst_42 : f32 to vector<2x32xf32>
    %125 = arith.addf %124, %123 : vector<2x32xf32>
    %126 = arith.divf %124, %125 : vector<2x32xf32>
    %127 = vector.extract_strided_slice %114 {offsets = [0, 64], sizes = [2, 32], strides = [1, 1]} : vector<2x128xf32> to vector<2x32xf32>
    %128 = math.tanh %127 : vector<2x32xf32>
    %129 = vector.extract_strided_slice %114 {offsets = [0, 96], sizes = [2, 32], strides = [1, 1]} : vector<2x128xf32> to vector<2x32xf32>
    %130 = arith.negf %129 : vector<2x32xf32>
    %131 = math.exp %130 : vector<2x32xf32>
    %cst_43 = arith.constant 1.000000e+00 : f32
    %132 = vector.broadcast %cst_43 : f32 to vector<2x32xf32>
    %133 = arith.addf %132, %131 : vector<2x32xf32>
    %134 = arith.divf %132, %133 : vector<2x32xf32>
    %135 = arith.mulf %126, %75 : vector<2x32xf32>
    %136 = arith.mulf %120, %128 : vector<2x32xf32>
    %137 = arith.addf %135, %136 : vector<2x32xf32>
    %138 = math.tanh %137 : vector<2x32xf32>
    %139 = arith.mulf %134, %138 : vector<2x32xf32>
    %cst_44 = arith.constant dense<0.000000e+00> : vector<2x256xf32>
    %140 = tpu.matmul %111, %18, %cst_44 {dimension_numbers = #tpu.dot_dimension_numbers<[1], [0], [0], [1], [0, 0, 1, 1], [], []>} : vector<2x32xf32>, vector<32x256xf32>, vector<2x256xf32> -> vector<2x256xf32>
    %141 = vector.broadcast %20 : vector<1x256xf32> to vector<2x256xf32>
    %142 = arith.addf %141, %140 : vector<2x256xf32>
    %cst_45 = arith.constant dense<0.000000e+00> : vector<2x256xf32>
    %143 = tpu.matmul %139, %19, %cst_45 {dimension_numbers = #tpu.dot_dimension_numbers<[1], [0], [0], [1], [0, 0, 1, 1], [], []>} : vector<2x32xf32>, vector<32x256xf32>, vector<2x256xf32> -> vector<2x256xf32>
    %144 = vector.broadcast %20 : vector<1x256xf32> to vector<2x256xf32>
    %145 = arith.addf %144, %143 : vector<2x256xf32>
    %146 = vector.extract_strided_slice %5 {offsets = [0, 0], sizes = [2, 128], strides = [1, 1]} : vector<2x256xf32> to vector<2x128xf32>
    %cst_46 = arith.constant dense<0.000000e+00> : vector<2x128xf32>
    %147 = tpu.matmul %111, %16, %cst_46 {dimension_numbers = #tpu.dot_dimension_numbers<[1], [0], [0], [1], [0, 0, 1, 1], [], []>} : vector<2x32xf32>, vector<32x128xf32>, vector<2x128xf32> -> vector<2x128xf32>
    %148 = arith.addf %146, %147 : vector<2x128xf32>
    %149 = vector.extract_strided_slice %148 {offsets = [0, 0], sizes = [2, 32], strides = [1, 1]} : vector<2x128xf32> to vector<2x32xf32>
    %150 = arith.negf %149 : vector<2x32xf32>
    %151 = math.exp %150 : vector<2x32xf32>
    %cst_47 = arith.constant 1.000000e+00 : f32
    %152 = vector.broadcast %cst_47 : f32 to vector<2x32xf32>
    %153 = arith.addf %152, %151 : vector<2x32xf32>
    %154 = arith.divf %152, %153 : vector<2x32xf32>
    %155 = vector.extract_strided_slice %148 {offsets = [0, 32], sizes = [2, 32], strides = [1, 1]} : vector<2x128xf32> to vector<2x32xf32>
    %156 = arith.negf %155 : vector<2x32xf32>
    %157 = math.exp %156 : vector<2x32xf32>
    %cst_48 = arith.constant 1.000000e+00 : f32
    %158 = vector.broadcast %cst_48 : f32 to vector<2x32xf32>
    %159 = arith.addf %158, %157 : vector<2x32xf32>
    %160 = arith.divf %158, %159 : vector<2x32xf32>
    %161 = vector.extract_strided_slice %148 {offsets = [0, 64], sizes = [2, 32], strides = [1, 1]} : vector<2x128xf32> to vector<2x32xf32>
    %162 = math.tanh %161 : vector<2x32xf32>
    %163 = vector.extract_strided_slice %148 {offsets = [0, 96], sizes = [2, 32], strides = [1, 1]} : vector<2x128xf32> to vector<2x32xf32>
    %164 = arith.negf %163 : vector<2x32xf32>
    %165 = math.exp %164 : vector<2x32xf32>
    %cst_49 = arith.constant 1.000000e+00 : f32
    %166 = vector.broadcast %cst_49 : f32 to vector<2x32xf32>
    %167 = arith.addf %166, %165 : vector<2x32xf32>
    %168 = arith.divf %166, %167 : vector<2x32xf32>
    %169 = arith.mulf %160, %109 : vector<2x32xf32>
    %170 = arith.mulf %154, %162 : vector<2x32xf32>
    %171 = arith.addf %169, %170 : vector<2x32xf32>
    %172 = math.tanh %171 : vector<2x32xf32>
    %173 = arith.mulf %168, %172 : vector<2x32xf32>
    %174 = vector.extract_strided_slice %11 {offsets = [0, 128], sizes = [2, 128], strides = [1, 1]} : vector<2x256xf32> to vector<2x128xf32>
    %cst_50 = arith.constant dense<0.000000e+00> : vector<2x128xf32>
    %175 = tpu.matmul %139, %17, %cst_50 {dimension_numbers = #tpu.dot_dimension_numbers<[1], [0], [0], [1], [0, 0, 1, 1], [], []>} : vector<2x32xf32>, vector<32x128xf32>, vector<2x128xf32> -> vector<2x128xf32>
    %176 = arith.addf %174, %175 : vector<2x128xf32>
    %177 = vector.extract_strided_slice %176 {offsets = [0, 0], sizes = [2, 32], strides = [1, 1]} : vector<2x128xf32> to vector<2x32xf32>
    %178 = arith.negf %177 : vector<2x32xf32>
    %179 = math.exp %178 : vector<2x32xf32>
    %cst_51 = arith.constant 1.000000e+00 : f32
    %180 = vector.broadcast %cst_51 : f32 to vector<2x32xf32>
    %181 = arith.addf %180, %179 : vector<2x32xf32>
    %182 = arith.divf %180, %181 : vector<2x32xf32>
    %183 = vector.extract_strided_slice %176 {offsets = [0, 32], sizes = [2, 32], strides = [1, 1]} : vector<2x128xf32> to vector<2x32xf32>
    %184 = arith.negf %183 : vector<2x32xf32>
    %185 = math.exp %184 : vector<2x32xf32>
    %cst_52 = arith.constant 1.000000e+00 : f32
    %186 = vector.broadcast %cst_52 : f32 to vector<2x32xf32>
    %187 = arith.addf %186, %185 : vector<2x32xf32>
    %188 = arith.divf %186, %187 : vector<2x32xf32>
    %189 = vector.extract_strided_slice %176 {offsets = [0, 64], sizes = [2, 32], strides = [1, 1]} : vector<2x128xf32> to vector<2x32xf32>
    %190 = math.tanh %189 : vector<2x32xf32>
    %191 = vector.extract_strided_slice %176 {offsets = [0, 96], sizes = [2, 32], strides = [1, 1]} : vector<2x128xf32> to vector<2x32xf32>
    %192 = arith.negf %191 : vector<2x32xf32>
    %193 = math.exp %192 : vector<2x32xf32>
    %cst_53 = arith.constant 1.000000e+00 : f32
    %194 = vector.broadcast %cst_53 : f32 to vector<2x32xf32>
    %195 = arith.addf %194, %193 : vector<2x32xf32>
    %196 = arith.divf %194, %195 : vector<2x32xf32>
    %197 = arith.mulf %188, %137 : vector<2x32xf32>
    %198 = arith.mulf %182, %190 : vector<2x32xf32>
    %199 = arith.addf %197, %198 : vector<2x32xf32>
    %200 = math.tanh %199 : vector<2x32xf32>
    %201 = arith.mulf %196, %200 : vector<2x32xf32>
    %cst_54 = arith.constant dense<0.000000e+00> : vector<2x256xf32>
    %202 = tpu.matmul %173, %18, %cst_54 {dimension_numbers = #tpu.dot_dimension_numbers<[1], [0], [0], [1], [0, 0, 1, 1], [], []>} : vector<2x32xf32>, vector<32x256xf32>, vector<2x256xf32> -> vector<2x256xf32>
    %203 = vector.broadcast %20 : vector<1x256xf32> to vector<2x256xf32>
    %204 = arith.addf %203, %202 : vector<2x256xf32>
    %cst_55 = arith.constant dense<0.000000e+00> : vector<2x256xf32>
    %205 = tpu.matmul %201, %19, %cst_55 {dimension_numbers = #tpu.dot_dimension_numbers<[1], [0], [0], [1], [0, 0, 1, 1], [], []>} : vector<2x32xf32>, vector<32x256xf32>, vector<2x256xf32> -> vector<2x256xf32>
    %206 = vector.broadcast %20 : vector<1x256xf32> to vector<2x256xf32>
    %207 = arith.addf %206, %205 : vector<2x256xf32>
    %208 = vector.extract_strided_slice %7 {offsets = [0, 0], sizes = [2, 128], strides = [1, 1]} : vector<2x256xf32> to vector<2x128xf32>
    %cst_56 = arith.constant dense<0.000000e+00> : vector<2x128xf32>
    %209 = tpu.matmul %173, %16, %cst_56 {dimension_numbers = #tpu.dot_dimension_numbers<[1], [0], [0], [1], [0, 0, 1, 1], [], []>} : vector<2x32xf32>, vector<32x128xf32>, vector<2x128xf32> -> vector<2x128xf32>
    %210 = arith.addf %208, %209 : vector<2x128xf32>
    %211 = vector.extract_strided_slice %210 {offsets = [0, 0], sizes = [2, 32], strides = [1, 1]} : vector<2x128xf32> to vector<2x32xf32>
    %212 = arith.negf %211 : vector<2x32xf32>
    %213 = math.exp %212 : vector<2x32xf32>
    %cst_57 = arith.constant 1.000000e+00 : f32
    %214 = vector.broadcast %cst_57 : f32 to vector<2x32xf32>
    %215 = arith.addf %214, %213 : vector<2x32xf32>
    %216 = arith.divf %214, %215 : vector<2x32xf32>
    %217 = vector.extract_strided_slice %210 {offsets = [0, 32], sizes = [2, 32], strides = [1, 1]} : vector<2x128xf32> to vector<2x32xf32>
    %218 = arith.negf %217 : vector<2x32xf32>
    %219 = math.exp %218 : vector<2x32xf32>
    %cst_58 = arith.constant 1.000000e+00 : f32
    %220 = vector.broadcast %cst_58 : f32 to vector<2x32xf32>
    %221 = arith.addf %220, %219 : vector<2x32xf32>
    %222 = arith.divf %220, %221 : vector<2x32xf32>
    %223 = vector.extract_strided_slice %210 {offsets = [0, 64], sizes = [2, 32], strides = [1, 1]} : vector<2x128xf32> to vector<2x32xf32>
    %224 = math.tanh %223 : vector<2x32xf32>
    %225 = vector.extract_strided_slice %210 {offsets = [0, 96], sizes = [2, 32], strides = [1, 1]} : vector<2x128xf32> to vector<2x32xf32>
    %226 = arith.negf %225 : vector<2x32xf32>
    %227 = math.exp %226 : vector<2x32xf32>
    %cst_59 = arith.constant 1.000000e+00 : f32
    %228 = vector.broadcast %cst_59 : f32 to vector<2x32xf32>
    %229 = arith.addf %228, %227 : vector<2x32xf32>
    %230 = arith.divf %228, %229 : vector<2x32xf32>
    %231 = arith.mulf %222, %171 : vector<2x32xf32>
    %232 = arith.mulf %216, %224 : vector<2x32xf32>
    %233 = arith.addf %231, %232 : vector<2x32xf32>
    %234 = math.tanh %233 : vector<2x32xf32>
    %235 = arith.mulf %230, %234 : vector<2x32xf32>
    %236 = vector.extract_strided_slice %9 {offsets = [0, 128], sizes = [2, 128], strides = [1, 1]} : vector<2x256xf32> to vector<2x128xf32>
    %cst_60 = arith.constant dense<0.000000e+00> : vector<2x128xf32>
    %237 = tpu.matmul %201, %17, %cst_60 {dimension_numbers = #tpu.dot_dimension_numbers<[1], [0], [0], [1], [0, 0, 1, 1], [], []>} : vector<2x32xf32>, vector<32x128xf32>, vector<2x128xf32> -> vector<2x128xf32>
    %238 = arith.addf %236, %237 : vector<2x128xf32>
    %239 = vector.extract_strided_slice %238 {offsets = [0, 0], sizes = [2, 32], strides = [1, 1]} : vector<2x128xf32> to vector<2x32xf32>
    %240 = arith.negf %239 : vector<2x32xf32>
    %241 = math.exp %240 : vector<2x32xf32>
    %cst_61 = arith.constant 1.000000e+00 : f32
    %242 = vector.broadcast %cst_61 : f32 to vector<2x32xf32>
    %243 = arith.addf %242, %241 : vector<2x32xf32>
    %244 = arith.divf %242, %243 : vector<2x32xf32>
    %245 = vector.extract_strided_slice %238 {offsets = [0, 32], sizes = [2, 32], strides = [1, 1]} : vector<2x128xf32> to vector<2x32xf32>
    %246 = arith.negf %245 : vector<2x32xf32>
    %247 = math.exp %246 : vector<2x32xf32>
    %cst_62 = arith.constant 1.000000e+00 : f32
    %248 = vector.broadcast %cst_62 : f32 to vector<2x32xf32>
    %249 = arith.addf %248, %247 : vector<2x32xf32>
    %250 = arith.divf %248, %249 : vector<2x32xf32>
    %251 = vector.extract_strided_slice %238 {offsets = [0, 64], sizes = [2, 32], strides = [1, 1]} : vector<2x128xf32> to vector<2x32xf32>
    %252 = math.tanh %251 : vector<2x32xf32>
    %253 = vector.extract_strided_slice %238 {offsets = [0, 96], sizes = [2, 32], strides = [1, 1]} : vector<2x128xf32> to vector<2x32xf32>
    %254 = arith.negf %253 : vector<2x32xf32>
    %255 = math.exp %254 : vector<2x32xf32>
    %cst_63 = arith.constant 1.000000e+00 : f32
    %256 = vector.broadcast %cst_63 : f32 to vector<2x32xf32>
    %257 = arith.addf %256, %255 : vector<2x32xf32>
    %258 = arith.divf %256, %257 : vector<2x32xf32>
    %259 = arith.mulf %250, %199 : vector<2x32xf32>
    %260 = arith.mulf %244, %252 : vector<2x32xf32>
    %261 = arith.addf %259, %260 : vector<2x32xf32>
    %262 = math.tanh %261 : vector<2x32xf32>
    %263 = arith.mulf %258, %262 : vector<2x32xf32>
    %cst_64 = arith.constant dense<0.000000e+00> : vector<2x256xf32>
    %264 = tpu.matmul %235, %18, %cst_64 {dimension_numbers = #tpu.dot_dimension_numbers<[1], [0], [0], [1], [0, 0, 1, 1], [], []>} : vector<2x32xf32>, vector<32x256xf32>, vector<2x256xf32> -> vector<2x256xf32>
    %265 = vector.broadcast %20 : vector<1x256xf32> to vector<2x256xf32>
    %266 = arith.addf %265, %264 : vector<2x256xf32>
    %cst_65 = arith.constant dense<0.000000e+00> : vector<2x256xf32>
    %267 = tpu.matmul %263, %19, %cst_65 {dimension_numbers = #tpu.dot_dimension_numbers<[1], [0], [0], [1], [0, 0, 1, 1], [], []>} : vector<2x32xf32>, vector<32x256xf32>, vector<2x256xf32> -> vector<2x256xf32>
    %268 = vector.broadcast %20 : vector<1x256xf32> to vector<2x256xf32>
    %269 = arith.addf %268, %267 : vector<2x256xf32>
    %270 = vector.extract_strided_slice %9 {offsets = [0, 0], sizes = [2, 128], strides = [1, 1]} : vector<2x256xf32> to vector<2x128xf32>
    %cst_66 = arith.constant dense<0.000000e+00> : vector<2x128xf32>
    %271 = tpu.matmul %235, %16, %cst_66 {dimension_numbers = #tpu.dot_dimension_numbers<[1], [0], [0], [1], [0, 0, 1, 1], [], []>} : vector<2x32xf32>, vector<32x128xf32>, vector<2x128xf32> -> vector<2x128xf32>
    %272 = arith.addf %270, %271 : vector<2x128xf32>
    %273 = vector.extract_strided_slice %272 {offsets = [0, 0], sizes = [2, 32], strides = [1, 1]} : vector<2x128xf32> to vector<2x32xf32>
    %274 = arith.negf %273 : vector<2x32xf32>
    %275 = math.exp %274 : vector<2x32xf32>
    %cst_67 = arith.constant 1.000000e+00 : f32
    %276 = vector.broadcast %cst_67 : f32 to vector<2x32xf32>
    %277 = arith.addf %276, %275 : vector<2x32xf32>
    %278 = arith.divf %276, %277 : vector<2x32xf32>
    %279 = vector.extract_strided_slice %272 {offsets = [0, 32], sizes = [2, 32], strides = [1, 1]} : vector<2x128xf32> to vector<2x32xf32>
    %280 = arith.negf %279 : vector<2x32xf32>
    %281 = math.exp %280 : vector<2x32xf32>
    %cst_68 = arith.constant 1.000000e+00 : f32
    %282 = vector.broadcast %cst_68 : f32 to vector<2x32xf32>
    %283 = arith.addf %282, %281 : vector<2x32xf32>
    %284 = arith.divf %282, %283 : vector<2x32xf32>
    %285 = vector.extract_strided_slice %272 {offsets = [0, 64], sizes = [2, 32], strides = [1, 1]} : vector<2x128xf32> to vector<2x32xf32>
    %286 = math.tanh %285 : vector<2x32xf32>
    %287 = vector.extract_strided_slice %272 {offsets = [0, 96], sizes = [2, 32], strides = [1, 1]} : vector<2x128xf32> to vector<2x32xf32>
    %288 = arith.negf %287 : vector<2x32xf32>
    %289 = math.exp %288 : vector<2x32xf32>
    %cst_69 = arith.constant 1.000000e+00 : f32
    %290 = vector.broadcast %cst_69 : f32 to vector<2x32xf32>
    %291 = arith.addf %290, %289 : vector<2x32xf32>
    %292 = arith.divf %290, %291 : vector<2x32xf32>
    %293 = arith.mulf %284, %233 : vector<2x32xf32>
    %294 = arith.mulf %278, %286 : vector<2x32xf32>
    %295 = arith.addf %293, %294 : vector<2x32xf32>
    %296 = math.tanh %295 : vector<2x32xf32>
    %297 = arith.mulf %292, %296 : vector<2x32xf32>
    %298 = vector.extract_strided_slice %7 {offsets = [0, 128], sizes = [2, 128], strides = [1, 1]} : vector<2x256xf32> to vector<2x128xf32>
    %cst_70 = arith.constant dense<0.000000e+00> : vector<2x128xf32>
    %299 = tpu.matmul %263, %17, %cst_70 {dimension_numbers = #tpu.dot_dimension_numbers<[1], [0], [0], [1], [0, 0, 1, 1], [], []>} : vector<2x32xf32>, vector<32x128xf32>, vector<2x128xf32> -> vector<2x128xf32>
    %300 = arith.addf %298, %299 : vector<2x128xf32>
    %301 = vector.extract_strided_slice %300 {offsets = [0, 0], sizes = [2, 32], strides = [1, 1]} : vector<2x128xf32> to vector<2x32xf32>
    %302 = arith.negf %301 : vector<2x32xf32>
    %303 = math.exp %302 : vector<2x32xf32>
    %cst_71 = arith.constant 1.000000e+00 : f32
    %304 = vector.broadcast %cst_71 : f32 to vector<2x32xf32>
    %305 = arith.addf %304, %303 : vector<2x32xf32>
    %306 = arith.divf %304, %305 : vector<2x32xf32>
    %307 = vector.extract_strided_slice %300 {offsets = [0, 32], sizes = [2, 32], strides = [1, 1]} : vector<2x128xf32> to vector<2x32xf32>
    %308 = arith.negf %307 : vector<2x32xf32>
    %309 = math.exp %308 : vector<2x32xf32>
    %cst_72 = arith.constant 1.000000e+00 : f32
    %310 = vector.broadcast %cst_72 : f32 to vector<2x32xf32>
    %311 = arith.addf %310, %309 : vector<2x32xf32>
    %312 = arith.divf %310, %311 : vector<2x32xf32>
    %313 = vector.extract_strided_slice %300 {offsets = [0, 64], sizes = [2, 32], strides = [1, 1]} : vector<2x128xf32> to vector<2x32xf32>
    %314 = math.tanh %313 : vector<2x32xf32>
    %315 = vector.extract_strided_slice %300 {offsets = [0, 96], sizes = [2, 32], strides = [1, 1]} : vector<2x128xf32> to vector<2x32xf32>
    %316 = arith.negf %315 : vector<2x32xf32>
    %317 = math.exp %316 : vector<2x32xf32>
    %cst_73 = arith.constant 1.000000e+00 : f32
    %318 = vector.broadcast %cst_73 : f32 to vector<2x32xf32>
    %319 = arith.addf %318, %317 : vector<2x32xf32>
    %320 = arith.divf %318, %319 : vector<2x32xf32>
    %321 = arith.mulf %312, %261 : vector<2x32xf32>
    %322 = arith.mulf %306, %314 : vector<2x32xf32>
    %323 = arith.addf %321, %322 : vector<2x32xf32>
    %324 = math.tanh %323 : vector<2x32xf32>
    %325 = arith.mulf %320, %324 : vector<2x32xf32>
    %cst_74 = arith.constant dense<0.000000e+00> : vector<2x256xf32>
    %326 = tpu.matmul %297, %18, %cst_74 {dimension_numbers = #tpu.dot_dimension_numbers<[1], [0], [0], [1], [0, 0, 1, 1], [], []>} : vector<2x32xf32>, vector<32x256xf32>, vector<2x256xf32> -> vector<2x256xf32>
    %327 = arith.addf %269, %326 : vector<2x256xf32>
    %cst_75 = arith.constant dense<0.000000e+00> : vector<2x256xf32>
    %328 = tpu.matmul %325, %19, %cst_75 {dimension_numbers = #tpu.dot_dimension_numbers<[1], [0], [0], [1], [0, 0, 1, 1], [], []>} : vector<2x32xf32>, vector<32x256xf32>, vector<2x256xf32> -> vector<2x256xf32>
    %329 = arith.addf %266, %328 : vector<2x256xf32>
    %330 = vector.extract_strided_slice %11 {offsets = [0, 0], sizes = [2, 128], strides = [1, 1]} : vector<2x256xf32> to vector<2x128xf32>
    %cst_76 = arith.constant dense<0.000000e+00> : vector<2x128xf32>
    %331 = tpu.matmul %297, %16, %cst_76 {dimension_numbers = #tpu.dot_dimension_numbers<[1], [0], [0], [1], [0, 0, 1, 1], [], []>} : vector<2x32xf32>, vector<32x128xf32>, vector<2x128xf32> -> vector<2x128xf32>
    %332 = arith.addf %330, %331 : vector<2x128xf32>
    %333 = vector.extract_strided_slice %332 {offsets = [0, 0], sizes = [2, 32], strides = [1, 1]} : vector<2x128xf32> to vector<2x32xf32>
    %334 = arith.negf %333 : vector<2x32xf32>
    %335 = math.exp %334 : vector<2x32xf32>
    %cst_77 = arith.constant 1.000000e+00 : f32
    %336 = vector.broadcast %cst_77 : f32 to vector<2x32xf32>
    %337 = arith.addf %336, %335 : vector<2x32xf32>
    %338 = arith.divf %336, %337 : vector<2x32xf32>
    %339 = vector.extract_strided_slice %332 {offsets = [0, 32], sizes = [2, 32], strides = [1, 1]} : vector<2x128xf32> to vector<2x32xf32>
    %340 = arith.negf %339 : vector<2x32xf32>
    %341 = math.exp %340 : vector<2x32xf32>
    %cst_78 = arith.constant 1.000000e+00 : f32
    %342 = vector.broadcast %cst_78 : f32 to vector<2x32xf32>
    %343 = arith.addf %342, %341 : vector<2x32xf32>
    %344 = arith.divf %342, %343 : vector<2x32xf32>
    %345 = vector.extract_strided_slice %332 {offsets = [0, 64], sizes = [2, 32], strides = [1, 1]} : vector<2x128xf32> to vector<2x32xf32>
    %346 = math.tanh %345 : vector<2x32xf32>
    %347 = vector.extract_strided_slice %332 {offsets = [0, 96], sizes = [2, 32], strides = [1, 1]} : vector<2x128xf32> to vector<2x32xf32>
    %348 = arith.negf %347 : vector<2x32xf32>
    %349 = math.exp %348 : vector<2x32xf32>
    %cst_79 = arith.constant 1.000000e+00 : f32
    %350 = vector.broadcast %cst_79 : f32 to vector<2x32xf32>
    %351 = arith.addf %350, %349 : vector<2x32xf32>
    %352 = arith.divf %350, %351 : vector<2x32xf32>
    %353 = arith.mulf %344, %295 : vector<2x32xf32>
    %354 = arith.mulf %338, %346 : vector<2x32xf32>
    %355 = arith.addf %353, %354 : vector<2x32xf32>
    %356 = math.tanh %355 : vector<2x32xf32>
    %357 = arith.mulf %352, %356 : vector<2x32xf32>
    %358 = vector.extract_strided_slice %5 {offsets = [0, 128], sizes = [2, 128], strides = [1, 1]} : vector<2x256xf32> to vector<2x128xf32>
    %cst_80 = arith.constant dense<0.000000e+00> : vector<2x128xf32>
    %359 = tpu.matmul %325, %17, %cst_80 {dimension_numbers = #tpu.dot_dimension_numbers<[1], [0], [0], [1], [0, 0, 1, 1], [], []>} : vector<2x32xf32>, vector<32x128xf32>, vector<2x128xf32> -> vector<2x128xf32>
    %360 = arith.addf %358, %359 : vector<2x128xf32>
    %361 = vector.extract_strided_slice %360 {offsets = [0, 0], sizes = [2, 32], strides = [1, 1]} : vector<2x128xf32> to vector<2x32xf32>
    %362 = arith.negf %361 : vector<2x32xf32>
    %363 = math.exp %362 : vector<2x32xf32>
    %cst_81 = arith.constant 1.000000e+00 : f32
    %364 = vector.broadcast %cst_81 : f32 to vector<2x32xf32>
    %365 = arith.addf %364, %363 : vector<2x32xf32>
    %366 = arith.divf %364, %365 : vector<2x32xf32>
    %367 = vector.extract_strided_slice %360 {offsets = [0, 32], sizes = [2, 32], strides = [1, 1]} : vector<2x128xf32> to vector<2x32xf32>
    %368 = arith.negf %367 : vector<2x32xf32>
    %369 = math.exp %368 : vector<2x32xf32>
    %cst_82 = arith.constant 1.000000e+00 : f32
    %370 = vector.broadcast %cst_82 : f32 to vector<2x32xf32>
    %371 = arith.addf %370, %369 : vector<2x32xf32>
    %372 = arith.divf %370, %371 : vector<2x32xf32>
    %373 = vector.extract_strided_slice %360 {offsets = [0, 64], sizes = [2, 32], strides = [1, 1]} : vector<2x128xf32> to vector<2x32xf32>
    %374 = math.tanh %373 : vector<2x32xf32>
    %375 = vector.extract_strided_slice %360 {offsets = [0, 96], sizes = [2, 32], strides = [1, 1]} : vector<2x128xf32> to vector<2x32xf32>
    %376 = arith.negf %375 : vector<2x32xf32>
    %377 = math.exp %376 : vector<2x32xf32>
    %cst_83 = arith.constant 1.000000e+00 : f32
    %378 = vector.broadcast %cst_83 : f32 to vector<2x32xf32>
    %379 = arith.addf %378, %377 : vector<2x32xf32>
    %380 = arith.divf %378, %379 : vector<2x32xf32>
    %381 = arith.mulf %372, %323 : vector<2x32xf32>
    %382 = arith.mulf %366, %374 : vector<2x32xf32>
    %383 = arith.addf %381, %382 : vector<2x32xf32>
    %384 = math.tanh %383 : vector<2x32xf32>
    %385 = arith.mulf %380, %384 : vector<2x32xf32>
    %cst_84 = arith.constant dense<0.000000e+00> : vector<2x256xf32>
    %386 = tpu.matmul %357, %18, %cst_84 {dimension_numbers = #tpu.dot_dimension_numbers<[1], [0], [0], [1], [0, 0, 1, 1], [], []>} : vector<2x32xf32>, vector<32x256xf32>, vector<2x256xf32> -> vector<2x256xf32>
    %387 = arith.addf %207, %386 : vector<2x256xf32>
    %cst_85 = arith.constant dense<0.000000e+00> : vector<2x256xf32>
    %388 = tpu.matmul %385, %19, %cst_85 {dimension_numbers = #tpu.dot_dimension_numbers<[1], [0], [0], [1], [0, 0, 1, 1], [], []>} : vector<2x32xf32>, vector<32x256xf32>, vector<2x256xf32> -> vector<2x256xf32>
    %389 = arith.addf %204, %388 : vector<2x256xf32>
    %390 = vector.extract_strided_slice %13 {offsets = [0, 0], sizes = [2, 128], strides = [1, 1]} : vector<2x256xf32> to vector<2x128xf32>
    %cst_86 = arith.constant dense<0.000000e+00> : vector<2x128xf32>
    %391 = tpu.matmul %357, %16, %cst_86 {dimension_numbers = #tpu.dot_dimension_numbers<[1], [0], [0], [1], [0, 0, 1, 1], [], []>} : vector<2x32xf32>, vector<32x128xf32>, vector<2x128xf32> -> vector<2x128xf32>
    %392 = arith.addf %390, %391 : vector<2x128xf32>
    %393 = vector.extract_strided_slice %392 {offsets = [0, 0], sizes = [2, 32], strides = [1, 1]} : vector<2x128xf32> to vector<2x32xf32>
    %394 = arith.negf %393 : vector<2x32xf32>
    %395 = math.exp %394 : vector<2x32xf32>
    %cst_87 = arith.constant 1.000000e+00 : f32
    %396 = vector.broadcast %cst_87 : f32 to vector<2x32xf32>
    %397 = arith.addf %396, %395 : vector<2x32xf32>
    %398 = arith.divf %396, %397 : vector<2x32xf32>
    %399 = vector.extract_strided_slice %392 {offsets = [0, 32], sizes = [2, 32], strides = [1, 1]} : vector<2x128xf32> to vector<2x32xf32>
    %400 = arith.negf %399 : vector<2x32xf32>
    %401 = math.exp %400 : vector<2x32xf32>
    %cst_88 = arith.constant 1.000000e+00 : f32
    %402 = vector.broadcast %cst_88 : f32 to vector<2x32xf32>
    %403 = arith.addf %402, %401 : vector<2x32xf32>
    %404 = arith.divf %402, %403 : vector<2x32xf32>
    %405 = vector.extract_strided_slice %392 {offsets = [0, 64], sizes = [2, 32], strides = [1, 1]} : vector<2x128xf32> to vector<2x32xf32>
    %406 = math.tanh %405 : vector<2x32xf32>
    %407 = vector.extract_strided_slice %392 {offsets = [0, 96], sizes = [2, 32], strides = [1, 1]} : vector<2x128xf32> to vector<2x32xf32>
    %408 = arith.negf %407 : vector<2x32xf32>
    %409 = math.exp %408 : vector<2x32xf32>
    %cst_89 = arith.constant 1.000000e+00 : f32
    %410 = vector.broadcast %cst_89 : f32 to vector<2x32xf32>
    %411 = arith.addf %410, %409 : vector<2x32xf32>
    %412 = arith.divf %410, %411 : vector<2x32xf32>
    %413 = arith.mulf %404, %355 : vector<2x32xf32>
    %414 = arith.mulf %398, %406 : vector<2x32xf32>
    %415 = arith.addf %413, %414 : vector<2x32xf32>
    %416 = math.tanh %415 : vector<2x32xf32>
    %417 = arith.mulf %412, %416 : vector<2x32xf32>
    %418 = vector.extract_strided_slice %3 {offsets = [0, 128], sizes = [2, 128], strides = [1, 1]} : vector<2x256xf32> to vector<2x128xf32>
    %cst_90 = arith.constant dense<0.000000e+00> : vector<2x128xf32>
    %419 = tpu.matmul %385, %17, %cst_90 {dimension_numbers = #tpu.dot_dimension_numbers<[1], [0], [0], [1], [0, 0, 1, 1], [], []>} : vector<2x32xf32>, vector<32x128xf32>, vector<2x128xf32> -> vector<2x128xf32>
    %420 = arith.addf %418, %419 : vector<2x128xf32>
    %421 = vector.extract_strided_slice %420 {offsets = [0, 0], sizes = [2, 32], strides = [1, 1]} : vector<2x128xf32> to vector<2x32xf32>
    %422 = arith.negf %421 : vector<2x32xf32>
    %423 = math.exp %422 : vector<2x32xf32>
    %cst_91 = arith.constant 1.000000e+00 : f32
    %424 = vector.broadcast %cst_91 : f32 to vector<2x32xf32>
    %425 = arith.addf %424, %423 : vector<2x32xf32>
    %426 = arith.divf %424, %425 : vector<2x32xf32>
    %427 = vector.extract_strided_slice %420 {offsets = [0, 32], sizes = [2, 32], strides = [1, 1]} : vector<2x128xf32> to vector<2x32xf32>
    %428 = arith.negf %427 : vector<2x32xf32>
    %429 = math.exp %428 : vector<2x32xf32>
    %cst_92 = arith.constant 1.000000e+00 : f32
    %430 = vector.broadcast %cst_92 : f32 to vector<2x32xf32>
    %431 = arith.addf %430, %429 : vector<2x32xf32>
    %432 = arith.divf %430, %431 : vector<2x32xf32>
    %433 = vector.extract_strided_slice %420 {offsets = [0, 64], sizes = [2, 32], strides = [1, 1]} : vector<2x128xf32> to vector<2x32xf32>
    %434 = math.tanh %433 : vector<2x32xf32>
    %435 = vector.extract_strided_slice %420 {offsets = [0, 96], sizes = [2, 32], strides = [1, 1]} : vector<2x128xf32> to vector<2x32xf32>
    %436 = arith.negf %435 : vector<2x32xf32>
    %437 = math.exp %436 : vector<2x32xf32>
    %cst_93 = arith.constant 1.000000e+00 : f32
    %438 = vector.broadcast %cst_93 : f32 to vector<2x32xf32>
    %439 = arith.addf %438, %437 : vector<2x32xf32>
    %440 = arith.divf %438, %439 : vector<2x32xf32>
    %441 = arith.mulf %432, %383 : vector<2x32xf32>
    %442 = arith.mulf %426, %434 : vector<2x32xf32>
    %443 = arith.addf %441, %442 : vector<2x32xf32>
    %444 = math.tanh %443 : vector<2x32xf32>
    %445 = arith.mulf %440, %444 : vector<2x32xf32>
    %cst_94 = arith.constant dense<0.000000e+00> : vector<2x256xf32>
    %446 = tpu.matmul %417, %18, %cst_94 {dimension_numbers = #tpu.dot_dimension_numbers<[1], [0], [0], [1], [0, 0, 1, 1], [], []>} : vector<2x32xf32>, vector<32x256xf32>, vector<2x256xf32> -> vector<2x256xf32>
    %447 = arith.addf %145, %446 : vector<2x256xf32>
    %cst_95 = arith.constant dense<0.000000e+00> : vector<2x256xf32>
    %448 = tpu.matmul %445, %19, %cst_95 {dimension_numbers = #tpu.dot_dimension_numbers<[1], [0], [0], [1], [0, 0, 1, 1], [], []>} : vector<2x32xf32>, vector<32x256xf32>, vector<2x256xf32> -> vector<2x256xf32>
    %449 = arith.addf %142, %448 : vector<2x256xf32>
    %450 = vector.extract_strided_slice %15 {offsets = [0, 0], sizes = [2, 128], strides = [1, 1]} : vector<2x256xf32> to vector<2x128xf32>
    %cst_96 = arith.constant dense<0.000000e+00> : vector<2x128xf32>
    %451 = tpu.matmul %417, %16, %cst_96 {dimension_numbers = #tpu.dot_dimension_numbers<[1], [0], [0], [1], [0, 0, 1, 1], [], []>} : vector<2x32xf32>, vector<32x128xf32>, vector<2x128xf32> -> vector<2x128xf32>
    %452 = arith.addf %450, %451 : vector<2x128xf32>
    %453 = vector.extract_strided_slice %452 {offsets = [0, 0], sizes = [2, 32], strides = [1, 1]} : vector<2x128xf32> to vector<2x32xf32>
    %454 = arith.negf %453 : vector<2x32xf32>
    %455 = math.exp %454 : vector<2x32xf32>
    %cst_97 = arith.constant 1.000000e+00 : f32
    %456 = vector.broadcast %cst_97 : f32 to vector<2x32xf32>
    %457 = arith.addf %456, %455 : vector<2x32xf32>
    %458 = arith.divf %456, %457 : vector<2x32xf32>
    %459 = vector.extract_strided_slice %452 {offsets = [0, 32], sizes = [2, 32], strides = [1, 1]} : vector<2x128xf32> to vector<2x32xf32>
    %460 = arith.negf %459 : vector<2x32xf32>
    %461 = math.exp %460 : vector<2x32xf32>
    %cst_98 = arith.constant 1.000000e+00 : f32
    %462 = vector.broadcast %cst_98 : f32 to vector<2x32xf32>
    %463 = arith.addf %462, %461 : vector<2x32xf32>
    %464 = arith.divf %462, %463 : vector<2x32xf32>
    %465 = vector.extract_strided_slice %452 {offsets = [0, 64], sizes = [2, 32], strides = [1, 1]} : vector<2x128xf32> to vector<2x32xf32>
    %466 = math.tanh %465 : vector<2x32xf32>
    %467 = vector.extract_strided_slice %452 {offsets = [0, 96], sizes = [2, 32], strides = [1, 1]} : vector<2x128xf32> to vector<2x32xf32>
    %468 = arith.negf %467 : vector<2x32xf32>
    %469 = math.exp %468 : vector<2x32xf32>
    %cst_99 = arith.constant 1.000000e+00 : f32
    %470 = vector.broadcast %cst_99 : f32 to vector<2x32xf32>
    %471 = arith.addf %470, %469 : vector<2x32xf32>
    %472 = arith.divf %470, %471 : vector<2x32xf32>
    %473 = arith.mulf %464, %415 : vector<2x32xf32>
    %474 = arith.mulf %458, %466 : vector<2x32xf32>
    %475 = arith.addf %473, %474 : vector<2x32xf32>
    %476 = math.tanh %475 : vector<2x32xf32>
    %477 = arith.mulf %472, %476 : vector<2x32xf32>
    %478 = vector.extract_strided_slice %1 {offsets = [0, 128], sizes = [2, 128], strides = [1, 1]} : vector<2x256xf32> to vector<2x128xf32>
    %cst_100 = arith.constant dense<0.000000e+00> : vector<2x128xf32>
    %479 = tpu.matmul %445, %17, %cst_100 {dimension_numbers = #tpu.dot_dimension_numbers<[1], [0], [0], [1], [0, 0, 1, 1], [], []>} : vector<2x32xf32>, vector<32x128xf32>, vector<2x128xf32> -> vector<2x128xf32>
    %480 = arith.addf %478, %479 : vector<2x128xf32>
    %481 = vector.extract_strided_slice %480 {offsets = [0, 0], sizes = [2, 32], strides = [1, 1]} : vector<2x128xf32> to vector<2x32xf32>
    %482 = arith.negf %481 : vector<2x32xf32>
    %483 = math.exp %482 : vector<2x32xf32>
    %cst_101 = arith.constant 1.000000e+00 : f32
    %484 = vector.broadcast %cst_101 : f32 to vector<2x32xf32>
    %485 = arith.addf %484, %483 : vector<2x32xf32>
    %486 = arith.divf %484, %485 : vector<2x32xf32>
    %487 = vector.extract_strided_slice %480 {offsets = [0, 32], sizes = [2, 32], strides = [1, 1]} : vector<2x128xf32> to vector<2x32xf32>
    %488 = arith.negf %487 : vector<2x32xf32>
    %489 = math.exp %488 : vector<2x32xf32>
    %cst_102 = arith.constant 1.000000e+00 : f32
    %490 = vector.broadcast %cst_102 : f32 to vector<2x32xf32>
    %491 = arith.addf %490, %489 : vector<2x32xf32>
    %492 = arith.divf %490, %491 : vector<2x32xf32>
    %493 = vector.extract_strided_slice %480 {offsets = [0, 64], sizes = [2, 32], strides = [1, 1]} : vector<2x128xf32> to vector<2x32xf32>
    %494 = math.tanh %493 : vector<2x32xf32>
    %495 = vector.extract_strided_slice %480 {offsets = [0, 96], sizes = [2, 32], strides = [1, 1]} : vector<2x128xf32> to vector<2x32xf32>
    %496 = arith.negf %495 : vector<2x32xf32>
    %497 = math.exp %496 : vector<2x32xf32>
    %cst_103 = arith.constant 1.000000e+00 : f32
    %498 = vector.broadcast %cst_103 : f32 to vector<2x32xf32>
    %499 = arith.addf %498, %497 : vector<2x32xf32>
    %500 = arith.divf %498, %499 : vector<2x32xf32>
    %501 = arith.mulf %492, %443 : vector<2x32xf32>
    %502 = arith.mulf %486, %494 : vector<2x32xf32>
    %503 = arith.addf %501, %502 : vector<2x32xf32>
    %504 = math.tanh %503 : vector<2x32xf32>
    %505 = arith.mulf %500, %504 : vector<2x32xf32>
    %cst_104 = arith.constant dense<0.000000e+00> : vector<2x256xf32>
    %506 = tpu.matmul %477, %18, %cst_104 {dimension_numbers = #tpu.dot_dimension_numbers<[1], [0], [0], [1], [0, 0, 1, 1], [], []>} : vector<2x32xf32>, vector<32x256xf32>, vector<2x256xf32> -> vector<2x256xf32>
    %507 = arith.addf %83, %506 : vector<2x256xf32>
    %cst_105 = arith.constant dense<0.000000e+00> : vector<2x256xf32>
    %508 = tpu.matmul %505, %19, %cst_105 {dimension_numbers = #tpu.dot_dimension_numbers<[1], [0], [0], [1], [0, 0, 1, 1], [], []>} : vector<2x32xf32>, vector<32x256xf32>, vector<2x256xf32> -> vector<2x256xf32>
    %509 = arith.addf %80, %508 : vector<2x256xf32>
    %c0_106 = arith.constant 0 : index
    %c0_107 = arith.constant 0 : index
    %510 = vector.load %arg5[%c0_106, %c0_107] : memref<32x128xf32, #tpu.memory_space<vmem>>, vector<32x128xf32>
    %c0_108 = arith.constant 0 : index
    %c0_109 = arith.constant 0 : index
    %511 = vector.load %arg6[%c0_108, %c0_109] : memref<32x128xf32, #tpu.memory_space<vmem>>, vector<32x128xf32>
    %c0_110 = arith.constant 0 : index
    %c0_111 = arith.constant 0 : index
    %512 = vector.load %arg8[%c0_110, %c0_111] : memref<32x128xf32, #tpu.memory_space<vmem>>, vector<32x128xf32>
    %c0_112 = arith.constant 0 : index
    %c0_113 = arith.constant 0 : index
    %513 = vector.load %arg9[%c0_112, %c0_113] : memref<32x128xf32, #tpu.memory_space<vmem>>, vector<32x128xf32>
    %c0_114 = arith.constant 0 : index
    %c0_115 = arith.constant 0 : index
    %514 = vector.load %arg11[%c0_114, %c0_115] : memref<1x128xf32, #tpu.memory_space<vmem>>, vector<1x128xf32>
    %cst_116 = arith.constant 0.000000e+00 : f32
    %515 = vector.broadcast %cst_116 : f32 to vector<2x32xf32>
    %516 = vector.extract_strided_slice %509 {offsets = [0, 0], sizes = [2, 128], strides = [1, 1]} : vector<2x256xf32> to vector<2x128xf32>
    %cst_117 = arith.constant dense<0.000000e+00> : vector<2x128xf32>
    %517 = tpu.matmul %515, %510, %cst_117 {dimension_numbers = #tpu.dot_dimension_numbers<[1], [0], [0], [1], [0, 0, 1, 1], [], []>} : vector<2x32xf32>, vector<32x128xf32>, vector<2x128xf32> -> vector<2x128xf32>
    %518 = arith.addf %516, %517 : vector<2x128xf32>
    %519 = vector.extract_strided_slice %518 {offsets = [0, 0], sizes = [2, 32], strides = [1, 1]} : vector<2x128xf32> to vector<2x32xf32>
    %520 = arith.negf %519 : vector<2x32xf32>
    %521 = math.exp %520 : vector<2x32xf32>
    %cst_118 = arith.constant 1.000000e+00 : f32
    %522 = vector.broadcast %cst_118 : f32 to vector<2x32xf32>
    %523 = arith.addf %522, %521 : vector<2x32xf32>
    %524 = arith.divf %522, %523 : vector<2x32xf32>
    %525 = vector.extract_strided_slice %518 {offsets = [0, 32], sizes = [2, 32], strides = [1, 1]} : vector<2x128xf32> to vector<2x32xf32>
    %526 = arith.negf %525 : vector<2x32xf32>
    %527 = math.exp %526 : vector<2x32xf32>
    %cst_119 = arith.constant 1.000000e+00 : f32
    %528 = vector.broadcast %cst_119 : f32 to vector<2x32xf32>
    %529 = arith.addf %528, %527 : vector<2x32xf32>
    %530 = arith.divf %528, %529 : vector<2x32xf32>
    %531 = vector.extract_strided_slice %518 {offsets = [0, 64], sizes = [2, 32], strides = [1, 1]} : vector<2x128xf32> to vector<2x32xf32>
    %532 = math.tanh %531 : vector<2x32xf32>
    %533 = vector.extract_strided_slice %518 {offsets = [0, 96], sizes = [2, 32], strides = [1, 1]} : vector<2x128xf32> to vector<2x32xf32>
    %534 = arith.negf %533 : vector<2x32xf32>
    %535 = math.exp %534 : vector<2x32xf32>
    %cst_120 = arith.constant 1.000000e+00 : f32
    %536 = vector.broadcast %cst_120 : f32 to vector<2x32xf32>
    %537 = arith.addf %536, %535 : vector<2x32xf32>
    %538 = arith.divf %536, %537 : vector<2x32xf32>
    %539 = arith.mulf %530, %515 : vector<2x32xf32>
    %540 = arith.mulf %524, %532 : vector<2x32xf32>
    %541 = arith.addf %539, %540 : vector<2x32xf32>
    %542 = math.tanh %541 : vector<2x32xf32>
    %543 = arith.mulf %538, %542 : vector<2x32xf32>
    %544 = vector.extract_strided_slice %507 {offsets = [0, 128], sizes = [2, 128], strides = [1, 1]} : vector<2x256xf32> to vector<2x128xf32>
    %cst_121 = arith.constant dense<0.000000e+00> : vector<2x128xf32>
    %545 = tpu.matmul %515, %511, %cst_121 {dimension_numbers = #tpu.dot_dimension_numbers<[1], [0], [0], [1], [0, 0, 1, 1], [], []>} : vector<2x32xf32>, vector<32x128xf32>, vector<2x128xf32> -> vector<2x128xf32>
    %546 = arith.addf %544, %545 : vector<2x128xf32>
    %547 = vector.extract_strided_slice %546 {offsets = [0, 0], sizes = [2, 32], strides = [1, 1]} : vector<2x128xf32> to vector<2x32xf32>
    %548 = arith.negf %547 : vector<2x32xf32>
    %549 = math.exp %548 : vector<2x32xf32>
    %cst_122 = arith.constant 1.000000e+00 : f32
    %550 = vector.broadcast %cst_122 : f32 to vector<2x32xf32>
    %551 = arith.addf %550, %549 : vector<2x32xf32>
    %552 = arith.divf %550, %551 : vector<2x32xf32>
    %553 = vector.extract_strided_slice %546 {offsets = [0, 32], sizes = [2, 32], strides = [1, 1]} : vector<2x128xf32> to vector<2x32xf32>
    %554 = arith.negf %553 : vector<2x32xf32>
    %555 = math.exp %554 : vector<2x32xf32>
    %cst_123 = arith.constant 1.000000e+00 : f32
    %556 = vector.broadcast %cst_123 : f32 to vector<2x32xf32>
    %557 = arith.addf %556, %555 : vector<2x32xf32>
    %558 = arith.divf %556, %557 : vector<2x32xf32>
    %559 = vector.extract_strided_slice %546 {offsets = [0, 64], sizes = [2, 32], strides = [1, 1]} : vector<2x128xf32> to vector<2x32xf32>
    %560 = math.tanh %559 : vector<2x32xf32>
    %561 = vector.extract_strided_slice %546 {offsets = [0, 96], sizes = [2, 32], strides = [1, 1]} : vector<2x128xf32> to vector<2x32xf32>
    %562 = arith.negf %561 : vector<2x32xf32>
    %563 = math.exp %562 : vector<2x32xf32>
    %cst_124 = arith.constant 1.000000e+00 : f32
    %564 = vector.broadcast %cst_124 : f32 to vector<2x32xf32>
    %565 = arith.addf %564, %563 : vector<2x32xf32>
    %566 = arith.divf %564, %565 : vector<2x32xf32>
    %567 = arith.mulf %558, %515 : vector<2x32xf32>
    %568 = arith.mulf %552, %560 : vector<2x32xf32>
    %569 = arith.addf %567, %568 : vector<2x32xf32>
    %570 = math.tanh %569 : vector<2x32xf32>
    %571 = arith.mulf %566, %570 : vector<2x32xf32>
    %cst_125 = arith.constant dense<0.000000e+00> : vector<2x128xf32>
    %572 = tpu.matmul %543, %512, %cst_125 {dimension_numbers = #tpu.dot_dimension_numbers<[1], [0], [0], [1], [0, 0, 1, 1], [], []>} : vector<2x32xf32>, vector<32x128xf32>, vector<2x128xf32> -> vector<2x128xf32>
    %573 = vector.broadcast %514 : vector<1x128xf32> to vector<2x128xf32>
    %574 = arith.addf %573, %572 : vector<2x128xf32>
    %cst_126 = arith.constant dense<0.000000e+00> : vector<2x128xf32>
    %575 = tpu.matmul %571, %513, %cst_126 {dimension_numbers = #tpu.dot_dimension_numbers<[1], [0], [0], [1], [0, 0, 1, 1], [], []>} : vector<2x32xf32>, vector<32x128xf32>, vector<2x128xf32> -> vector<2x128xf32>
    %576 = vector.broadcast %514 : vector<1x128xf32> to vector<2x128xf32>
    %577 = arith.addf %576, %575 : vector<2x128xf32>
    %578 = vector.extract_strided_slice %449 {offsets = [0, 0], sizes = [2, 128], strides = [1, 1]} : vector<2x256xf32> to vector<2x128xf32>
    %cst_127 = arith.constant dense<0.000000e+00> : vector<2x128xf32>
    %579 = tpu.matmul %543, %510, %cst_127 {dimension_numbers = #tpu.dot_dimension_numbers<[1], [0], [0], [1], [0, 0, 1, 1], [], []>} : vector<2x32xf32>, vector<32x128xf32>, vector<2x128xf32> -> vector<2x128xf32>
    %580 = arith.addf %578, %579 : vector<2x128xf32>
    %581 = vector.extract_strided_slice %580 {offsets = [0, 0], sizes = [2, 32], strides = [1, 1]} : vector<2x128xf32> to vector<2x32xf32>
    %582 = arith.negf %581 : vector<2x32xf32>
    %583 = math.exp %582 : vector<2x32xf32>
    %cst_128 = arith.constant 1.000000e+00 : f32
    %584 = vector.broadcast %cst_128 : f32 to vector<2x32xf32>
    %585 = arith.addf %584, %583 : vector<2x32xf32>
    %586 = arith.divf %584, %585 : vector<2x32xf32>
    %587 = vector.extract_strided_slice %580 {offsets = [0, 32], sizes = [2, 32], strides = [1, 1]} : vector<2x128xf32> to vector<2x32xf32>
    %588 = arith.negf %587 : vector<2x32xf32>
    %589 = math.exp %588 : vector<2x32xf32>
    %cst_129 = arith.constant 1.000000e+00 : f32
    %590 = vector.broadcast %cst_129 : f32 to vector<2x32xf32>
    %591 = arith.addf %590, %589 : vector<2x32xf32>
    %592 = arith.divf %590, %591 : vector<2x32xf32>
    %593 = vector.extract_strided_slice %580 {offsets = [0, 64], sizes = [2, 32], strides = [1, 1]} : vector<2x128xf32> to vector<2x32xf32>
    %594 = math.tanh %593 : vector<2x32xf32>
    %595 = vector.extract_strided_slice %580 {offsets = [0, 96], sizes = [2, 32], strides = [1, 1]} : vector<2x128xf32> to vector<2x32xf32>
    %596 = arith.negf %595 : vector<2x32xf32>
    %597 = math.exp %596 : vector<2x32xf32>
    %cst_130 = arith.constant 1.000000e+00 : f32
    %598 = vector.broadcast %cst_130 : f32 to vector<2x32xf32>
    %599 = arith.addf %598, %597 : vector<2x32xf32>
    %600 = arith.divf %598, %599 : vector<2x32xf32>
    %601 = arith.mulf %592, %541 : vector<2x32xf32>
    %602 = arith.mulf %586, %594 : vector<2x32xf32>
    %603 = arith.addf %601, %602 : vector<2x32xf32>
    %604 = math.tanh %603 : vector<2x32xf32>
    %605 = arith.mulf %600, %604 : vector<2x32xf32>
    %606 = vector.extract_strided_slice %447 {offsets = [0, 128], sizes = [2, 128], strides = [1, 1]} : vector<2x256xf32> to vector<2x128xf32>
    %cst_131 = arith.constant dense<0.000000e+00> : vector<2x128xf32>
    %607 = tpu.matmul %571, %511, %cst_131 {dimension_numbers = #tpu.dot_dimension_numbers<[1], [0], [0], [1], [0, 0, 1, 1], [], []>} : vector<2x32xf32>, vector<32x128xf32>, vector<2x128xf32> -> vector<2x128xf32>
    %608 = arith.addf %606, %607 : vector<2x128xf32>
    %609 = vector.extract_strided_slice %608 {offsets = [0, 0], sizes = [2, 32], strides = [1, 1]} : vector<2x128xf32> to vector<2x32xf32>
    %610 = arith.negf %609 : vector<2x32xf32>
    %611 = math.exp %610 : vector<2x32xf32>
    %cst_132 = arith.constant 1.000000e+00 : f32
    %612 = vector.broadcast %cst_132 : f32 to vector<2x32xf32>
    %613 = arith.addf %612, %611 : vector<2x32xf32>
    %614 = arith.divf %612, %613 : vector<2x32xf32>
    %615 = vector.extract_strided_slice %608 {offsets = [0, 32], sizes = [2, 32], strides = [1, 1]} : vector<2x128xf32> to vector<2x32xf32>
    %616 = arith.negf %615 : vector<2x32xf32>
    %617 = math.exp %616 : vector<2x32xf32>
    %cst_133 = arith.constant 1.000000e+00 : f32
    %618 = vector.broadcast %cst_133 : f32 to vector<2x32xf32>
    %619 = arith.addf %618, %617 : vector<2x32xf32>
    %620 = arith.divf %618, %619 : vector<2x32xf32>
    %621 = vector.extract_strided_slice %608 {offsets = [0, 64], sizes = [2, 32], strides = [1, 1]} : vector<2x128xf32> to vector<2x32xf32>
    %622 = math.tanh %621 : vector<2x32xf32>
    %623 = vector.extract_strided_slice %608 {offsets = [0, 96], sizes = [2, 32], strides = [1, 1]} : vector<2x128xf32> to vector<2x32xf32>
    %624 = arith.negf %623 : vector<2x32xf32>
    %625 = math.exp %624 : vector<2x32xf32>
    %cst_134 = arith.constant 1.000000e+00 : f32
    %626 = vector.broadcast %cst_134 : f32 to vector<2x32xf32>
    %627 = arith.addf %626, %625 : vector<2x32xf32>
    %628 = arith.divf %626, %627 : vector<2x32xf32>
    %629 = arith.mulf %620, %569 : vector<2x32xf32>
    %630 = arith.mulf %614, %622 : vector<2x32xf32>
    %631 = arith.addf %629, %630 : vector<2x32xf32>
    %632 = math.tanh %631 : vector<2x32xf32>
    %633 = arith.mulf %628, %632 : vector<2x32xf32>
    %cst_135 = arith.constant dense<0.000000e+00> : vector<2x128xf32>
    %634 = tpu.matmul %605, %512, %cst_135 {dimension_numbers = #tpu.dot_dimension_numbers<[1], [0], [0], [1], [0, 0, 1, 1], [], []>} : vector<2x32xf32>, vector<32x128xf32>, vector<2x128xf32> -> vector<2x128xf32>
    %635 = vector.broadcast %514 : vector<1x128xf32> to vector<2x128xf32>
    %636 = arith.addf %635, %634 : vector<2x128xf32>
    %cst_136 = arith.constant dense<0.000000e+00> : vector<2x128xf32>
    %637 = tpu.matmul %633, %513, %cst_136 {dimension_numbers = #tpu.dot_dimension_numbers<[1], [0], [0], [1], [0, 0, 1, 1], [], []>} : vector<2x32xf32>, vector<32x128xf32>, vector<2x128xf32> -> vector<2x128xf32>
    %638 = vector.broadcast %514 : vector<1x128xf32> to vector<2x128xf32>
    %639 = arith.addf %638, %637 : vector<2x128xf32>
    %640 = vector.extract_strided_slice %389 {offsets = [0, 0], sizes = [2, 128], strides = [1, 1]} : vector<2x256xf32> to vector<2x128xf32>
    %cst_137 = arith.constant dense<0.000000e+00> : vector<2x128xf32>
    %641 = tpu.matmul %605, %510, %cst_137 {dimension_numbers = #tpu.dot_dimension_numbers<[1], [0], [0], [1], [0, 0, 1, 1], [], []>} : vector<2x32xf32>, vector<32x128xf32>, vector<2x128xf32> -> vector<2x128xf32>
    %642 = arith.addf %640, %641 : vector<2x128xf32>
    %643 = vector.extract_strided_slice %642 {offsets = [0, 0], sizes = [2, 32], strides = [1, 1]} : vector<2x128xf32> to vector<2x32xf32>
    %644 = arith.negf %643 : vector<2x32xf32>
    %645 = math.exp %644 : vector<2x32xf32>
    %cst_138 = arith.constant 1.000000e+00 : f32
    %646 = vector.broadcast %cst_138 : f32 to vector<2x32xf32>
    %647 = arith.addf %646, %645 : vector<2x32xf32>
    %648 = arith.divf %646, %647 : vector<2x32xf32>
    %649 = vector.extract_strided_slice %642 {offsets = [0, 32], sizes = [2, 32], strides = [1, 1]} : vector<2x128xf32> to vector<2x32xf32>
    %650 = arith.negf %649 : vector<2x32xf32>
    %651 = math.exp %650 : vector<2x32xf32>
    %cst_139 = arith.constant 1.000000e+00 : f32
    %652 = vector.broadcast %cst_139 : f32 to vector<2x32xf32>
    %653 = arith.addf %652, %651 : vector<2x32xf32>
    %654 = arith.divf %652, %653 : vector<2x32xf32>
    %655 = vector.extract_strided_slice %642 {offsets = [0, 64], sizes = [2, 32], strides = [1, 1]} : vector<2x128xf32> to vector<2x32xf32>
    %656 = math.tanh %655 : vector<2x32xf32>
    %657 = vector.extract_strided_slice %642 {offsets = [0, 96], sizes = [2, 32], strides = [1, 1]} : vector<2x128xf32> to vector<2x32xf32>
    %658 = arith.negf %657 : vector<2x32xf32>
    %659 = math.exp %658 : vector<2x32xf32>
    %cst_140 = arith.constant 1.000000e+00 : f32
    %660 = vector.broadcast %cst_140 : f32 to vector<2x32xf32>
    %661 = arith.addf %660, %659 : vector<2x32xf32>
    %662 = arith.divf %660, %661 : vector<2x32xf32>
    %663 = arith.mulf %654, %603 : vector<2x32xf32>
    %664 = arith.mulf %648, %656 : vector<2x32xf32>
    %665 = arith.addf %663, %664 : vector<2x32xf32>
    %666 = math.tanh %665 : vector<2x32xf32>
    %667 = arith.mulf %662, %666 : vector<2x32xf32>
    %668 = vector.extract_strided_slice %387 {offsets = [0, 128], sizes = [2, 128], strides = [1, 1]} : vector<2x256xf32> to vector<2x128xf32>
    %cst_141 = arith.constant dense<0.000000e+00> : vector<2x128xf32>
    %669 = tpu.matmul %633, %511, %cst_141 {dimension_numbers = #tpu.dot_dimension_numbers<[1], [0], [0], [1], [0, 0, 1, 1], [], []>} : vector<2x32xf32>, vector<32x128xf32>, vector<2x128xf32> -> vector<2x128xf32>
    %670 = arith.addf %668, %669 : vector<2x128xf32>
    %671 = vector.extract_strided_slice %670 {offsets = [0, 0], sizes = [2, 32], strides = [1, 1]} : vector<2x128xf32> to vector<2x32xf32>
    %672 = arith.negf %671 : vector<2x32xf32>
    %673 = math.exp %672 : vector<2x32xf32>
    %cst_142 = arith.constant 1.000000e+00 : f32
    %674 = vector.broadcast %cst_142 : f32 to vector<2x32xf32>
    %675 = arith.addf %674, %673 : vector<2x32xf32>
    %676 = arith.divf %674, %675 : vector<2x32xf32>
    %677 = vector.extract_strided_slice %670 {offsets = [0, 32], sizes = [2, 32], strides = [1, 1]} : vector<2x128xf32> to vector<2x32xf32>
    %678 = arith.negf %677 : vector<2x32xf32>
    %679 = math.exp %678 : vector<2x32xf32>
    %cst_143 = arith.constant 1.000000e+00 : f32
    %680 = vector.broadcast %cst_143 : f32 to vector<2x32xf32>
    %681 = arith.addf %680, %679 : vector<2x32xf32>
    %682 = arith.divf %680, %681 : vector<2x32xf32>
    %683 = vector.extract_strided_slice %670 {offsets = [0, 64], sizes = [2, 32], strides = [1, 1]} : vector<2x128xf32> to vector<2x32xf32>
    %684 = math.tanh %683 : vector<2x32xf32>
    %685 = vector.extract_strided_slice %670 {offsets = [0, 96], sizes = [2, 32], strides = [1, 1]} : vector<2x128xf32> to vector<2x32xf32>
    %686 = arith.negf %685 : vector<2x32xf32>
    %687 = math.exp %686 : vector<2x32xf32>
    %cst_144 = arith.constant 1.000000e+00 : f32
    %688 = vector.broadcast %cst_144 : f32 to vector<2x32xf32>
    %689 = arith.addf %688, %687 : vector<2x32xf32>
    %690 = arith.divf %688, %689 : vector<2x32xf32>
    %691 = arith.mulf %682, %631 : vector<2x32xf32>
    %692 = arith.mulf %676, %684 : vector<2x32xf32>
    %693 = arith.addf %691, %692 : vector<2x32xf32>
    %694 = math.tanh %693 : vector<2x32xf32>
    %695 = arith.mulf %690, %694 : vector<2x32xf32>
    %cst_145 = arith.constant dense<0.000000e+00> : vector<2x128xf32>
    %696 = tpu.matmul %667, %512, %cst_145 {dimension_numbers = #tpu.dot_dimension_numbers<[1], [0], [0], [1], [0, 0, 1, 1], [], []>} : vector<2x32xf32>, vector<32x128xf32>, vector<2x128xf32> -> vector<2x128xf32>
    %697 = vector.broadcast %514 : vector<1x128xf32> to vector<2x128xf32>
    %698 = arith.addf %697, %696 : vector<2x128xf32>
    %cst_146 = arith.constant dense<0.000000e+00> : vector<2x128xf32>
    %699 = tpu.matmul %695, %513, %cst_146 {dimension_numbers = #tpu.dot_dimension_numbers<[1], [0], [0], [1], [0, 0, 1, 1], [], []>} : vector<2x32xf32>, vector<32x128xf32>, vector<2x128xf32> -> vector<2x128xf32>
    %700 = vector.broadcast %514 : vector<1x128xf32> to vector<2x128xf32>
    %701 = arith.addf %700, %699 : vector<2x128xf32>
    %702 = vector.extract_strided_slice %329 {offsets = [0, 0], sizes = [2, 128], strides = [1, 1]} : vector<2x256xf32> to vector<2x128xf32>
    %cst_147 = arith.constant dense<0.000000e+00> : vector<2x128xf32>
    %703 = tpu.matmul %667, %510, %cst_147 {dimension_numbers = #tpu.dot_dimension_numbers<[1], [0], [0], [1], [0, 0, 1, 1], [], []>} : vector<2x32xf32>, vector<32x128xf32>, vector<2x128xf32> -> vector<2x128xf32>
    %704 = arith.addf %702, %703 : vector<2x128xf32>
    %705 = vector.extract_strided_slice %704 {offsets = [0, 0], sizes = [2, 32], strides = [1, 1]} : vector<2x128xf32> to vector<2x32xf32>
    %706 = arith.negf %705 : vector<2x32xf32>
    %707 = math.exp %706 : vector<2x32xf32>
    %cst_148 = arith.constant 1.000000e+00 : f32
    %708 = vector.broadcast %cst_148 : f32 to vector<2x32xf32>
    %709 = arith.addf %708, %707 : vector<2x32xf32>
    %710 = arith.divf %708, %709 : vector<2x32xf32>
    %711 = vector.extract_strided_slice %704 {offsets = [0, 32], sizes = [2, 32], strides = [1, 1]} : vector<2x128xf32> to vector<2x32xf32>
    %712 = arith.negf %711 : vector<2x32xf32>
    %713 = math.exp %712 : vector<2x32xf32>
    %cst_149 = arith.constant 1.000000e+00 : f32
    %714 = vector.broadcast %cst_149 : f32 to vector<2x32xf32>
    %715 = arith.addf %714, %713 : vector<2x32xf32>
    %716 = arith.divf %714, %715 : vector<2x32xf32>
    %717 = vector.extract_strided_slice %704 {offsets = [0, 64], sizes = [2, 32], strides = [1, 1]} : vector<2x128xf32> to vector<2x32xf32>
    %718 = math.tanh %717 : vector<2x32xf32>
    %719 = vector.extract_strided_slice %704 {offsets = [0, 96], sizes = [2, 32], strides = [1, 1]} : vector<2x128xf32> to vector<2x32xf32>
    %720 = arith.negf %719 : vector<2x32xf32>
    %721 = math.exp %720 : vector<2x32xf32>
    %cst_150 = arith.constant 1.000000e+00 : f32
    %722 = vector.broadcast %cst_150 : f32 to vector<2x32xf32>
    %723 = arith.addf %722, %721 : vector<2x32xf32>
    %724 = arith.divf %722, %723 : vector<2x32xf32>
    %725 = arith.mulf %716, %665 : vector<2x32xf32>
    %726 = arith.mulf %710, %718 : vector<2x32xf32>
    %727 = arith.addf %725, %726 : vector<2x32xf32>
    %728 = math.tanh %727 : vector<2x32xf32>
    %729 = arith.mulf %724, %728 : vector<2x32xf32>
    %730 = vector.extract_strided_slice %327 {offsets = [0, 128], sizes = [2, 128], strides = [1, 1]} : vector<2x256xf32> to vector<2x128xf32>
    %cst_151 = arith.constant dense<0.000000e+00> : vector<2x128xf32>
    %731 = tpu.matmul %695, %511, %cst_151 {dimension_numbers = #tpu.dot_dimension_numbers<[1], [0], [0], [1], [0, 0, 1, 1], [], []>} : vector<2x32xf32>, vector<32x128xf32>, vector<2x128xf32> -> vector<2x128xf32>
    %732 = arith.addf %730, %731 : vector<2x128xf32>
    %733 = vector.extract_strided_slice %732 {offsets = [0, 0], sizes = [2, 32], strides = [1, 1]} : vector<2x128xf32> to vector<2x32xf32>
    %734 = arith.negf %733 : vector<2x32xf32>
    %735 = math.exp %734 : vector<2x32xf32>
    %cst_152 = arith.constant 1.000000e+00 : f32
    %736 = vector.broadcast %cst_152 : f32 to vector<2x32xf32>
    %737 = arith.addf %736, %735 : vector<2x32xf32>
    %738 = arith.divf %736, %737 : vector<2x32xf32>
    %739 = vector.extract_strided_slice %732 {offsets = [0, 32], sizes = [2, 32], strides = [1, 1]} : vector<2x128xf32> to vector<2x32xf32>
    %740 = arith.negf %739 : vector<2x32xf32>
    %741 = math.exp %740 : vector<2x32xf32>
    %cst_153 = arith.constant 1.000000e+00 : f32
    %742 = vector.broadcast %cst_153 : f32 to vector<2x32xf32>
    %743 = arith.addf %742, %741 : vector<2x32xf32>
    %744 = arith.divf %742, %743 : vector<2x32xf32>
    %745 = vector.extract_strided_slice %732 {offsets = [0, 64], sizes = [2, 32], strides = [1, 1]} : vector<2x128xf32> to vector<2x32xf32>
    %746 = math.tanh %745 : vector<2x32xf32>
    %747 = vector.extract_strided_slice %732 {offsets = [0, 96], sizes = [2, 32], strides = [1, 1]} : vector<2x128xf32> to vector<2x32xf32>
    %748 = arith.negf %747 : vector<2x32xf32>
    %749 = math.exp %748 : vector<2x32xf32>
    %cst_154 = arith.constant 1.000000e+00 : f32
    %750 = vector.broadcast %cst_154 : f32 to vector<2x32xf32>
    %751 = arith.addf %750, %749 : vector<2x32xf32>
    %752 = arith.divf %750, %751 : vector<2x32xf32>
    %753 = arith.mulf %744, %693 : vector<2x32xf32>
    %754 = arith.mulf %738, %746 : vector<2x32xf32>
    %755 = arith.addf %753, %754 : vector<2x32xf32>
    %756 = math.tanh %755 : vector<2x32xf32>
    %757 = arith.mulf %752, %756 : vector<2x32xf32>
    %cst_155 = arith.constant dense<0.000000e+00> : vector<2x128xf32>
    %758 = tpu.matmul %729, %512, %cst_155 {dimension_numbers = #tpu.dot_dimension_numbers<[1], [0], [0], [1], [0, 0, 1, 1], [], []>} : vector<2x32xf32>, vector<32x128xf32>, vector<2x128xf32> -> vector<2x128xf32>
    %759 = vector.broadcast %514 : vector<1x128xf32> to vector<2x128xf32>
    %760 = arith.addf %759, %758 : vector<2x128xf32>
    %cst_156 = arith.constant dense<0.000000e+00> : vector<2x128xf32>
    %761 = tpu.matmul %757, %513, %cst_156 {dimension_numbers = #tpu.dot_dimension_numbers<[1], [0], [0], [1], [0, 0, 1, 1], [], []>} : vector<2x32xf32>, vector<32x128xf32>, vector<2x128xf32> -> vector<2x128xf32>
    %762 = vector.broadcast %514 : vector<1x128xf32> to vector<2x128xf32>
    %763 = arith.addf %762, %761 : vector<2x128xf32>
    %764 = vector.extract_strided_slice %327 {offsets = [0, 0], sizes = [2, 128], strides = [1, 1]} : vector<2x256xf32> to vector<2x128xf32>
    %cst_157 = arith.constant dense<0.000000e+00> : vector<2x128xf32>
    %765 = tpu.matmul %729, %510, %cst_157 {dimension_numbers = #tpu.dot_dimension_numbers<[1], [0], [0], [1], [0, 0, 1, 1], [], []>} : vector<2x32xf32>, vector<32x128xf32>, vector<2x128xf32> -> vector<2x128xf32>
    %766 = arith.addf %764, %765 : vector<2x128xf32>
    %767 = vector.extract_strided_slice %766 {offsets = [0, 0], sizes = [2, 32], strides = [1, 1]} : vector<2x128xf32> to vector<2x32xf32>
    %768 = arith.negf %767 : vector<2x32xf32>
    %769 = math.exp %768 : vector<2x32xf32>
    %cst_158 = arith.constant 1.000000e+00 : f32
    %770 = vector.broadcast %cst_158 : f32 to vector<2x32xf32>
    %771 = arith.addf %770, %769 : vector<2x32xf32>
    %772 = arith.divf %770, %771 : vector<2x32xf32>
    %773 = vector.extract_strided_slice %766 {offsets = [0, 32], sizes = [2, 32], strides = [1, 1]} : vector<2x128xf32> to vector<2x32xf32>
    %774 = arith.negf %773 : vector<2x32xf32>
    %775 = math.exp %774 : vector<2x32xf32>
    %cst_159 = arith.constant 1.000000e+00 : f32
    %776 = vector.broadcast %cst_159 : f32 to vector<2x32xf32>
    %777 = arith.addf %776, %775 : vector<2x32xf32>
    %778 = arith.divf %776, %777 : vector<2x32xf32>
    %779 = vector.extract_strided_slice %766 {offsets = [0, 64], sizes = [2, 32], strides = [1, 1]} : vector<2x128xf32> to vector<2x32xf32>
    %780 = math.tanh %779 : vector<2x32xf32>
    %781 = vector.extract_strided_slice %766 {offsets = [0, 96], sizes = [2, 32], strides = [1, 1]} : vector<2x128xf32> to vector<2x32xf32>
    %782 = arith.negf %781 : vector<2x32xf32>
    %783 = math.exp %782 : vector<2x32xf32>
    %cst_160 = arith.constant 1.000000e+00 : f32
    %784 = vector.broadcast %cst_160 : f32 to vector<2x32xf32>
    %785 = arith.addf %784, %783 : vector<2x32xf32>
    %786 = arith.divf %784, %785 : vector<2x32xf32>
    %787 = arith.mulf %778, %727 : vector<2x32xf32>
    %788 = arith.mulf %772, %780 : vector<2x32xf32>
    %789 = arith.addf %787, %788 : vector<2x32xf32>
    %790 = math.tanh %789 : vector<2x32xf32>
    %791 = arith.mulf %786, %790 : vector<2x32xf32>
    %792 = vector.extract_strided_slice %329 {offsets = [0, 128], sizes = [2, 128], strides = [1, 1]} : vector<2x256xf32> to vector<2x128xf32>
    %cst_161 = arith.constant dense<0.000000e+00> : vector<2x128xf32>
    %793 = tpu.matmul %757, %511, %cst_161 {dimension_numbers = #tpu.dot_dimension_numbers<[1], [0], [0], [1], [0, 0, 1, 1], [], []>} : vector<2x32xf32>, vector<32x128xf32>, vector<2x128xf32> -> vector<2x128xf32>
    %794 = arith.addf %792, %793 : vector<2x128xf32>
    %795 = vector.extract_strided_slice %794 {offsets = [0, 0], sizes = [2, 32], strides = [1, 1]} : vector<2x128xf32> to vector<2x32xf32>
    %796 = arith.negf %795 : vector<2x32xf32>
    %797 = math.exp %796 : vector<2x32xf32>
    %cst_162 = arith.constant 1.000000e+00 : f32
    %798 = vector.broadcast %cst_162 : f32 to vector<2x32xf32>
    %799 = arith.addf %798, %797 : vector<2x32xf32>
    %800 = arith.divf %798, %799 : vector<2x32xf32>
    %801 = vector.extract_strided_slice %794 {offsets = [0, 32], sizes = [2, 32], strides = [1, 1]} : vector<2x128xf32> to vector<2x32xf32>
    %802 = arith.negf %801 : vector<2x32xf32>
    %803 = math.exp %802 : vector<2x32xf32>
    %cst_163 = arith.constant 1.000000e+00 : f32
    %804 = vector.broadcast %cst_163 : f32 to vector<2x32xf32>
    %805 = arith.addf %804, %803 : vector<2x32xf32>
    %806 = arith.divf %804, %805 : vector<2x32xf32>
    %807 = vector.extract_strided_slice %794 {offsets = [0, 64], sizes = [2, 32], strides = [1, 1]} : vector<2x128xf32> to vector<2x32xf32>
    %808 = math.tanh %807 : vector<2x32xf32>
    %809 = vector.extract_strided_slice %794 {offsets = [0, 96], sizes = [2, 32], strides = [1, 1]} : vector<2x128xf32> to vector<2x32xf32>
    %810 = arith.negf %809 : vector<2x32xf32>
    %811 = math.exp %810 : vector<2x32xf32>
    %cst_164 = arith.constant 1.000000e+00 : f32
    %812 = vector.broadcast %cst_164 : f32 to vector<2x32xf32>
    %813 = arith.addf %812, %811 : vector<2x32xf32>
    %814 = arith.divf %812, %813 : vector<2x32xf32>
    %815 = arith.mulf %806, %755 : vector<2x32xf32>
    %816 = arith.mulf %800, %808 : vector<2x32xf32>
    %817 = arith.addf %815, %816 : vector<2x32xf32>
    %818 = math.tanh %817 : vector<2x32xf32>
    %819 = arith.mulf %814, %818 : vector<2x32xf32>
    %cst_165 = arith.constant dense<0.000000e+00> : vector<2x128xf32>
    %820 = tpu.matmul %791, %512, %cst_165 {dimension_numbers = #tpu.dot_dimension_numbers<[1], [0], [0], [1], [0, 0, 1, 1], [], []>} : vector<2x32xf32>, vector<32x128xf32>, vector<2x128xf32> -> vector<2x128xf32>
    %821 = arith.addf %763, %820 : vector<2x128xf32>
    %cst_166 = arith.constant dense<0.000000e+00> : vector<2x128xf32>
    %822 = tpu.matmul %819, %513, %cst_166 {dimension_numbers = #tpu.dot_dimension_numbers<[1], [0], [0], [1], [0, 0, 1, 1], [], []>} : vector<2x32xf32>, vector<32x128xf32>, vector<2x128xf32> -> vector<2x128xf32>
    %823 = arith.addf %760, %822 : vector<2x128xf32>
    %824 = vector.extract_strided_slice %387 {offsets = [0, 0], sizes = [2, 128], strides = [1, 1]} : vector<2x256xf32> to vector<2x128xf32>
    %cst_167 = arith.constant dense<0.000000e+00> : vector<2x128xf32>
    %825 = tpu.matmul %791, %510, %cst_167 {dimension_numbers = #tpu.dot_dimension_numbers<[1], [0], [0], [1], [0, 0, 1, 1], [], []>} : vector<2x32xf32>, vector<32x128xf32>, vector<2x128xf32> -> vector<2x128xf32>
    %826 = arith.addf %824, %825 : vector<2x128xf32>
    %827 = vector.extract_strided_slice %826 {offsets = [0, 0], sizes = [2, 32], strides = [1, 1]} : vector<2x128xf32> to vector<2x32xf32>
    %828 = arith.negf %827 : vector<2x32xf32>
    %829 = math.exp %828 : vector<2x32xf32>
    %cst_168 = arith.constant 1.000000e+00 : f32
    %830 = vector.broadcast %cst_168 : f32 to vector<2x32xf32>
    %831 = arith.addf %830, %829 : vector<2x32xf32>
    %832 = arith.divf %830, %831 : vector<2x32xf32>
    %833 = vector.extract_strided_slice %826 {offsets = [0, 32], sizes = [2, 32], strides = [1, 1]} : vector<2x128xf32> to vector<2x32xf32>
    %834 = arith.negf %833 : vector<2x32xf32>
    %835 = math.exp %834 : vector<2x32xf32>
    %cst_169 = arith.constant 1.000000e+00 : f32
    %836 = vector.broadcast %cst_169 : f32 to vector<2x32xf32>
    %837 = arith.addf %836, %835 : vector<2x32xf32>
    %838 = arith.divf %836, %837 : vector<2x32xf32>
    %839 = vector.extract_strided_slice %826 {offsets = [0, 64], sizes = [2, 32], strides = [1, 1]} : vector<2x128xf32> to vector<2x32xf32>
    %840 = math.tanh %839 : vector<2x32xf32>
    %841 = vector.extract_strided_slice %826 {offsets = [0, 96], sizes = [2, 32], strides = [1, 1]} : vector<2x128xf32> to vector<2x32xf32>
    %842 = arith.negf %841 : vector<2x32xf32>
    %843 = math.exp %842 : vector<2x32xf32>
    %cst_170 = arith.constant 1.000000e+00 : f32
    %844 = vector.broadcast %cst_170 : f32 to vector<2x32xf32>
    %845 = arith.addf %844, %843 : vector<2x32xf32>
    %846 = arith.divf %844, %845 : vector<2x32xf32>
    %847 = arith.mulf %838, %789 : vector<2x32xf32>
    %848 = arith.mulf %832, %840 : vector<2x32xf32>
    %849 = arith.addf %847, %848 : vector<2x32xf32>
    %850 = math.tanh %849 : vector<2x32xf32>
    %851 = arith.mulf %846, %850 : vector<2x32xf32>
    %852 = vector.extract_strided_slice %389 {offsets = [0, 128], sizes = [2, 128], strides = [1, 1]} : vector<2x256xf32> to vector<2x128xf32>
    %cst_171 = arith.constant dense<0.000000e+00> : vector<2x128xf32>
    %853 = tpu.matmul %819, %511, %cst_171 {dimension_numbers = #tpu.dot_dimension_numbers<[1], [0], [0], [1], [0, 0, 1, 1], [], []>} : vector<2x32xf32>, vector<32x128xf32>, vector<2x128xf32> -> vector<2x128xf32>
    %854 = arith.addf %852, %853 : vector<2x128xf32>
    %855 = vector.extract_strided_slice %854 {offsets = [0, 0], sizes = [2, 32], strides = [1, 1]} : vector<2x128xf32> to vector<2x32xf32>
    %856 = arith.negf %855 : vector<2x32xf32>
    %857 = math.exp %856 : vector<2x32xf32>
    %cst_172 = arith.constant 1.000000e+00 : f32
    %858 = vector.broadcast %cst_172 : f32 to vector<2x32xf32>
    %859 = arith.addf %858, %857 : vector<2x32xf32>
    %860 = arith.divf %858, %859 : vector<2x32xf32>
    %861 = vector.extract_strided_slice %854 {offsets = [0, 32], sizes = [2, 32], strides = [1, 1]} : vector<2x128xf32> to vector<2x32xf32>
    %862 = arith.negf %861 : vector<2x32xf32>
    %863 = math.exp %862 : vector<2x32xf32>
    %cst_173 = arith.constant 1.000000e+00 : f32
    %864 = vector.broadcast %cst_173 : f32 to vector<2x32xf32>
    %865 = arith.addf %864, %863 : vector<2x32xf32>
    %866 = arith.divf %864, %865 : vector<2x32xf32>
    %867 = vector.extract_strided_slice %854 {offsets = [0, 64], sizes = [2, 32], strides = [1, 1]} : vector<2x128xf32> to vector<2x32xf32>
    %868 = math.tanh %867 : vector<2x32xf32>
    %869 = vector.extract_strided_slice %854 {offsets = [0, 96], sizes = [2, 32], strides = [1, 1]} : vector<2x128xf32> to vector<2x32xf32>
    %870 = arith.negf %869 : vector<2x32xf32>
    %871 = math.exp %870 : vector<2x32xf32>
    %cst_174 = arith.constant 1.000000e+00 : f32
    %872 = vector.broadcast %cst_174 : f32 to vector<2x32xf32>
    %873 = arith.addf %872, %871 : vector<2x32xf32>
    %874 = arith.divf %872, %873 : vector<2x32xf32>
    %875 = arith.mulf %866, %817 : vector<2x32xf32>
    %876 = arith.mulf %860, %868 : vector<2x32xf32>
    %877 = arith.addf %875, %876 : vector<2x32xf32>
    %878 = math.tanh %877 : vector<2x32xf32>
    %879 = arith.mulf %874, %878 : vector<2x32xf32>
    %cst_175 = arith.constant dense<0.000000e+00> : vector<2x128xf32>
    %880 = tpu.matmul %851, %512, %cst_175 {dimension_numbers = #tpu.dot_dimension_numbers<[1], [0], [0], [1], [0, 0, 1, 1], [], []>} : vector<2x32xf32>, vector<32x128xf32>, vector<2x128xf32> -> vector<2x128xf32>
    %881 = arith.addf %701, %880 : vector<2x128xf32>
    %cst_176 = arith.constant dense<0.000000e+00> : vector<2x128xf32>
    %882 = tpu.matmul %879, %513, %cst_176 {dimension_numbers = #tpu.dot_dimension_numbers<[1], [0], [0], [1], [0, 0, 1, 1], [], []>} : vector<2x32xf32>, vector<32x128xf32>, vector<2x128xf32> -> vector<2x128xf32>
    %883 = arith.addf %698, %882 : vector<2x128xf32>
    %884 = vector.extract_strided_slice %447 {offsets = [0, 0], sizes = [2, 128], strides = [1, 1]} : vector<2x256xf32> to vector<2x128xf32>
    %cst_177 = arith.constant dense<0.000000e+00> : vector<2x128xf32>
    %885 = tpu.matmul %851, %510, %cst_177 {dimension_numbers = #tpu.dot_dimension_numbers<[1], [0], [0], [1], [0, 0, 1, 1], [], []>} : vector<2x32xf32>, vector<32x128xf32>, vector<2x128xf32> -> vector<2x128xf32>
    %886 = arith.addf %884, %885 : vector<2x128xf32>
    %887 = vector.extract_strided_slice %886 {offsets = [0, 0], sizes = [2, 32], strides = [1, 1]} : vector<2x128xf32> to vector<2x32xf32>
    %888 = arith.negf %887 : vector<2x32xf32>
    %889 = math.exp %888 : vector<2x32xf32>
    %cst_178 = arith.constant 1.000000e+00 : f32
    %890 = vector.broadcast %cst_178 : f32 to vector<2x32xf32>
    %891 = arith.addf %890, %889 : vector<2x32xf32>
    %892 = arith.divf %890, %891 : vector<2x32xf32>
    %893 = vector.extract_strided_slice %886 {offsets = [0, 32], sizes = [2, 32], strides = [1, 1]} : vector<2x128xf32> to vector<2x32xf32>
    %894 = arith.negf %893 : vector<2x32xf32>
    %895 = math.exp %894 : vector<2x32xf32>
    %cst_179 = arith.constant 1.000000e+00 : f32
    %896 = vector.broadcast %cst_179 : f32 to vector<2x32xf32>
    %897 = arith.addf %896, %895 : vector<2x32xf32>
    %898 = arith.divf %896, %897 : vector<2x32xf32>
    %899 = vector.extract_strided_slice %886 {offsets = [0, 64], sizes = [2, 32], strides = [1, 1]} : vector<2x128xf32> to vector<2x32xf32>
    %900 = math.tanh %899 : vector<2x32xf32>
    %901 = vector.extract_strided_slice %886 {offsets = [0, 96], sizes = [2, 32], strides = [1, 1]} : vector<2x128xf32> to vector<2x32xf32>
    %902 = arith.negf %901 : vector<2x32xf32>
    %903 = math.exp %902 : vector<2x32xf32>
    %cst_180 = arith.constant 1.000000e+00 : f32
    %904 = vector.broadcast %cst_180 : f32 to vector<2x32xf32>
    %905 = arith.addf %904, %903 : vector<2x32xf32>
    %906 = arith.divf %904, %905 : vector<2x32xf32>
    %907 = arith.mulf %898, %849 : vector<2x32xf32>
    %908 = arith.mulf %892, %900 : vector<2x32xf32>
    %909 = arith.addf %907, %908 : vector<2x32xf32>
    %910 = math.tanh %909 : vector<2x32xf32>
    %911 = arith.mulf %906, %910 : vector<2x32xf32>
    %912 = vector.extract_strided_slice %449 {offsets = [0, 128], sizes = [2, 128], strides = [1, 1]} : vector<2x256xf32> to vector<2x128xf32>
    %cst_181 = arith.constant dense<0.000000e+00> : vector<2x128xf32>
    %913 = tpu.matmul %879, %511, %cst_181 {dimension_numbers = #tpu.dot_dimension_numbers<[1], [0], [0], [1], [0, 0, 1, 1], [], []>} : vector<2x32xf32>, vector<32x128xf32>, vector<2x128xf32> -> vector<2x128xf32>
    %914 = arith.addf %912, %913 : vector<2x128xf32>
    %915 = vector.extract_strided_slice %914 {offsets = [0, 0], sizes = [2, 32], strides = [1, 1]} : vector<2x128xf32> to vector<2x32xf32>
    %916 = arith.negf %915 : vector<2x32xf32>
    %917 = math.exp %916 : vector<2x32xf32>
    %cst_182 = arith.constant 1.000000e+00 : f32
    %918 = vector.broadcast %cst_182 : f32 to vector<2x32xf32>
    %919 = arith.addf %918, %917 : vector<2x32xf32>
    %920 = arith.divf %918, %919 : vector<2x32xf32>
    %921 = vector.extract_strided_slice %914 {offsets = [0, 32], sizes = [2, 32], strides = [1, 1]} : vector<2x128xf32> to vector<2x32xf32>
    %922 = arith.negf %921 : vector<2x32xf32>
    %923 = math.exp %922 : vector<2x32xf32>
    %cst_183 = arith.constant 1.000000e+00 : f32
    %924 = vector.broadcast %cst_183 : f32 to vector<2x32xf32>
    %925 = arith.addf %924, %923 : vector<2x32xf32>
    %926 = arith.divf %924, %925 : vector<2x32xf32>
    %927 = vector.extract_strided_slice %914 {offsets = [0, 64], sizes = [2, 32], strides = [1, 1]} : vector<2x128xf32> to vector<2x32xf32>
    %928 = math.tanh %927 : vector<2x32xf32>
    %929 = vector.extract_strided_slice %914 {offsets = [0, 96], sizes = [2, 32], strides = [1, 1]} : vector<2x128xf32> to vector<2x32xf32>
    %930 = arith.negf %929 : vector<2x32xf32>
    %931 = math.exp %930 : vector<2x32xf32>
    %cst_184 = arith.constant 1.000000e+00 : f32
    %932 = vector.broadcast %cst_184 : f32 to vector<2x32xf32>
    %933 = arith.addf %932, %931 : vector<2x32xf32>
    %934 = arith.divf %932, %933 : vector<2x32xf32>
    %935 = arith.mulf %926, %877 : vector<2x32xf32>
    %936 = arith.mulf %920, %928 : vector<2x32xf32>
    %937 = arith.addf %935, %936 : vector<2x32xf32>
    %938 = math.tanh %937 : vector<2x32xf32>
    %939 = arith.mulf %934, %938 : vector<2x32xf32>
    %cst_185 = arith.constant dense<0.000000e+00> : vector<2x128xf32>
    %940 = tpu.matmul %911, %512, %cst_185 {dimension_numbers = #tpu.dot_dimension_numbers<[1], [0], [0], [1], [0, 0, 1, 1], [], []>} : vector<2x32xf32>, vector<32x128xf32>, vector<2x128xf32> -> vector<2x128xf32>
    %941 = arith.addf %639, %940 : vector<2x128xf32>
    %cst_186 = arith.constant dense<0.000000e+00> : vector<2x128xf32>
    %942 = tpu.matmul %939, %513, %cst_186 {dimension_numbers = #tpu.dot_dimension_numbers<[1], [0], [0], [1], [0, 0, 1, 1], [], []>} : vector<2x32xf32>, vector<32x128xf32>, vector<2x128xf32> -> vector<2x128xf32>
    %943 = arith.addf %636, %942 : vector<2x128xf32>
    %944 = vector.extract_strided_slice %507 {offsets = [0, 0], sizes = [2, 128], strides = [1, 1]} : vector<2x256xf32> to vector<2x128xf32>
    %cst_187 = arith.constant dense<0.000000e+00> : vector<2x128xf32>
    %945 = tpu.matmul %911, %510, %cst_187 {dimension_numbers = #tpu.dot_dimension_numbers<[1], [0], [0], [1], [0, 0, 1, 1], [], []>} : vector<2x32xf32>, vector<32x128xf32>, vector<2x128xf32> -> vector<2x128xf32>
    %946 = arith.addf %944, %945 : vector<2x128xf32>
    %947 = vector.extract_strided_slice %946 {offsets = [0, 0], sizes = [2, 32], strides = [1, 1]} : vector<2x128xf32> to vector<2x32xf32>
    %948 = arith.negf %947 : vector<2x32xf32>
    %949 = math.exp %948 : vector<2x32xf32>
    %cst_188 = arith.constant 1.000000e+00 : f32
    %950 = vector.broadcast %cst_188 : f32 to vector<2x32xf32>
    %951 = arith.addf %950, %949 : vector<2x32xf32>
    %952 = arith.divf %950, %951 : vector<2x32xf32>
    %953 = vector.extract_strided_slice %946 {offsets = [0, 32], sizes = [2, 32], strides = [1, 1]} : vector<2x128xf32> to vector<2x32xf32>
    %954 = arith.negf %953 : vector<2x32xf32>
    %955 = math.exp %954 : vector<2x32xf32>
    %cst_189 = arith.constant 1.000000e+00 : f32
    %956 = vector.broadcast %cst_189 : f32 to vector<2x32xf32>
    %957 = arith.addf %956, %955 : vector<2x32xf32>
    %958 = arith.divf %956, %957 : vector<2x32xf32>
    %959 = vector.extract_strided_slice %946 {offsets = [0, 64], sizes = [2, 32], strides = [1, 1]} : vector<2x128xf32> to vector<2x32xf32>
    %960 = math.tanh %959 : vector<2x32xf32>
    %961 = vector.extract_strided_slice %946 {offsets = [0, 96], sizes = [2, 32], strides = [1, 1]} : vector<2x128xf32> to vector<2x32xf32>
    %962 = arith.negf %961 : vector<2x32xf32>
    %963 = math.exp %962 : vector<2x32xf32>
    %cst_190 = arith.constant 1.000000e+00 : f32
    %964 = vector.broadcast %cst_190 : f32 to vector<2x32xf32>
    %965 = arith.addf %964, %963 : vector<2x32xf32>
    %966 = arith.divf %964, %965 : vector<2x32xf32>
    %967 = arith.mulf %958, %909 : vector<2x32xf32>
    %968 = arith.mulf %952, %960 : vector<2x32xf32>
    %969 = arith.addf %967, %968 : vector<2x32xf32>
    %970 = math.tanh %969 : vector<2x32xf32>
    %971 = arith.mulf %966, %970 : vector<2x32xf32>
    %972 = vector.extract_strided_slice %509 {offsets = [0, 128], sizes = [2, 128], strides = [1, 1]} : vector<2x256xf32> to vector<2x128xf32>
    %cst_191 = arith.constant dense<0.000000e+00> : vector<2x128xf32>
    %973 = tpu.matmul %939, %511, %cst_191 {dimension_numbers = #tpu.dot_dimension_numbers<[1], [0], [0], [1], [0, 0, 1, 1], [], []>} : vector<2x32xf32>, vector<32x128xf32>, vector<2x128xf32> -> vector<2x128xf32>
    %974 = arith.addf %972, %973 : vector<2x128xf32>
    %975 = vector.extract_strided_slice %974 {offsets = [0, 0], sizes = [2, 32], strides = [1, 1]} : vector<2x128xf32> to vector<2x32xf32>
    %976 = arith.negf %975 : vector<2x32xf32>
    %977 = math.exp %976 : vector<2x32xf32>
    %cst_192 = arith.constant 1.000000e+00 : f32
    %978 = vector.broadcast %cst_192 : f32 to vector<2x32xf32>
    %979 = arith.addf %978, %977 : vector<2x32xf32>
    %980 = arith.divf %978, %979 : vector<2x32xf32>
    %981 = vector.extract_strided_slice %974 {offsets = [0, 32], sizes = [2, 32], strides = [1, 1]} : vector<2x128xf32> to vector<2x32xf32>
    %982 = arith.negf %981 : vector<2x32xf32>
    %983 = math.exp %982 : vector<2x32xf32>
    %cst_193 = arith.constant 1.000000e+00 : f32
    %984 = vector.broadcast %cst_193 : f32 to vector<2x32xf32>
    %985 = arith.addf %984, %983 : vector<2x32xf32>
    %986 = arith.divf %984, %985 : vector<2x32xf32>
    %987 = vector.extract_strided_slice %974 {offsets = [0, 64], sizes = [2, 32], strides = [1, 1]} : vector<2x128xf32> to vector<2x32xf32>
    %988 = math.tanh %987 : vector<2x32xf32>
    %989 = vector.extract_strided_slice %974 {offsets = [0, 96], sizes = [2, 32], strides = [1, 1]} : vector<2x128xf32> to vector<2x32xf32>
    %990 = arith.negf %989 : vector<2x32xf32>
    %991 = math.exp %990 : vector<2x32xf32>
    %cst_194 = arith.constant 1.000000e+00 : f32
    %992 = vector.broadcast %cst_194 : f32 to vector<2x32xf32>
    %993 = arith.addf %992, %991 : vector<2x32xf32>
    %994 = arith.divf %992, %993 : vector<2x32xf32>
    %995 = arith.mulf %986, %937 : vector<2x32xf32>
    %996 = arith.mulf %980, %988 : vector<2x32xf32>
    %997 = arith.addf %995, %996 : vector<2x32xf32>
    %998 = math.tanh %997 : vector<2x32xf32>
    %999 = arith.mulf %994, %998 : vector<2x32xf32>
    %cst_195 = arith.constant dense<0.000000e+00> : vector<2x128xf32>
    %1000 = tpu.matmul %971, %512, %cst_195 {dimension_numbers = #tpu.dot_dimension_numbers<[1], [0], [0], [1], [0, 0, 1, 1], [], []>} : vector<2x32xf32>, vector<32x128xf32>, vector<2x128xf32> -> vector<2x128xf32>
    %1001 = arith.addf %577, %1000 : vector<2x128xf32>
    %cst_196 = arith.constant dense<0.000000e+00> : vector<2x128xf32>
    %1002 = tpu.matmul %999, %513, %cst_196 {dimension_numbers = #tpu.dot_dimension_numbers<[1], [0], [0], [1], [0, 0, 1, 1], [], []>} : vector<2x32xf32>, vector<32x128xf32>, vector<2x128xf32> -> vector<2x128xf32>
    %1003 = arith.addf %574, %1002 : vector<2x128xf32>
    %cst_197 = arith.constant 0.000000e+00 : f32
    %1004 = vector.broadcast %cst_197 : f32 to vector<2x32xf32>
    %cst_198 = arith.constant 0.000000e+00 : f32
    %1005 = vector.broadcast %cst_198 : f32 to vector<2x32xf32>
    %c0_199 = arith.constant 0 : index
    %c0_200 = arith.constant 0 : index
    %1006 = vector.load %arg10[%c0_199, %c0_200] : memref<32x128xf32, #tpu.memory_space<vmem>>, vector<32x128xf32>
    %cst_201 = arith.constant dense<0.000000e+00> : vector<2x128xf32>
    %1007 = tpu.matmul %1004, %1006, %cst_201 {dimension_numbers = #tpu.dot_dimension_numbers<[1], [0], [0], [1], [0, 0, 1, 1], [], []>} : vector<2x32xf32>, vector<32x128xf32>, vector<2x128xf32> -> vector<2x128xf32>
    %1008 = arith.addf %1003, %1007 : vector<2x128xf32>
    %1009 = vector.extract_strided_slice %1008 {offsets = [0, 0], sizes = [2, 32], strides = [1, 1]} : vector<2x128xf32> to vector<2x32xf32>
    %1010 = arith.negf %1009 : vector<2x32xf32>
    %1011 = math.exp %1010 : vector<2x32xf32>
    %cst_202 = arith.constant 1.000000e+00 : f32
    %1012 = vector.broadcast %cst_202 : f32 to vector<2x32xf32>
    %1013 = arith.addf %1012, %1011 : vector<2x32xf32>
    %1014 = arith.divf %1012, %1013 : vector<2x32xf32>
    %1015 = vector.extract_strided_slice %1008 {offsets = [0, 32], sizes = [2, 32], strides = [1, 1]} : vector<2x128xf32> to vector<2x32xf32>
    %1016 = arith.negf %1015 : vector<2x32xf32>
    %1017 = math.exp %1016 : vector<2x32xf32>
    %cst_203 = arith.constant 1.000000e+00 : f32
    %1018 = vector.broadcast %cst_203 : f32 to vector<2x32xf32>
    %1019 = arith.addf %1018, %1017 : vector<2x32xf32>
    %1020 = arith.divf %1018, %1019 : vector<2x32xf32>
    %1021 = vector.extract_strided_slice %1008 {offsets = [0, 64], sizes = [2, 32], strides = [1, 1]} : vector<2x128xf32> to vector<2x32xf32>
    %1022 = math.tanh %1021 : vector<2x32xf32>
    %1023 = vector.extract_strided_slice %1008 {offsets = [0, 96], sizes = [2, 32], strides = [1, 1]} : vector<2x128xf32> to vector<2x32xf32>
    %1024 = arith.negf %1023 : vector<2x32xf32>
    %1025 = math.exp %1024 : vector<2x32xf32>
    %cst_204 = arith.constant 1.000000e+00 : f32
    %1026 = vector.broadcast %cst_204 : f32 to vector<2x32xf32>
    %1027 = arith.addf %1026, %1025 : vector<2x32xf32>
    %1028 = arith.divf %1026, %1027 : vector<2x32xf32>
    %1029 = arith.mulf %1020, %1005 : vector<2x32xf32>
    %1030 = arith.mulf %1014, %1022 : vector<2x32xf32>
    %1031 = arith.addf %1029, %1030 : vector<2x32xf32>
    %1032 = math.tanh %1031 : vector<2x32xf32>
    %1033 = arith.mulf %1028, %1032 : vector<2x32xf32>
    %cst_205 = arith.constant dense<0.000000e+00> : vector<2x128xf32>
    %1034 = tpu.matmul %1033, %1006, %cst_205 {dimension_numbers = #tpu.dot_dimension_numbers<[1], [0], [0], [1], [0, 0, 1, 1], [], []>} : vector<2x32xf32>, vector<32x128xf32>, vector<2x128xf32> -> vector<2x128xf32>
    %1035 = arith.addf %943, %1034 : vector<2x128xf32>
    %1036 = vector.extract_strided_slice %1035 {offsets = [0, 0], sizes = [2, 32], strides = [1, 1]} : vector<2x128xf32> to vector<2x32xf32>
    %1037 = arith.negf %1036 : vector<2x32xf32>
    %1038 = math.exp %1037 : vector<2x32xf32>
    %cst_206 = arith.constant 1.000000e+00 : f32
    %1039 = vector.broadcast %cst_206 : f32 to vector<2x32xf32>
    %1040 = arith.addf %1039, %1038 : vector<2x32xf32>
    %1041 = arith.divf %1039, %1040 : vector<2x32xf32>
    %1042 = vector.extract_strided_slice %1035 {offsets = [0, 32], sizes = [2, 32], strides = [1, 1]} : vector<2x128xf32> to vector<2x32xf32>
    %1043 = arith.negf %1042 : vector<2x32xf32>
    %1044 = math.exp %1043 : vector<2x32xf32>
    %cst_207 = arith.constant 1.000000e+00 : f32
    %1045 = vector.broadcast %cst_207 : f32 to vector<2x32xf32>
    %1046 = arith.addf %1045, %1044 : vector<2x32xf32>
    %1047 = arith.divf %1045, %1046 : vector<2x32xf32>
    %1048 = vector.extract_strided_slice %1035 {offsets = [0, 64], sizes = [2, 32], strides = [1, 1]} : vector<2x128xf32> to vector<2x32xf32>
    %1049 = math.tanh %1048 : vector<2x32xf32>
    %1050 = vector.extract_strided_slice %1035 {offsets = [0, 96], sizes = [2, 32], strides = [1, 1]} : vector<2x128xf32> to vector<2x32xf32>
    %1051 = arith.negf %1050 : vector<2x32xf32>
    %1052 = math.exp %1051 : vector<2x32xf32>
    %cst_208 = arith.constant 1.000000e+00 : f32
    %1053 = vector.broadcast %cst_208 : f32 to vector<2x32xf32>
    %1054 = arith.addf %1053, %1052 : vector<2x32xf32>
    %1055 = arith.divf %1053, %1054 : vector<2x32xf32>
    %1056 = arith.mulf %1047, %1031 : vector<2x32xf32>
    %1057 = arith.mulf %1041, %1049 : vector<2x32xf32>
    %1058 = arith.addf %1056, %1057 : vector<2x32xf32>
    %1059 = math.tanh %1058 : vector<2x32xf32>
    %1060 = arith.mulf %1055, %1059 : vector<2x32xf32>
    %cst_209 = arith.constant dense<0.000000e+00> : vector<2x128xf32>
    %1061 = tpu.matmul %1060, %1006, %cst_209 {dimension_numbers = #tpu.dot_dimension_numbers<[1], [0], [0], [1], [0, 0, 1, 1], [], []>} : vector<2x32xf32>, vector<32x128xf32>, vector<2x128xf32> -> vector<2x128xf32>
    %1062 = arith.addf %883, %1061 : vector<2x128xf32>
    %1063 = vector.extract_strided_slice %1062 {offsets = [0, 0], sizes = [2, 32], strides = [1, 1]} : vector<2x128xf32> to vector<2x32xf32>
    %1064 = arith.negf %1063 : vector<2x32xf32>
    %1065 = math.exp %1064 : vector<2x32xf32>
    %cst_210 = arith.constant 1.000000e+00 : f32
    %1066 = vector.broadcast %cst_210 : f32 to vector<2x32xf32>
    %1067 = arith.addf %1066, %1065 : vector<2x32xf32>
    %1068 = arith.divf %1066, %1067 : vector<2x32xf32>
    %1069 = vector.extract_strided_slice %1062 {offsets = [0, 32], sizes = [2, 32], strides = [1, 1]} : vector<2x128xf32> to vector<2x32xf32>
    %1070 = arith.negf %1069 : vector<2x32xf32>
    %1071 = math.exp %1070 : vector<2x32xf32>
    %cst_211 = arith.constant 1.000000e+00 : f32
    %1072 = vector.broadcast %cst_211 : f32 to vector<2x32xf32>
    %1073 = arith.addf %1072, %1071 : vector<2x32xf32>
    %1074 = arith.divf %1072, %1073 : vector<2x32xf32>
    %1075 = vector.extract_strided_slice %1062 {offsets = [0, 64], sizes = [2, 32], strides = [1, 1]} : vector<2x128xf32> to vector<2x32xf32>
    %1076 = math.tanh %1075 : vector<2x32xf32>
    %1077 = vector.extract_strided_slice %1062 {offsets = [0, 96], sizes = [2, 32], strides = [1, 1]} : vector<2x128xf32> to vector<2x32xf32>
    %1078 = arith.negf %1077 : vector<2x32xf32>
    %1079 = math.exp %1078 : vector<2x32xf32>
    %cst_212 = arith.constant 1.000000e+00 : f32
    %1080 = vector.broadcast %cst_212 : f32 to vector<2x32xf32>
    %1081 = arith.addf %1080, %1079 : vector<2x32xf32>
    %1082 = arith.divf %1080, %1081 : vector<2x32xf32>
    %1083 = arith.mulf %1074, %1058 : vector<2x32xf32>
    %1084 = arith.mulf %1068, %1076 : vector<2x32xf32>
    %1085 = arith.addf %1083, %1084 : vector<2x32xf32>
    %1086 = math.tanh %1085 : vector<2x32xf32>
    %1087 = arith.mulf %1082, %1086 : vector<2x32xf32>
    %cst_213 = arith.constant dense<0.000000e+00> : vector<2x128xf32>
    %1088 = tpu.matmul %1087, %1006, %cst_213 {dimension_numbers = #tpu.dot_dimension_numbers<[1], [0], [0], [1], [0, 0, 1, 1], [], []>} : vector<2x32xf32>, vector<32x128xf32>, vector<2x128xf32> -> vector<2x128xf32>
    %1089 = arith.addf %823, %1088 : vector<2x128xf32>
    %1090 = vector.extract_strided_slice %1089 {offsets = [0, 0], sizes = [2, 32], strides = [1, 1]} : vector<2x128xf32> to vector<2x32xf32>
    %1091 = arith.negf %1090 : vector<2x32xf32>
    %1092 = math.exp %1091 : vector<2x32xf32>
    %cst_214 = arith.constant 1.000000e+00 : f32
    %1093 = vector.broadcast %cst_214 : f32 to vector<2x32xf32>
    %1094 = arith.addf %1093, %1092 : vector<2x32xf32>
    %1095 = arith.divf %1093, %1094 : vector<2x32xf32>
    %1096 = vector.extract_strided_slice %1089 {offsets = [0, 32], sizes = [2, 32], strides = [1, 1]} : vector<2x128xf32> to vector<2x32xf32>
    %1097 = arith.negf %1096 : vector<2x32xf32>
    %1098 = math.exp %1097 : vector<2x32xf32>
    %cst_215 = arith.constant 1.000000e+00 : f32
    %1099 = vector.broadcast %cst_215 : f32 to vector<2x32xf32>
    %1100 = arith.addf %1099, %1098 : vector<2x32xf32>
    %1101 = arith.divf %1099, %1100 : vector<2x32xf32>
    %1102 = vector.extract_strided_slice %1089 {offsets = [0, 64], sizes = [2, 32], strides = [1, 1]} : vector<2x128xf32> to vector<2x32xf32>
    %1103 = math.tanh %1102 : vector<2x32xf32>
    %1104 = vector.extract_strided_slice %1089 {offsets = [0, 96], sizes = [2, 32], strides = [1, 1]} : vector<2x128xf32> to vector<2x32xf32>
    %1105 = arith.negf %1104 : vector<2x32xf32>
    %1106 = math.exp %1105 : vector<2x32xf32>
    %cst_216 = arith.constant 1.000000e+00 : f32
    %1107 = vector.broadcast %cst_216 : f32 to vector<2x32xf32>
    %1108 = arith.addf %1107, %1106 : vector<2x32xf32>
    %1109 = arith.divf %1107, %1108 : vector<2x32xf32>
    %1110 = arith.mulf %1101, %1085 : vector<2x32xf32>
    %1111 = arith.mulf %1095, %1103 : vector<2x32xf32>
    %1112 = arith.addf %1110, %1111 : vector<2x32xf32>
    %1113 = math.tanh %1112 : vector<2x32xf32>
    %1114 = arith.mulf %1109, %1113 : vector<2x32xf32>
    %cst_217 = arith.constant dense<0.000000e+00> : vector<2x128xf32>
    %1115 = tpu.matmul %1114, %1006, %cst_217 {dimension_numbers = #tpu.dot_dimension_numbers<[1], [0], [0], [1], [0, 0, 1, 1], [], []>} : vector<2x32xf32>, vector<32x128xf32>, vector<2x128xf32> -> vector<2x128xf32>
    %1116 = arith.addf %821, %1115 : vector<2x128xf32>
    %1117 = vector.extract_strided_slice %1116 {offsets = [0, 0], sizes = [2, 32], strides = [1, 1]} : vector<2x128xf32> to vector<2x32xf32>
    %1118 = arith.negf %1117 : vector<2x32xf32>
    %1119 = math.exp %1118 : vector<2x32xf32>
    %cst_218 = arith.constant 1.000000e+00 : f32
    %1120 = vector.broadcast %cst_218 : f32 to vector<2x32xf32>
    %1121 = arith.addf %1120, %1119 : vector<2x32xf32>
    %1122 = arith.divf %1120, %1121 : vector<2x32xf32>
    %1123 = vector.extract_strided_slice %1116 {offsets = [0, 32], sizes = [2, 32], strides = [1, 1]} : vector<2x128xf32> to vector<2x32xf32>
    %1124 = arith.negf %1123 : vector<2x32xf32>
    %1125 = math.exp %1124 : vector<2x32xf32>
    %cst_219 = arith.constant 1.000000e+00 : f32
    %1126 = vector.broadcast %cst_219 : f32 to vector<2x32xf32>
    %1127 = arith.addf %1126, %1125 : vector<2x32xf32>
    %1128 = arith.divf %1126, %1127 : vector<2x32xf32>
    %1129 = vector.extract_strided_slice %1116 {offsets = [0, 64], sizes = [2, 32], strides = [1, 1]} : vector<2x128xf32> to vector<2x32xf32>
    %1130 = math.tanh %1129 : vector<2x32xf32>
    %1131 = vector.extract_strided_slice %1116 {offsets = [0, 96], sizes = [2, 32], strides = [1, 1]} : vector<2x128xf32> to vector<2x32xf32>
    %1132 = arith.negf %1131 : vector<2x32xf32>
    %1133 = math.exp %1132 : vector<2x32xf32>
    %cst_220 = arith.constant 1.000000e+00 : f32
    %1134 = vector.broadcast %cst_220 : f32 to vector<2x32xf32>
    %1135 = arith.addf %1134, %1133 : vector<2x32xf32>
    %1136 = arith.divf %1134, %1135 : vector<2x32xf32>
    %1137 = arith.mulf %1128, %1112 : vector<2x32xf32>
    %1138 = arith.mulf %1122, %1130 : vector<2x32xf32>
    %1139 = arith.addf %1137, %1138 : vector<2x32xf32>
    %1140 = math.tanh %1139 : vector<2x32xf32>
    %1141 = arith.mulf %1136, %1140 : vector<2x32xf32>
    %cst_221 = arith.constant dense<0.000000e+00> : vector<2x128xf32>
    %1142 = tpu.matmul %1141, %1006, %cst_221 {dimension_numbers = #tpu.dot_dimension_numbers<[1], [0], [0], [1], [0, 0, 1, 1], [], []>} : vector<2x32xf32>, vector<32x128xf32>, vector<2x128xf32> -> vector<2x128xf32>
    %1143 = arith.addf %881, %1142 : vector<2x128xf32>
    %1144 = vector.extract_strided_slice %1143 {offsets = [0, 0], sizes = [2, 32], strides = [1, 1]} : vector<2x128xf32> to vector<2x32xf32>
    %1145 = arith.negf %1144 : vector<2x32xf32>
    %1146 = math.exp %1145 : vector<2x32xf32>
    %cst_222 = arith.constant 1.000000e+00 : f32
    %1147 = vector.broadcast %cst_222 : f32 to vector<2x32xf32>
    %1148 = arith.addf %1147, %1146 : vector<2x32xf32>
    %1149 = arith.divf %1147, %1148 : vector<2x32xf32>
    %1150 = vector.extract_strided_slice %1143 {offsets = [0, 32], sizes = [2, 32], strides = [1, 1]} : vector<2x128xf32> to vector<2x32xf32>
    %1151 = arith.negf %1150 : vector<2x32xf32>
    %1152 = math.exp %1151 : vector<2x32xf32>
    %cst_223 = arith.constant 1.000000e+00 : f32
    %1153 = vector.broadcast %cst_223 : f32 to vector<2x32xf32>
    %1154 = arith.addf %1153, %1152 : vector<2x32xf32>
    %1155 = arith.divf %1153, %1154 : vector<2x32xf32>
    %1156 = vector.extract_strided_slice %1143 {offsets = [0, 64], sizes = [2, 32], strides = [1, 1]} : vector<2x128xf32> to vector<2x32xf32>
    %1157 = math.tanh %1156 : vector<2x32xf32>
    %1158 = vector.extract_strided_slice %1143 {offsets = [0, 96], sizes = [2, 32], strides = [1, 1]} : vector<2x128xf32> to vector<2x32xf32>
    %1159 = arith.negf %1158 : vector<2x32xf32>
    %1160 = math.exp %1159 : vector<2x32xf32>
    %cst_224 = arith.constant 1.000000e+00 : f32
    %1161 = vector.broadcast %cst_224 : f32 to vector<2x32xf32>
    %1162 = arith.addf %1161, %1160 : vector<2x32xf32>
    %1163 = arith.divf %1161, %1162 : vector<2x32xf32>
    %1164 = arith.mulf %1155, %1139 : vector<2x32xf32>
    %1165 = arith.mulf %1149, %1157 : vector<2x32xf32>
    %1166 = arith.addf %1164, %1165 : vector<2x32xf32>
    %1167 = math.tanh %1166 : vector<2x32xf32>
    %1168 = arith.mulf %1163, %1167 : vector<2x32xf32>
    %cst_225 = arith.constant dense<0.000000e+00> : vector<2x128xf32>
    %1169 = tpu.matmul %1168, %1006, %cst_225 {dimension_numbers = #tpu.dot_dimension_numbers<[1], [0], [0], [1], [0, 0, 1, 1], [], []>} : vector<2x32xf32>, vector<32x128xf32>, vector<2x128xf32> -> vector<2x128xf32>
    %1170 = arith.addf %941, %1169 : vector<2x128xf32>
    %1171 = vector.extract_strided_slice %1170 {offsets = [0, 0], sizes = [2, 32], strides = [1, 1]} : vector<2x128xf32> to vector<2x32xf32>
    %1172 = arith.negf %1171 : vector<2x32xf32>
    %1173 = math.exp %1172 : vector<2x32xf32>
    %cst_226 = arith.constant 1.000000e+00 : f32
    %1174 = vector.broadcast %cst_226 : f32 to vector<2x32xf32>
    %1175 = arith.addf %1174, %1173 : vector<2x32xf32>
    %1176 = arith.divf %1174, %1175 : vector<2x32xf32>
    %1177 = vector.extract_strided_slice %1170 {offsets = [0, 32], sizes = [2, 32], strides = [1, 1]} : vector<2x128xf32> to vector<2x32xf32>
    %1178 = arith.negf %1177 : vector<2x32xf32>
    %1179 = math.exp %1178 : vector<2x32xf32>
    %cst_227 = arith.constant 1.000000e+00 : f32
    %1180 = vector.broadcast %cst_227 : f32 to vector<2x32xf32>
    %1181 = arith.addf %1180, %1179 : vector<2x32xf32>
    %1182 = arith.divf %1180, %1181 : vector<2x32xf32>
    %1183 = vector.extract_strided_slice %1170 {offsets = [0, 64], sizes = [2, 32], strides = [1, 1]} : vector<2x128xf32> to vector<2x32xf32>
    %1184 = math.tanh %1183 : vector<2x32xf32>
    %1185 = vector.extract_strided_slice %1170 {offsets = [0, 96], sizes = [2, 32], strides = [1, 1]} : vector<2x128xf32> to vector<2x32xf32>
    %1186 = arith.negf %1185 : vector<2x32xf32>
    %1187 = math.exp %1186 : vector<2x32xf32>
    %cst_228 = arith.constant 1.000000e+00 : f32
    %1188 = vector.broadcast %cst_228 : f32 to vector<2x32xf32>
    %1189 = arith.addf %1188, %1187 : vector<2x32xf32>
    %1190 = arith.divf %1188, %1189 : vector<2x32xf32>
    %1191 = arith.mulf %1182, %1166 : vector<2x32xf32>
    %1192 = arith.mulf %1176, %1184 : vector<2x32xf32>
    %1193 = arith.addf %1191, %1192 : vector<2x32xf32>
    %1194 = math.tanh %1193 : vector<2x32xf32>
    %1195 = arith.mulf %1190, %1194 : vector<2x32xf32>
    %cst_229 = arith.constant dense<0.000000e+00> : vector<2x128xf32>
    %1196 = tpu.matmul %1195, %1006, %cst_229 {dimension_numbers = #tpu.dot_dimension_numbers<[1], [0], [0], [1], [0, 0, 1, 1], [], []>} : vector<2x32xf32>, vector<32x128xf32>, vector<2x128xf32> -> vector<2x128xf32>
    %1197 = arith.addf %1001, %1196 : vector<2x128xf32>
    %1198 = vector.extract_strided_slice %1197 {offsets = [0, 0], sizes = [2, 32], strides = [1, 1]} : vector<2x128xf32> to vector<2x32xf32>
    %1199 = arith.negf %1198 : vector<2x32xf32>
    %1200 = math.exp %1199 : vector<2x32xf32>
    %cst_230 = arith.constant 1.000000e+00 : f32
    %1201 = vector.broadcast %cst_230 : f32 to vector<2x32xf32>
    %1202 = arith.addf %1201, %1200 : vector<2x32xf32>
    %1203 = arith.divf %1201, %1202 : vector<2x32xf32>
    %1204 = vector.extract_strided_slice %1197 {offsets = [0, 32], sizes = [2, 32], strides = [1, 1]} : vector<2x128xf32> to vector<2x32xf32>
    %1205 = arith.negf %1204 : vector<2x32xf32>
    %1206 = math.exp %1205 : vector<2x32xf32>
    %cst_231 = arith.constant 1.000000e+00 : f32
    %1207 = vector.broadcast %cst_231 : f32 to vector<2x32xf32>
    %1208 = arith.addf %1207, %1206 : vector<2x32xf32>
    %1209 = arith.divf %1207, %1208 : vector<2x32xf32>
    %1210 = vector.extract_strided_slice %1197 {offsets = [0, 64], sizes = [2, 32], strides = [1, 1]} : vector<2x128xf32> to vector<2x32xf32>
    %1211 = math.tanh %1210 : vector<2x32xf32>
    %1212 = vector.extract_strided_slice %1197 {offsets = [0, 96], sizes = [2, 32], strides = [1, 1]} : vector<2x128xf32> to vector<2x32xf32>
    %1213 = arith.negf %1212 : vector<2x32xf32>
    %1214 = math.exp %1213 : vector<2x32xf32>
    %cst_232 = arith.constant 1.000000e+00 : f32
    %1215 = vector.broadcast %cst_232 : f32 to vector<2x32xf32>
    %1216 = arith.addf %1215, %1214 : vector<2x32xf32>
    %1217 = arith.divf %1215, %1216 : vector<2x32xf32>
    %1218 = arith.mulf %1209, %1193 : vector<2x32xf32>
    %1219 = arith.mulf %1203, %1211 : vector<2x32xf32>
    %1220 = arith.addf %1218, %1219 : vector<2x32xf32>
    %1221 = math.tanh %1220 : vector<2x32xf32>
    %1222 = arith.mulf %1217, %1221 : vector<2x32xf32>
    %c0_233 = arith.constant 0 : index
    %c0_234 = arith.constant 0 : index
    %1223 = vector.load %arg12[%c0_233, %c0_234] : memref<32x32xf32, #tpu.memory_space<vmem>>, vector<32x32xf32>
    %cst_235 = arith.constant dense<0.000000e+00> : vector<2x32xf32>
    %1224 = tpu.matmul %1222, %1223, %cst_235 {dimension_numbers = #tpu.dot_dimension_numbers<[1], [0], [0], [1], [0, 0, 1, 1], [], []>} : vector<2x32xf32>, vector<32x32xf32>, vector<2x32xf32> -> vector<2x32xf32>
    %c0_236 = arith.constant 0 : index
    %c0_237 = arith.constant 0 : index
    %1225 = vector.load %arg13[%c0_236, %c0_237] : memref<1x32xf32, #tpu.memory_space<vmem>>, vector<1x32xf32>
    %1226 = vector.broadcast %1225 : vector<1x32xf32> to vector<2x32xf32>
    %1227 = arith.addf %1224, %1226 : vector<2x32xf32>
    %cst_238 = arith.constant 0.000000e+00 : f32
    %1228 = vector.broadcast %cst_238 : f32 to vector<2x32xf32>
    %1229 = arith.cmpf ogt, %1227, %1228 : vector<2x32xf32>
    %1230 = math.exp %1227 : vector<2x32xf32>
    %cst_239 = arith.constant 1.000000e+00 : f32
    %1231 = vector.broadcast %cst_239 : f32 to vector<2x32xf32>
    %1232 = arith.subf %1230, %1231 : vector<2x32xf32>
    %1233 = arith.select %1229, %1227, %1232 : vector<2x32xi1>, vector<2x32xf32>
    %c0_240 = arith.constant 0 : index
    %c0_241 = arith.constant 0 : index
    %1234 = vector.load %arg14[%c0_240, %c0_241] : memref<32x3xf32, #tpu.memory_space<vmem>>, vector<32x3xf32>
    %cst_242 = arith.constant dense<0.000000e+00> : vector<2x3xf32>
    %1235 = tpu.matmul %1233, %1234, %cst_242 {dimension_numbers = #tpu.dot_dimension_numbers<[1], [0], [0], [1], [0, 0, 1, 1], [], []>} : vector<2x32xf32>, vector<32x3xf32>, vector<2x3xf32> -> vector<2x3xf32>
    %c0_243 = arith.constant 0 : index
    %c0_244 = arith.constant 0 : index
    %1236 = vector.load %arg15[%c0_243, %c0_244] : memref<1x3xf32, #tpu.memory_space<vmem>>, vector<1x3xf32>
    %1237 = vector.broadcast %1236 : vector<1x3xf32> to vector<2x3xf32>
    %1238 = arith.addf %1235, %1237 : vector<2x3xf32>
    %cst_245 = arith.constant dense<0xFF800000> : vector<2xf32>
    %1239 = vector.multi_reduction <maximumf>, %1238, %cst_245 [1] : vector<2x3xf32> to vector<2xf32>
    %1240 = vector.shape_cast %1239 : vector<2xf32> to vector<2x1xf32>
    %1241 = vector.broadcast %1240 : vector<2x1xf32> to vector<2x3xf32>
    %1242 = arith.subf %1238, %1241 : vector<2x3xf32>
    %1243 = math.exp %1242 : vector<2x3xf32>
    %cst_246 = arith.constant dense<0.000000e+00> : vector<2xf32>
    %1244 = vector.multi_reduction <add>, %1243, %cst_246 [1] : vector<2x3xf32> to vector<2xf32>
    %1245 = vector.shape_cast %1244 : vector<2xf32> to vector<2x1xf32>
    %1246 = tpu.reciprocal %1245 {approx = true} : vector<2x1xf32> -> vector<2x1xf32>
    %1247 = vector.broadcast %1246 : vector<2x1xf32> to vector<2x3xf32>
    %1248 = arith.mulf %1243, %1247 : vector<2x3xf32>
    %c0_247 = arith.constant 0 : index
    %c0_248 = arith.constant 0 : index
    %1249 = vector.load %arg16[%c0_247, %c0_248] : memref<2x3xf32, #tpu.memory_space<vmem>>, vector<2x3xf32>
    tpu.vector_store %arg16[%c0_247, %c0_248], %1248 {strides = array<i32>} : memref<2x3xf32, #tpu.memory_space<vmem>>, vector<2x3xf32>,
    return
  }
}

</mosaic_0001>

<llo_original>
// kernel: dnalstm_forward.1
$region0: #{dnalstm_forward.1}
  #allocation0 [shape = 'u32[]', space=smem, size = 0x4, offset = 0x4, fixed_abs, tag = 'smem constant byte address 0x4 - core index']
  #allocation1 [shape = 'u32[72,128]{1,0:T(1,128)}', space=vmem, size = 0x9000, scoped, tag = 'internal scratch']
  %s0 = inlined_call_operand.vmem [shape: f32[8,2,256], index: 0, kind: input, shape index: {}]
  %s1 = inlined_call_operand.vmem [shape: f32[32,128], index: 1, kind: input, shape index: {}]
  %s2 = inlined_call_operand.hbm [shape: f32[32,128], index: 2, kind: input, shape index: {}]
  %s3 = inlined_call_operand.vmem [shape: f32[32,256], index: 3, kind: input, shape index: {}]
  %s4 = inlined_call_operand.vmem [shape: f32[32,256], index: 4, kind: input, shape index: {}]
  %s5 = inlined_call_operand.hbm [shape: f32[32,128], index: 5, kind: input, shape index: {}]
  %s6 = inlined_call_operand.hbm [shape: f32[32,128], index: 6, kind: input, shape index: {}]
  %s7 = inlined_call_operand.vmem [shape: f32[1,256], index: 7, kind: input, shape index: {}]
  %s8 = inlined_call_operand.hbm [shape: f32[32,128], index: 8, kind: input, shape index: {}]
  %s9 = inlined_call_operand.hbm [shape: f32[32,128], index: 9, kind: input, shape index: {}]
  %s10 = inlined_call_operand.hbm [shape: f32[32,128], index: 10, kind: input, shape index: {}]
  %s11 = inlined_call_operand.vmem [shape: f32[1,128], index: 11, kind: input, shape index: {}]
  %s12 = inlined_call_operand.hbm [shape: f32[32,32], index: 12, kind: input, shape index: {}]
  %s13 = inlined_call_operand.vmem [shape: f32[1,32], index: 13, kind: input, shape index: {}]
  %s14 = inlined_call_operand.vmem [shape: f32[32,3], index: 14, kind: input, shape index: {}]
  %s15 = inlined_call_operand.vmem [shape: f32[1,3], index: 15, kind: input, shape index: {}]
  %s16 = inlined_call_operand.hbm [shape: f32[2,3], index: 16, kind: output, shape index: {}]
  %s17 = sld [smem:[#allocation0]]
  $region102: #{dnalstm_forward.1} parent=0
    _
  %s19 = ssub.s32 1, %s17
  %s20 = scalar_select 0, %s19, %s17
  $region1: #{dnalstm_forward.1} parent=0
    #allocation2 [shape = 'u8[16384]{0}', space=vmem, size = 0x4000, scoped, tag = 'input window, operand 2, single buffered']
    #allocation3 [shape = 's32[1]{0}', space=sflag, size = 0x4, scoped, tag = 'scoped memory for dnalstm_forward.1']
    #allocation4 [shape = 's32[1]{0}', space=sflag, size = 0x4, scoped, tag = 'scoped memory for dnalstm_forward.1']
    #allocation5 [shape = 'u8[16384]{0}', space=vmem, size = 0x4000, scoped, tag = 'input window, operand 5, single buffered']
    #allocation6 [shape = 's32[1]{0}', space=sflag, size = 0x4, scoped, tag = 'scoped memory for dnalstm_forward.1']
    #allocation7 [shape = 'u8[16384]{0}', space=vmem, size = 0x4000, scoped, tag = 'input window, operand 6, single buffered']
    #allocation8 [shape = 'u8[16384]{0}', space=vmem, size = 0x4000, scoped, tag = 'input window, operand 8, single buffered']
    #allocation9 [shape = 's32[1]{0}', space=sflag, size = 0x4, scoped, tag = 'scoped memory for dnalstm_forward.1']
    #allocation10 [shape = 'u8[16384]{0}', space=vmem, size = 0x4000, scoped, tag = 'input window, operand 9, single buffered']
    #allocation11 [shape = 'u8[16384]{0}', space=vmem, size = 0x4000, scoped, tag = 'input window, operand 10, single buffered']
    #allocation12 [shape = 's32[1]{0}', space=sflag, size = 0x4, scoped, tag = 'scoped memory for dnalstm_forward.1']
    #allocation13 [shape = 'u8[16384]{0}', space=vmem, size = 0x4000, scoped, tag = 'input window, operand 12, single buffered']
    #allocation14 [shape = 'u8[1024]{0}', space=vmem, size = 0x400, scoped, tag = 'output window, operand 0, single buffered']
    %21 = vsyncpa [#allocation3], 0
    %22 = vsyncpa [#allocation6], 0
    %23 = vsyncpa [#allocation9], 0
    %24 = vsyncpa [#allocation12], 0
    %25 = vsyncpa [#allocation4], 0
    // Predicated region
    $region2: #{dnalstm_forward.1} parent=1 // pred_check
      _
    $region3: #{dnalstm_forward.1} parent=1 // pred_check_branch
      %27 = sbr.rel (0) target = $region5
    $region4: #{dnalstm_forward.1} parent=1 // pred_region
      _
    $region5: #{dnalstm_forward.1} parent=1 // pred_fallthru
      _
    // Predicated region
    $region6: #{dnalstm_forward.1} parent=1 // pred_check
      _
    $region7: #{dnalstm_forward.1} parent=1 // pred_check_branch
      %29 = sbr.rel (0) target = $region9
    $region8: #{dnalstm_forward.1} parent=1 // pred_region
      _
    $region9: #{dnalstm_forward.1} parent=1 // pred_fallthru
      _
    // Predicated region
    $region10: #{dnalstm_forward.1} parent=1 // pred_check
      _
    $region11: #{dnalstm_forward.1} parent=1 // pred_check_branch
      %31 = sbr.rel (0) target = $region13
    $region12: #{dnalstm_forward.1} parent=1 // pred_region
      %33 = vsyncadd [#allocation3], 0
      %s34 = sshll.u32 %s2, 4
      %s35 = int_to_ptr.hbm [resolvable:$true] %s34
      %s36 = sshll.u32 [#allocation2], 4
      %s37 = int_to_ptr.vmem [resolvable:$true] %s36
      %42 = dma.hbm_to_vmem [thread:$0]  %s35, 512, %s37, [#allocation3], 128, 128, 8
    $region13: #{dnalstm_forward.1} parent=1 // pred_fallthru
      _
    // Predicated region
    $region14: #{dnalstm_forward.1} parent=1 // pred_check
      _
    $region15: #{dnalstm_forward.1} parent=1 // pred_check_branch
      %44 = sbr.rel (0) target = $region17
    $region16: #{dnalstm_forward.1} parent=1 // pred_region
      _
    $region17: #{dnalstm_forward.1} parent=1 // pred_fallthru
      _
    // Predicated region
    $region18: #{dnalstm_forward.1} parent=1 // pred_check
      _
    $region19: #{dnalstm_forward.1} parent=1 // pred_check_branch
      %46 = sbr.rel (0) target = $region21
    $region20: #{dnalstm_forward.1} parent=1 // pred_region
      _
    $region21: #{dnalstm_forward.1} parent=1 // pred_fallthru
      _
    // Predicated region
    $region22: #{dnalstm_forward.1} parent=1 // pred_check
      _
    $region23: #{dnalstm_forward.1} parent=1 // pred_check_branch
      %48 = sbr.rel (0) target = $region25
    $region24: #{dnalstm_forward.1} parent=1 // pred_region
      %50 = vsyncadd [#allocation6], 0
      %s51 = sshll.u32 %s5, 4
      %s52 = int_to_ptr.hbm [resolvable:$true] %s51
      %s53 = sshll.u32 [#allocation5], 4
      %s54 = int_to_ptr.vmem [resolvable:$true] %s53
      %59 = dma.hbm_to_vmem [thread:$0]  %s52, 512, %s54, [#allocation6], 128, 128, 8
    $region25: #{dnalstm_forward.1} parent=1 // pred_fallthru
      _
    // Predicated region
    $region26: #{dnalstm_forward.1} parent=1 // pred_check
      _
    $region27: #{dnalstm_forward.1} parent=1 // pred_check_branch
      %61 = sbr.rel (0) target = $region29
    $region28: #{dnalstm_forward.1} parent=1 // pred_region
      %63 = vsyncadd [#allocation6], 0
      %s64 = sshll.u32 %s6, 4
      %s65 = int_to_ptr.hbm [resolvable:$true] %s64
      %s66 = sshll.u32 [#allocation7], 4
      %s67 = int_to_ptr.vmem [resolvable:$true] %s66
      %72 = dma.hbm_to_vmem [thread:$0]  %s65, 512, %s67, [#allocation6], 128, 128, 8
    $region29: #{dnalstm_forward.1} parent=1 // pred_fallthru
      _
    // Predicated region
    $region30: #{dnalstm_forward.1} parent=1 // pred_check
      _
    $region31: #{dnalstm_forward.1} parent=1 // pred_check_branch
      %74 = sbr.rel (0) target = $region33
    $region32: #{dnalstm_forward.1} parent=1 // pred_region
      _
    $region33: #{dnalstm_forward.1} parent=1 // pred_fallthru
      _
    // Predicated region
    $region34: #{dnalstm_forward.1} parent=1 // pred_check
      _
    $region35: #{dnalstm_forward.1} parent=1 // pred_check_branch
      %76 = sbr.rel (0) target = $region37
    $region36: #{dnalstm_forward.1} parent=1 // pred_region
      %78 = vsyncadd [#allocation9], 0
      %s79 = sshll.u32 %s8, 4
      %s80 = int_to_ptr.hbm [resolvable:$true] %s79
      %s81 = sshll.u32 [#allocation8], 4
      %s82 = int_to_ptr.vmem [resolvable:$true] %s81
      %87 = dma.hbm_to_vmem [thread:$0]  %s80, 512, %s82, [#allocation9], 128, 128, 8
    $region37: #{dnalstm_forward.1} parent=1 // pred_fallthru
      _
    // Predicated region
    $region38: #{dnalstm_forward.1} parent=1 // pred_check
      _
    $region39: #{dnalstm_forward.1} parent=1 // pred_check_branch
      %89 = sbr.rel (0) target = $region41
    $region40: #{dnalstm_forward.1} parent=1 // pred_region
      %91 = vsyncadd [#allocation9], 0
      %s92 = sshll.u32 %s9, 4
      %s93 = int_to_ptr.hbm [resolvable:$true] %s92
      %s94 = sshll.u32 [#allocation10], 4
      %s95 = int_to_ptr.vmem [resolvable:$true] %s94
      %100 = dma.hbm_to_vmem [thread:$0]  %s93, 512, %s95, [#allocation9], 128, 128, 8
    $region41: #{dnalstm_forward.1} parent=1 // pred_fallthru
      _
    // Predicated region
    $region42: #{dnalstm_forward.1} parent=1 // pred_check
      _
    $region43: #{dnalstm_forward.1} parent=1 // pred_check_branch
      %102 = sbr.rel (0) target = $region45
    $region44: #{dnalstm_forward.1} parent=1 // pred_region
      %104 = vsyncadd [#allocation12], 0
      %s105 = sshll.u32 %s10, 4
      %s106 = int_to_ptr.hbm [resolvable:$true] %s105
      %s107 = sshll.u32 [#allocation11], 4
      %s108 = int_to_ptr.vmem [resolvable:$true] %s107
      %113 = dma.hbm_to_vmem [thread:$0]  %s106, 512, %s108, [#allocation12], 128, 128, 8
    $region45: #{dnalstm_forward.1} parent=1 // pred_fallthru
      _
    // Predicated region
    $region46: #{dnalstm_forward.1} parent=1 // pred_check
      _
    $region47: #{dnalstm_forward.1} parent=1 // pred_check_branch
      %115 = sbr.rel (0) target = $region49
    $region48: #{dnalstm_forward.1} parent=1 // pred_region
      _
    $region49: #{dnalstm_forward.1} parent=1 // pred_fallthru
      _
    // Predicated region
    $region50: #{dnalstm_forward.1} parent=1 // pred_check
      _
    $region51: #{dnalstm_forward.1} parent=1 // pred_check_branch
      %117 = sbr.rel (0) target = $region53
    $region52: #{dnalstm_forward.1} parent=1 // pred_region
      %119 = vsyncadd [#allocation12], 0
      %s120 = sshll.u32 %s12, 4
      %s121 = int_to_ptr.hbm [resolvable:$true] %s120
      %s122 = sshll.u32 [#allocation13], 4
      %s123 = int_to_ptr.vmem [resolvable:$true] %s122
      %128 = dma.hbm_to_vmem [thread:$0]  %s121, 512, %s123, [#allocation12], 128, 128, 8
    $region53: #{dnalstm_forward.1} parent=1 // pred_fallthru
      _
    // Predicated region
    $region54: #{dnalstm_forward.1} parent=1 // pred_check
      _
    $region55: #{dnalstm_forward.1} parent=1 // pred_check_branch
      %130 = sbr.rel (0) target = $region57
    $region56: #{dnalstm_forward.1} parent=1 // pred_region
      _
    $region57: #{dnalstm_forward.1} parent=1 // pred_fallthru
      _
    // Predicated region
    $region58: #{dnalstm_forward.1} parent=1 // pred_check
      _
    $region59: #{dnalstm_forward.1} parent=1 // pred_check_branch
      %132 = sbr.rel (0) target = $region61
    $region60: #{dnalstm_forward.1} parent=1 // pred_region
      _
    $region61: #{dnalstm_forward.1} parent=1 // pred_fallthru
      _
    // Predicated region
    $region62: #{dnalstm_forward.1} parent=1 // pred_check
      _
    $region63: #{dnalstm_forward.1} parent=1 // pred_check_branch
      %134 = sbr.rel (0) target = $region65
    $region64: #{dnalstm_forward.1} parent=1 // pred_region
      _
    $region65: #{dnalstm_forward.1} parent=1 // pred_fallthru
      _
    // Predicated region
    $region66: #{dnalstm_forward.1} parent=1 // pred_check
      _
    $region67: #{dnalstm_forward.1} parent=1 // pred_check_branch
      %136 = sbr.rel (0) target = $region69
    $region68: #{dnalstm_forward.1} parent=1 // pred_region
      %138 = dma.done [#allocation3], 512
    $region69: #{dnalstm_forward.1} parent=1 // pred_fallthru
      _
    // Predicated region
    $region70: #{dnalstm_forward.1} parent=1 // pred_check
      _
    $region71: #{dnalstm_forward.1} parent=1 // pred_check_branch
      %140 = sbr.rel (0) target = $region73
    $region72: #{dnalstm_forward.1} parent=1 // pred_region
      %142 = dma.done [#allocation6], 512
    $region73: #{dnalstm_forward.1} parent=1 // pred_fallthru
      _
    // Predicated region
    $region74: #{dnalstm_forward.1} parent=1 // pred_check
      _
    $region75: #{dnalstm_forward.1} parent=1 // pred_check_branch
      %144 = sbr.rel (0) target = $region77
    $region76: #{dnalstm_forward.1} parent=1 // pred_region
      %146 = dma.done [#allocation6], 512
    $region77: #{dnalstm_forward.1} parent=1 // pred_fallthru
      _
    // Predicated region
    $region78: #{dnalstm_forward.1} parent=1 // pred_check
      _
    $region79: #{dnalstm_forward.1} parent=1 // pred_check_branch
      %148 = sbr.rel (0) target = $region81
    $region80: #{dnalstm_forward.1} parent=1 // pred_region
      %150 = dma.done [#allocation9], 512
    $region81: #{dnalstm_forward.1} parent=1 // pred_fallthru
      _
    // Predicated region
    $region82: #{dnalstm_forward.1} parent=1 // pred_check
      _
    $region83: #{dnalstm_forward.1} parent=1 // pred_check_branch
      %152 = sbr.rel (0) target = $region85
    $region84: #{dnalstm_forward.1} parent=1 // pred_region
      %154 = dma.done [#allocation9], 512
    $region85: #{dnalstm_forward.1} parent=1 // pred_fallthru
      _
    // Predicated region
    $region86: #{dnalstm_forward.1} parent=1 // pred_check
      _
    $region87: #{dnalstm_forward.1} parent=1 // pred_check_branch
      %156 = sbr.rel (0) target = $region89
    $region88: #{dnalstm_forward.1} parent=1 // pred_region
      %158 = dma.done [#allocation12], 512
    $region89: #{dnalstm_forward.1} parent=1 // pred_fallthru
      _
    // Predicated region
    $region90: #{dnalstm_forward.1} parent=1 // pred_check
      _
    $region91: #{dnalstm_forward.1} parent=1 // pred_check_branch
      %160 = sbr.rel (0) target = $region93
    $region92: #{dnalstm_forward.1} parent=1 // pred_region
      %162 = dma.done [#allocation12], 512
    $region93: #{dnalstm_forward.1} parent=1 // pred_fallthru
      _
    %v163 = vld [vmem:[%s0] sm:$0xf]
    %s164 = scalar_lea.vmem %s0, 4
    %v165 = vld [vmem:[%s164] sm:$0xf]
    %s166 = scalar_lea.vmem %s0, 8
    %v167 = vld [vmem:[%s166] sm:$0xf]
    %s168 = scalar_lea.vmem %s0, 12
    %v169 = vld [vmem:[%s168] sm:$0xf]
    %s170 = scalar_lea.vmem %s0, 16
    %v171 = vld [vmem:[%s170] sm:$0xf]
    %s172 = scalar_lea.vmem %s0, 20
    %v173 = vld [vmem:[%s172] sm:$0xf]
    %s174 = scalar_lea.vmem %s0, 24
    %v175 = vld [vmem:[%s174] sm:$0xf]
    %s176 = scalar_lea.vmem %s0, 28
    %v177 = vld [vmem:[%s176] sm:$0xf]
    %v178 = vld [vmem:[%s1] sm:$0xff]
    %v179 = vld [vmem:[%s1 + $0x8] sm:$0xff]
    %v180 = vld [vmem:[%s1 + $0x10] sm:$0xff]
    %v181 = vld [vmem:[%s1 + $0x18] sm:$0xff]
    %v182 = vld [vmem:[#allocation2] sm:$0xff]
    %v183 = vld [vmem:[#allocation2 + $0x8] sm:$0xff]
    %v184 = vld [vmem:[#allocation2 + $0x10] sm:$0xff]
    %v185 = vld [vmem:[#allocation2 + $0x18] sm:$0xff]
    %v186 = vld [vmem:[%s3] sm:$0xff]
    %v187 = vld [vmem:[%s3 + $0x8] sm:$0xff]
    %v188 = vld [vmem:[%s3 + $0x10] sm:$0xff]
    %v189 = vld [vmem:[%s3 + $0x18] sm:$0xff]
    %v190 = vld [vmem:[%s3 + $0x20] sm:$0xff]
    %v191 = vld [vmem:[%s3 + $0x28] sm:$0xff]
    %v192 = vld [vmem:[%s3 + $0x30] sm:$0xff]
    %v193 = vld [vmem:[%s3 + $0x38] sm:$0xff]
    %v194 = vld [vmem:[%s4] sm:$0xff]
    %v195 = vld [vmem:[%s4 + $0x8] sm:$0xff]
    %v196 = vld [vmem:[%s4 + $0x10] sm:$0xff]
    %v197 = vld [vmem:[%s4 + $0x18] sm:$0xff]
    %v198 = vld [vmem:[%s4 + $0x20] sm:$0xff]
    %v199 = vld [vmem:[%s4 + $0x28] sm:$0xff]
    %v200 = vld [vmem:[%s4 + $0x30] sm:$0xff]
    %v201 = vld [vmem:[%s4 + $0x38] sm:$0xff]
    %v202 = vld [vmem:[%s7] sm:$0x3]
    %vm203 = vcmask 261120
    %v205 = vsel %vm203, 0.0, 0
    %207 = vmatpush.msra.mxu0 0.0
    %208 = vmatpush.msra.mxu0 0.0
    %209 = vmatpush.msra.mxu0 0.0
    %210 = vmatpush.msra.mxu0 0.0
    %211 = vmatpush.msra.mxu0 0.0
    %212 = vmatpush.msra.mxu0 0.0
    %213 = vmatpush.msra.mxu0 0.0
    %214 = vmatpush.msra.mxu0 0.0
    %215 = vmatpush.msra.mxu0 0.0
    %216 = vmatpush.msra.mxu0 0.0
    %217 = vmatpush.msra.mxu0 0.0
    %218 = vmatpush.msra.mxu0 0.0
    %219 = vmatpush.msra.mxu0 %v181
    %220 = vmatpush.msra.mxu0 %v180
    %221 = vmatpush.msra.mxu0 %v179
    %222 = vmatpush.msra.mxu0 %v178
    %223 = vmatmul.f32.gmra.mxu0 %v205
    %v224 = vpop.f32.mrf.mxu0
    %v225 = vadd.f32 0.0, %v224
    %226 = vdwg.mxu0
    %v227 = vadd.f32 %v163, %v225
    %v228 = vxor.u32 %v227, 2147483648
    %v229 = vmul.f32 %v228, 1.442695
    %v230 = vpow.pop %v229
    %v231 = vadd.f32 %v230, 1.0
    %v232 = vrcp.pop %v231
    %v233 = vmul.f32 %v231, %v232
    %v234 = vsub.f32 1.0, %v233
    %v235 = vmul.f32 %v232, %v234
    %v236 = vadd.f32 %v232, %v235
    %vm237 = vweird.f32 %v231
    %vm238 = vweird.f32 %v232
    %vm239 = vmor %vm237, %vm238
    %v240 = vsel %vm239, %v232, %v236
    %v241 = vand.u32 2147483647, %v231
    %vm242 = vcmp.eq.f32.partialorder %v241, 8.507059e+37
    %v243 = vand.u32 %v231, 2147483648
    %v244 = vor.u32 1.1754944e-38, %v243
    %v245 = vsel %vm242, %v244, %v240
    %v246 = vmul.f32 1.0, %v245
    %v247 = vtanh.pop %v227
    %v248 = vmul.f32 %v246, 0.0
    %250 = vrot.lane.b32.xlu0 %v247, 64
    %v251 = vpop.permute.xlu0 %250
    %v253 = vmul.f32 %v246, %v251
    %255 = vrot.lane.b32.xlu0 %v253, 32
    %v256 = vpop.permute.xlu0 %255
    %v258 = vadd.f32 %v248, %v256
    %v259 = vtanh.pop %v258
    %261 = vrot.lane.b32.xlu0 %v259, 64
    %v262 = vpop.permute.xlu0 %261
    %v264 = vmul.f32 %v246, %v262
    %265 = vmatpush.msra.mxu0 0.0
    %266 = vmatpush.msra.mxu0 0.0
    %267 = vmatpush.msra.mxu0 0.0
    %268 = vmatpush.msra.mxu0 0.0
    %269 = vmatpush.msra.mxu0 0.0
    %270 = vmatpush.msra.mxu0 0.0
    %271 = vmatpush.msra.mxu0 0.0
    %272 = vmatpush.msra.mxu0 0.0
    %273 = vmatpush.msra.mxu0 0.0
    %274 = vmatpush.msra.mxu0 0.0
    %275 = vmatpush.msra.mxu0 0.0
    %276 = vmatpush.msra.mxu0 0.0
    %277 = vmatpush.msra.mxu0 %v185
    %278 = vmatpush.msra.mxu0 %v184
    %279 = vmatpush.msra.mxu0 %v183
    %280 = vmatpush.msra.mxu0 %v182
    %281 = vmatmul.f32.gmra.mxu0 %v205
    %v282 = vpop.f32.mrf.mxu0
    %v283 = vadd.f32 0.0, %v282
    %284 = vdwg.mxu0
    %v286 = vrot.slane %v177, 2
    %v288 = vadd.f32 %v286, %v283
    %v289 = vxor.u32 %v288, 2147483648
    %v290 = vmul.f32 %v289, 1.442695
    %v291 = vpow.pop %v290
    %v292 = vadd.f32 %v291, 1.0
    %v293 = vrcp.pop %v292
    %v294 = vmul.f32 %v292, %v293
    %v295 = vsub.f32 1.0, %v294
    %v296 = vmul.f32 %v293, %v295
    %v297 = vadd.f32 %v293, %v296
    %vm298 = vweird.f32 %v292
    %vm299 = vweird.f32 %v293
    %vm300 = vmor %vm298, %vm299
    %v301 = vsel %vm300, %v293, %v297
    %v302 = vand.u32 2147483647, %v292
    %vm303 = vcmp.eq.f32.partialorder %v302, 8.507059e+37
    %v304 = vand.u32 %v292, 2147483648
    %v305 = vor.u32 1.1754944e-38, %v304
    %v306 = vsel %vm303, %v305, %v301
    %v307 = vmul.f32 1.0, %v306
    %v308 = vtanh.pop %v288
    %v309 = vmul.f32 %v307, 0.0
    %311 = vrot.lane.b32.xlu0 %v308, 64
    %v312 = vpop.permute.xlu0 %311
    %v314 = vmul.f32 %v307, %v312
    %316 = vrot.lane.b32.xlu0 %v314, 32
    %v317 = vpop.permute.xlu0 %316
    %v319 = vadd.f32 %v309, %v317
    %v320 = vtanh.pop %v319
    %322 = vrot.lane.b32.xlu0 %v320, 64
    %v323 = vpop.permute.xlu0 %322
    %v325 = vmul.f32 %v307, %v323
    %327 = vst [vmem:[#allocation1] ss:$4 sm:$0xff] %v264
    %v328 = vld.sshfl [vmem:[#allocation1] sm:$0xff pattern:$0x73625140]
    %329 = vrot.lane.b32.xlu0 %v328, 32
    %v330 = vpop.permute.xlu0 %329
    %v331 = vsel %vm203, %v330, 0
    %333 = vmatpush.msra.mxu0 0.0
    %334 = vmatpush.msra.mxu0 0.0
    %335 = vmatpush.msra.mxu0 0.0
    %336 = vmatpush.msra.mxu0 0.0
    %337 = vmatpush.msra.mxu0 0.0
    %338 = vmatpush.msra.mxu0 0.0
    %339 = vmatpush.msra.mxu0 0.0
    %340 = vmatpush.msra.mxu0 0.0
    %341 = vmatpush.msra.mxu0 0.0
    %342 = vmatpush.msra.mxu0 0.0
    %343 = vmatpush.msra.mxu0 0.0
    %344 = vmatpush.msra.mxu0 0.0
    %345 = vmatpush.msra.mxu0 %v192
    %346 = vmatpush.msra.mxu0 %v190
    %347 = vmatpush.msra.mxu0 %v188
    %348 = vmatpush.msra.mxu0 %v186
    %349 = vmatmul.f32.gmra.mxu0 %v331
    %v350 = vpop.f32.mrf.mxu0
    %v351 = vadd.f32 0.0, %v350
    %352 = vdwg.mxu0
    %353 = vmatpush.msra.mxu0 0.0
    %354 = vmatpush.msra.mxu0 0.0
    %355 = vmatpush.msra.mxu0 0.0
    %356 = vmatpush.msra.mxu0 0.0
    %357 = vmatpush.msra.mxu0 0.0
    %358 = vmatpush.msra.mxu0 0.0
    %359 = vmatpush.msra.mxu0 0.0
    %360 = vmatpush.msra.mxu0 0.0
    %361 = vmatpush.msra.mxu0 0.0
    %362 = vmatpush.msra.mxu0 0.0
    %363 = vmatpush.msra.mxu0 0.0
    %364 = vmatpush.msra.mxu0 0.0
    %365 = vmatpush.msra.mxu0 %v193
    %366 = vmatpush.msra.mxu0 %v191
    %367 = vmatpush.msra.mxu0 %v189
    %368 = vmatpush.msra.mxu0 %v187
    %369 = vmatmul.f32.gmra.mxu0 %v331
    %v370 = vpop.f32.mrf.mxu0
    %v371 = vadd.f32 0.0, %v370
    %372 = vdwg.mxu0
    %v374 = vperm.slane %v202, 0
    %v375 = vperm.slane %v202, 1
    %v378 = vadd.f32 %v374, %v351
    %v379 = vadd.f32 %v375, %v371
    %381 = vst [vmem:[#allocation1] ss:$4 sm:$0xff] %v325
    %v382 = vld.sshfl [vmem:[#allocation1] sm:$0xff pattern:$0x73625140]
    %383 = vrot.lane.b32.xlu0 %v382, 32
    %v384 = vpop.permute.xlu0 %383
    %v385 = vsel %vm203, %v384, 0
    %387 = vmatpush.msra.mxu0 0.0
    %388 = vmatpush.msra.mxu0 0.0
    %389 = vmatpush.msra.mxu0 0.0
    %390 = vmatpush.msra.mxu0 0.0
    %391 = vmatpush.msra.mxu0 0.0
    %392 = vmatpush.msra.mxu0 0.0
    %393 = vmatpush.msra.mxu0 0.0
    %394 = vmatpush.msra.mxu0 0.0
    %395 = vmatpush.msra.mxu0 0.0
    %396 = vmatpush.msra.mxu0 0.0
    %397 = vmatpush.msra.mxu0 0.0
    %398 = vmatpush.msra.mxu0 0.0
    %399 = vmatpush.msra.mxu0 %v200
    %400 = vmatpush.msra.mxu0 %v198
    %401 = vmatpush.msra.mxu0 %v196
    %402 = vmatpush.msra.mxu0 %v194
    %403 = vmatmul.f32.gmra.mxu0 %v385
    %v404 = vpop.f32.mrf.mxu0
    %v405 = vadd.f32 0.0, %v404
    %406 = vdwg.mxu0
    %407 = vmatpush.msra.mxu0 0.0
    %408 = vmatpush.msra.mxu0 0.0
    %409 = vmatpush.msra.mxu0 0.0
    %410 = vmatpush.msra.mxu0 0.0
    %411 = vmatpush.msra.mxu0 0.0
    %412 = vmatpush.msra.mxu0 0.0
    %413 = vmatpush.msra.mxu0 0.0
    %414 = vmatpush.msra.mxu0 0.0
    %415 = vmatpush.msra.mxu0 0.0
    %416 = vmatpush.msra.mxu0 0.0
    %417 = vmatpush.msra.mxu0 0.0
    %418 = vmatpush.msra.mxu0 0.0
    %419 = vmatpush.msra.mxu0 %v201
    %420 = vmatpush.msra.mxu0 %v199
    %421 = vmatpush.msra.mxu0 %v197
    %422 = vmatpush.msra.mxu0 %v195
    %423 = vmatmul.f32.gmra.mxu0 %v385
    %v424 = vpop.f32.mrf.mxu0
    %v425 = vadd.f32 0.0, %v424
    %426 = vdwg.mxu0
    %v427 = vadd.f32 %v374, %v405
    %v428 = vadd.f32 %v375, %v425
    %429 = vst [vmem:[#allocation1] ss:$4 sm:$0xff] %v264
    %v430 = vld.sshfl [vmem:[#allocation1] sm:$0xff pattern:$0x73625140]
    %431 = vrot.lane.b32.xlu0 %v430, 32
    %v432 = vpop.permute.xlu0 %431
    %v433 = vsel %vm203, %v432, 0
    %435 = vmatpush.msra.mxu0 0.0
    %436 = vmatpush.msra.mxu0 0.0
    %437 = vmatpush.msra.mxu0 0.0
    %438 = vmatpush.msra.mxu0 0.0
    %439 = vmatpush.msra.mxu0 0.0
    %440 = vmatpush.msra.mxu0 0.0
    %441 = vmatpush.msra.mxu0 0.0
    %442 = vmatpush.msra.mxu0 0.0
    %443 = vmatpush.msra.mxu0 0.0
    %444 = vmatpush.msra.mxu0 0.0
    %445 = vmatpush.msra.mxu0 0.0
    %446 = vmatpush.msra.mxu0 0.0
    %447 = vmatpush.msra.mxu0 %v181
    %448 = vmatpush.msra.mxu0 %v180
    %449 = vmatpush.msra.mxu0 %v179
    %450 = vmatpush.msra.mxu0 %v178
    %451 = vmatmul.f32.gmra.mxu0 %v433
    %v452 = vpop.f32.mrf.mxu0
    %v453 = vadd.f32 0.0, %v452
    %454 = vdwg.mxu0
    %v455 = vadd.f32 %v165, %v453
    %v456 = vxor.u32 %v455, 2147483648
    %v457 = vmul.f32 %v456, 1.442695
    %v458 = vpow.pop %v457
    %v459 = vadd.f32 %v458, 1.0
    %v460 = vrcp.pop %v459
    %v461 = vmul.f32 %v459, %v460
    %v462 = vsub.f32 1.0, %v461
    %v463 = vmul.f32 %v460, %v462
    %v464 = vadd.f32 %v460, %v463
    %vm465 = vweird.f32 %v459
    %vm466 = vweird.f32 %v460
    %vm467 = vmor %vm465, %vm466
    %v468 = vsel %vm467, %v460, %v464
    %v469 = vand.u32 2147483647, %v459
    %vm470 = vcmp.eq.f32.partialorder %v469, 8.507059e+37
    %v471 = vand.u32 %v459, 2147483648
    %v472 = vor.u32 1.1754944e-38, %v471
    %v473 = vsel %vm470, %v472, %v468
    %v474 = vmul.f32 1.0, %v473
    %v475 = vtanh.pop %v455
    %v476 = vmul.f32 %v474, %v258
    %478 = vrot.lane.b32.xlu0 %v475, 64
    %v479 = vpop.permute.xlu0 %478
    %v481 = vmul.f32 %v474, %v479
    %483 = vrot.lane.b32.xlu0 %v481, 32
    %v484 = vpop.permute.xlu0 %483
    %v486 = vadd.f32 %v476, %v484
    %v487 = vtanh.pop %v486
    %489 = vrot.lane.b32.xlu0 %v487, 64
    %v490 = vpop.permute.xlu0 %489
    %v492 = vmul.f32 %v474, %v490
    %493 = vst [vmem:[#allocation1] ss:$4 sm:$0xff] %v325
    %v494 = vld.sshfl [vmem:[#allocation1] sm:$0xff pattern:$0x73625140]
    %495 = vrot.lane.b32.xlu0 %v494, 32
    %v496 = vpop.permute.xlu0 %495
    %v497 = vsel %vm203, %v496, 0
    %499 = vmatpush.msra.mxu0 0.0
    %500 = vmatpush.msra.mxu0 0.0
    %501 = vmatpush.msra.mxu0 0.0
    %502 = vmatpush.msra.mxu0 0.0
    %503 = vmatpush.msra.mxu0 0.0
    %504 = vmatpush.msra.mxu0 0.0
    %505 = vmatpush.msra.mxu0 0.0
    %506 = vmatpush.msra.mxu0 0.0
    %507 = vmatpush.msra.mxu0 0.0
    %508 = vmatpush.msra.mxu0 0.0
    %509 = vmatpush.msra.mxu0 0.0
    %510 = vmatpush.msra.mxu0 0.0
    %511 = vmatpush.msra.mxu0 %v185
    %512 = vmatpush.msra.mxu0 %v184
    %513 = vmatpush.msra.mxu0 %v183
    %514 = vmatpush.msra.mxu0 %v182
    %515 = vmatmul.f32.gmra.mxu0 %v497
    %v516 = vpop.f32.mrf.mxu0
    %v517 = vadd.f32 0.0, %v516
    %518 = vdwg.mxu0
    %v520 = vrot.slane %v175, 2
    %v522 = vadd.f32 %v520, %v517
    %v523 = vxor.u32 %v522, 2147483648
    %v524 = vmul.f32 %v523, 1.442695
    %v525 = vpow.pop %v524
    %v526 = vadd.f32 %v525, 1.0
    %v527 = vrcp.pop %v526
    %v528 = vmul.f32 %v526, %v527
    %v529 = vsub.f32 1.0, %v528
    %v530 = vmul.f32 %v527, %v529
    %v531 = vadd.f32 %v527, %v530
    %vm532 = vweird.f32 %v526
    %vm533 = vweird.f32 %v527
    %vm534 = vmor %vm532, %vm533
    %v535 = vsel %vm534, %v527, %v531
    %v536 = vand.u32 2147483647, %v526
    %vm537 = vcmp.eq.f32.partialorder %v536, 8.507059e+37
    %v538 = vand.u32 %v526, 2147483648
    %v539 = vor.u32 1.1754944e-38, %v538
    %v540 = vsel %vm537, %v539, %v535
    %v541 = vmul.f32 1.0, %v540
    %v542 = vtanh.pop %v522
    %v543 = vmul.f32 %v541, %v319
    %545 = vrot.lane.b32.xlu0 %v542, 64
    %v546 = vpop.permute.xlu0 %545
    %v548 = vmul.f32 %v541, %v546
    %550 = vrot.lane.b32.xlu0 %v548, 32
    %v551 = vpop.permute.xlu0 %550
    %v553 = vadd.f32 %v543, %v551
    %v554 = vtanh.pop %v553
    %556 = vrot.lane.b32.xlu0 %v554, 64
    %v557 = vpop.permute.xlu0 %556
    %v559 = vmul.f32 %v541, %v557
    %561 = vst [vmem:[#allocation1] ss:$4 sm:$0xff] %v492
    %v562 = vld.sshfl [vmem:[#allocation1] sm:$0xff pattern:$0x73625140]
    %563 = vrot.lane.b32.xlu0 %v562, 32
    %v564 = vpop.permute.xlu0 %563
    %v565 = vsel %vm203, %v564, 0
    %567 = vmatpush.msra.mxu0 0.0
    %568 = vmatpush.msra.mxu0 0.0
    %569 = vmatpush.msra.mxu0 0.0
    %570 = vmatpush.msra.mxu0 0.0
    %571 = vmatpush.msra.mxu0 0.0
    %572 = vmatpush.msra.mxu0 0.0
    %573 = vmatpush.msra.mxu0 0.0
    %574 = vmatpush.msra.mxu0 0.0
    %575 = vmatpush.msra.mxu0 0.0
    %576 = vmatpush.msra.mxu0 0.0
    %577 = vmatpush.msra.mxu0 0.0
    %578 = vmatpush.msra.mxu0 0.0
    %579 = vmatpush.msra.mxu0 %v192
    %580 = vmatpush.msra.mxu0 %v190
    %581 = vmatpush.msra.mxu0 %v188
    %582 = vmatpush.msra.mxu0 %v186
    %583 = vmatmul.f32.gmra.mxu0 %v565
    %v584 = vpop.f32.mrf.mxu0
    %v585 = vadd.f32 0.0, %v584
    %586 = vdwg.mxu0
    %587 = vmatpush.msra.mxu0 0.0
    %588 = vmatpush.msra.mxu0 0.0
    %589 = vmatpush.msra.mxu0 0.0
    %590 = vmatpush.msra.mxu0 0.0
    %591 = vmatpush.msra.mxu0 0.0
    %592 = vmatpush.msra.mxu0 0.0
    %593 = vmatpush.msra.mxu0 0.0
    %594 = vmatpush.msra.mxu0 0.0
    %595 = vmatpush.msra.mxu0 0.0
    %596 = vmatpush.msra.mxu0 0.0
    %597 = vmatpush.msra.mxu0 0.0
    %598 = vmatpush.msra.mxu0 0.0
    %599 = vmatpush.msra.mxu0 %v193
    %600 = vmatpush.msra.mxu0 %v191
    %601 = vmatpush.msra.mxu0 %v189
    %602 = vmatpush.msra.mxu0 %v187
    %603 = vmatmul.f32.gmra.mxu0 %v565
    %v604 = vpop.f32.mrf.mxu0
    %v605 = vadd.f32 0.0, %v604
    %606 = vdwg.mxu0
    %v607 = vadd.f32 %v374, %v585
    %v608 = vadd.f32 %v375, %v605
    %610 = vst [vmem:[#allocation1] ss:$4 sm:$0xff] %v559
    %v611 = vld.sshfl [vmem:[#allocation1] sm:$0xff pattern:$0x73625140]
    %612 = vrot.lane.b32.xlu0 %v611, 32
    %v613 = vpop.permute.xlu0 %612
    %v614 = vsel %vm203, %v613, 0
    %616 = vmatpush.msra.mxu0 0.0
    %617 = vmatpush.msra.mxu0 0.0
    %618 = vmatpush.msra.mxu0 0.0
    %619 = vmatpush.msra.mxu0 0.0
    %620 = vmatpush.msra.mxu0 0.0
    %621 = vmatpush.msra.mxu0 0.0
    %622 = vmatpush.msra.mxu0 0.0
    %623 = vmatpush.msra.mxu0 0.0
    %624 = vmatpush.msra.mxu0 0.0
    %625 = vmatpush.msra.mxu0 0.0
    %626 = vmatpush.msra.mxu0 0.0
    %627 = vmatpush.msra.mxu0 0.0
    %628 = vmatpush.msra.mxu0 %v200
    %629 = vmatpush.msra.mxu0 %v198
    %630 = vmatpush.msra.mxu0 %v196
    %631 = vmatpush.msra.mxu0 %v194
    %632 = vmatmul.f32.gmra.mxu0 %v614
    %v633 = vpop.f32.mrf.mxu0
    %v634 = vadd.f32 0.0, %v633
    %635 = vdwg.mxu0
    %636 = vmatpush.msra.mxu0 0.0
    %637 = vmatpush.msra.mxu0 0.0
    %638 = vmatpush.msra.mxu0 0.0
    %639 = vmatpush.msra.mxu0 0.0
    %640 = vmatpush.msra.mxu0 0.0
    %641 = vmatpush.msra.mxu0 0.0
    %642 = vmatpush.msra.mxu0 0.0
    %643 = vmatpush.msra.mxu0 0.0
    %644 = vmatpush.msra.mxu0 0.0
    %645 = vmatpush.msra.mxu0 0.0
    %646 = vmatpush.msra.mxu0 0.0
    %647 = vmatpush.msra.mxu0 0.0
    %648 = vmatpush.msra.mxu0 %v201
    %649 = vmatpush.msra.mxu0 %v199
    %650 = vmatpush.msra.mxu0 %v197
    %651 = vmatpush.msra.mxu0 %v195
    %652 = vmatmul.f32.gmra.mxu0 %v614
    %v653 = vpop.f32.mrf.mxu0
    %v654 = vadd.f32 0.0, %v653
    %655 = vdwg.mxu0
    %v656 = vadd.f32 %v374, %v634
    %v657 = vadd.f32 %v375, %v654
    %658 = vst [vmem:[#allocation1] ss:$4 sm:$0xff] %v492
    %v659 = vld.sshfl [vmem:[#allocation1] sm:$0xff pattern:$0x73625140]
    %660 = vrot.lane.b32.xlu0 %v659, 32
    %v661 = vpop.permute.xlu0 %660
    %v662 = vsel %vm203, %v661, 0
    %664 = vmatpush.msra.mxu0 0.0
    %665 = vmatpush.msra.mxu0 0.0
    %666 = vmatpush.msra.mxu0 0.0
    %667 = vmatpush.msra.mxu0 0.0
    %668 = vmatpush.msra.mxu0 0.0
    %669 = vmatpush.msra.mxu0 0.0
    %670 = vmatpush.msra.mxu0 0.0
    %671 = vmatpush.msra.mxu0 0.0
    %672 = vmatpush.msra.mxu0 0.0
    %673 = vmatpush.msra.mxu0 0.0
    %674 = vmatpush.msra.mxu0 0.0
    %675 = vmatpush.msra.mxu0 0.0
    %676 = vmatpush.msra.mxu0 %v181
    %677 = vmatpush.msra.mxu0 %v180
    %678 = vmatpush.msra.mxu0 %v179
    %679 = vmatpush.msra.mxu0 %v178
    %680 = vmatmul.f32.gmra.mxu0 %v662
    %v681 = vpop.f32.mrf.mxu0
    %v682 = vadd.f32 0.0, %v681
    %683 = vdwg.mxu0
    %v684 = vadd.f32 %v167, %v682
    %v685 = vxor.u32 %v684, 2147483648
    %v686 = vmul.f32 %v685, 1.442695
    %v687 = vpow.pop %v686
    %v688 = vadd.f32 %v687, 1.0
    %v689 = vrcp.pop %v688
    %v690 = vmul.f32 %v688, %v689
    %v691 = vsub.f32 1.0, %v690
    %v692 = vmul.f32 %v689, %v691
    %v693 = vadd.f32 %v689, %v692
    %vm694 = vweird.f32 %v688
    %vm695 = vweird.f32 %v689
    %vm696 = vmor %vm694, %vm695
    %v697 = vsel %vm696, %v689, %v693
    %v698 = vand.u32 2147483647, %v688
    %vm699 = vcmp.eq.f32.partialorder %v698, 8.507059e+37
    %v700 = vand.u32 %v688, 2147483648
    %v701 = vor.u32 1.1754944e-38, %v700
    %v702 = vsel %vm699, %v701, %v697
    %v703 = vmul.f32 1.0, %v702
    %v704 = vtanh.pop %v684
    %v705 = vmul.f32 %v703, %v486
    %707 = vrot.lane.b32.xlu0 %v704, 64
    %v708 = vpop.permute.xlu0 %707
    %v710 = vmul.f32 %v703, %v708
    %712 = vrot.lane.b32.xlu0 %v710, 32
    %v713 = vpop.permute.xlu0 %712
    %v715 = vadd.f32 %v705, %v713
    %v716 = vtanh.pop %v715
    %718 = vrot.lane.b32.xlu0 %v716, 64
    %v719 = vpop.permute.xlu0 %718
    %v721 = vmul.f32 %v703, %v719
    %722 = vst [vmem:[#allocation1] ss:$4 sm:$0xff] %v559
    %v723 = vld.sshfl [vmem:[#allocation1] sm:$0xff pattern:$0x73625140]
    %724 = vrot.lane.b32.xlu0 %v723, 32
    %v725 = vpop.permute.xlu0 %724
    %v726 = vsel %vm203, %v725, 0
    %728 = vmatpush.msra.mxu0 0.0
    %729 = vmatpush.msra.mxu0 0.0
    %730 = vmatpush.msra.mxu0 0.0
    %731 = vmatpush.msra.mxu0 0.0
    %732 = vmatpush.msra.mxu0 0.0
    %733 = vmatpush.msra.mxu0 0.0
    %734 = vmatpush.msra.mxu0 0.0
    %735 = vmatpush.msra.mxu0 0.0
    %736 = vmatpush.msra.mxu0 0.0
    %737 = vmatpush.msra.mxu0 0.0
    %738 = vmatpush.msra.mxu0 0.0
    %739 = vmatpush.msra.mxu0 0.0
    %740 = vmatpush.msra.mxu0 %v185
    %741 = vmatpush.msra.mxu0 %v184
    %742 = vmatpush.msra.mxu0 %v183
    %743 = vmatpush.msra.mxu0 %v182
    %744 = vmatmul.f32.gmra.mxu0 %v726
    %v745 = vpop.f32.mrf.mxu0
    %v746 = vadd.f32 0.0, %v745
    %747 = vdwg.mxu0
    %v749 = vrot.slane %v173, 2
    %v751 = vadd.f32 %v749, %v746
    %v752 = vxor.u32 %v751, 2147483648
    %v753 = vmul.f32 %v752, 1.442695
    %v754 = vpow.pop %v753
    %v755 = vadd.f32 %v754, 1.0
    %v756 = vrcp.pop %v755
    %v757 = vmul.f32 %v755, %v756
    %v758 = vsub.f32 1.0, %v757
    %v759 = vmul.f32 %v756, %v758
    %v760 = vadd.f32 %v756, %v759
    %vm761 = vweird.f32 %v755
    %vm762 = vweird.f32 %v756
    %vm763 = vmor %vm761, %vm762
    %v764 = vsel %vm763, %v756, %v760
    %v765 = vand.u32 2147483647, %v755
    %vm766 = vcmp.eq.f32.partialorder %v765, 8.507059e+37
    %v767 = vand.u32 %v755, 2147483648
    %v768 = vor.u32 1.1754944e-38, %v767
    %v769 = vsel %vm766, %v768, %v764
    %v770 = vmul.f32 1.0, %v769
    %v771 = vtanh.pop %v751
    %v772 = vmul.f32 %v770, %v553
    %774 = vrot.lane.b32.xlu0 %v771, 64
    %v775 = vpop.permute.xlu0 %774
    %v777 = vmul.f32 %v770, %v775
    %779 = vrot.lane.b32.xlu0 %v777, 32
    %v780 = vpop.permute.xlu0 %779
    %v782 = vadd.f32 %v772, %v780
    %v783 = vtanh.pop %v782
    %785 = vrot.lane.b32.xlu0 %v783, 64
    %v786 = vpop.permute.xlu0 %785
    %v788 = vmul.f32 %v770, %v786
    %790 = vst [vmem:[#allocation1] ss:$4 sm:$0xff] %v721
    %v791 = vld.sshfl [vmem:[#allocation1] sm:$0xff pattern:$0x73625140]
    %792 = vrot.lane.b32.xlu0 %v791, 32
    %v793 = vpop.permute.xlu0 %792
    %v794 = vsel %vm203, %v793, 0
    %796 = vmatpush.msra.mxu0 0.0
    %797 = vmatpush.msra.mxu0 0.0
    %798 = vmatpush.msra.mxu0 0.0
    %799 = vmatpush.msra.mxu0 0.0
    %800 = vmatpush.msra.mxu0 0.0
    %801 = vmatpush.msra.mxu0 0.0
    %802 = vmatpush.msra.mxu0 0.0
    %803 = vmatpush.msra.mxu0 0.0
    %804 = vmatpush.msra.mxu0 0.0
    %805 = vmatpush.msra.mxu0 0.0
    %806 = vmatpush.msra.mxu0 0.0
    %807 = vmatpush.msra.mxu0 0.0
    %808 = vmatpush.msra.mxu0 %v192
    %809 = vmatpush.msra.mxu0 %v190
    %810 = vmatpush.msra.mxu0 %v188
    %811 = vmatpush.msra.mxu0 %v186
    %812 = vmatmul.f32.gmra.mxu0 %v794
    %v813 = vpop.f32.mrf.mxu0
    %v814 = vadd.f32 0.0, %v813
    %815 = vdwg.mxu0
    %816 = vmatpush.msra.mxu0 0.0
    %817 = vmatpush.msra.mxu0 0.0
    %818 = vmatpush.msra.mxu0 0.0
    %819 = vmatpush.msra.mxu0 0.0
    %820 = vmatpush.msra.mxu0 0.0
    %821 = vmatpush.msra.mxu0 0.0
    %822 = vmatpush.msra.mxu0 0.0
    %823 = vmatpush.msra.mxu0 0.0
    %824 = vmatpush.msra.mxu0 0.0
    %825 = vmatpush.msra.mxu0 0.0
    %826 = vmatpush.msra.mxu0 0.0
    %827 = vmatpush.msra.mxu0 0.0
    %828 = vmatpush.msra.mxu0 %v193
    %829 = vmatpush.msra.mxu0 %v191
    %830 = vmatpush.msra.mxu0 %v189
    %831 = vmatpush.msra.mxu0 %v187
    %832 = vmatmul.f32.gmra.mxu0 %v794
    %v833 = vpop.f32.mrf.mxu0
    %v834 = vadd.f32 0.0, %v833
    %835 = vdwg.mxu0
    %v836 = vadd.f32 %v374, %v814
    %v837 = vadd.f32 %v375, %v834
    %839 = vst [vmem:[#allocation1] ss:$4 sm:$0xff] %v788
    %v840 = vld.sshfl [vmem:[#allocation1] sm:$0xff pattern:$0x73625140]
    %841 = vrot.lane.b32.xlu0 %v840, 32
    %v842 = vpop.permute.xlu0 %841
    %v843 = vsel %vm203, %v842, 0
    %845 = vmatpush.msra.mxu0 0.0
    %846 = vmatpush.msra.mxu0 0.0
    %847 = vmatpush.msra.mxu0 0.0
    %848 = vmatpush.msra.mxu0 0.0
    %849 = vmatpush.msra.mxu0 0.0
    %850 = vmatpush.msra.mxu0 0.0
    %851 = vmatpush.msra.mxu0 0.0
    %852 = vmatpush.msra.mxu0 0.0
    %853 = vmatpush.msra.mxu0 0.0
    %854 = vmatpush.msra.mxu0 0.0
    %855 = vmatpush.msra.mxu0 0.0
    %856 = vmatpush.msra.mxu0 0.0
    %857 = vmatpush.msra.mxu0 %v200
    %858 = vmatpush.msra.mxu0 %v198
    %859 = vmatpush.msra.mxu0 %v196
    %860 = vmatpush.msra.mxu0 %v194
    %861 = vmatmul.f32.gmra.mxu0 %v843
    %v862 = vpop.f32.mrf.mxu0
    %v863 = vadd.f32 0.0, %v862
    %864 = vdwg.mxu0
    %865 = vmatpush.msra.mxu0 0.0
    %866 = vmatpush.msra.mxu0 0.0
    %867 = vmatpush.msra.mxu0 0.0
    %868 = vmatpush.msra.mxu0 0.0
    %869 = vmatpush.msra.mxu0 0.0
    %870 = vmatpush.msra.mxu0 0.0
    %871 = vmatpush.msra.mxu0 0.0
    %872 = vmatpush.msra.mxu0 0.0
    %873 = vmatpush.msra.mxu0 0.0
    %874 = vmatpush.msra.mxu0 0.0
    %875 = vmatpush.msra.mxu0 0.0
    %876 = vmatpush.msra.mxu0 0.0
    %877 = vmatpush.msra.mxu0 %v201
    %878 = vmatpush.msra.mxu0 %v199
    %879 = vmatpush.msra.mxu0 %v197
    %880 = vmatpush.msra.mxu0 %v195
    %881 = vmatmul.f32.gmra.mxu0 %v843
    %v882 = vpop.f32.mrf.mxu0
    %v883 = vadd.f32 0.0, %v882
    %884 = vdwg.mxu0
    %v885 = vadd.f32 %v374, %v863
    %v886 = vadd.f32 %v375, %v883
    %887 = vst [vmem:[#allocation1] ss:$4 sm:$0xff] %v721
    %v888 = vld.sshfl [vmem:[#allocation1] sm:$0xff pattern:$0x73625140]
    %889 = vrot.lane.b32.xlu0 %v888, 32
    %v890 = vpop.permute.xlu0 %889
    %v891 = vsel %vm203, %v890, 0
    %893 = vmatpush.msra.mxu0 0.0
    %894 = vmatpush.msra.mxu0 0.0
    %895 = vmatpush.msra.mxu0 0.0
    %896 = vmatpush.msra.mxu0 0.0
    %897 = vmatpush.msra.mxu0 0.0
    %898 = vmatpush.msra.mxu0 0.0
    %899 = vmatpush.msra.mxu0 0.0
    %900 = vmatpush.msra.mxu0 0.0
    %901 = vmatpush.msra.mxu0 0.0
    %902 = vmatpush.msra.mxu0 0.0
    %903 = vmatpush.msra.mxu0 0.0
    %904 = vmatpush.msra.mxu0 0.0
    %905 = vmatpush.msra.mxu0 %v181
    %906 = vmatpush.msra.mxu0 %v180
    %907 = vmatpush.msra.mxu0 %v179
    %908 = vmatpush.msra.mxu0 %v178
    %909 = vmatmul.f32.gmra.mxu0 %v891
    %v910 = vpop.f32.mrf.mxu0
    %v911 = vadd.f32 0.0, %v910
    %912 = vdwg.mxu0
    %v913 = vadd.f32 %v169, %v911
    %v914 = vxor.u32 %v913, 2147483648
    %v915 = vmul.f32 %v914, 1.442695
    %v916 = vpow.pop %v915
    %v917 = vadd.f32 %v916, 1.0
    %v918 = vrcp.pop %v917
    %v919 = vmul.f32 %v917, %v918
    %v920 = vsub.f32 1.0, %v919
    %v921 = vmul.f32 %v918, %v920
    %v922 = vadd.f32 %v918, %v921
    %vm923 = vweird.f32 %v917
    %vm924 = vweird.f32 %v918
    %vm925 = vmor %vm923, %vm924
    %v926 = vsel %vm925, %v918, %v922
    %v927 = vand.u32 2147483647, %v917
    %vm928 = vcmp.eq.f32.partialorder %v927, 8.507059e+37
    %v929 = vand.u32 %v917, 2147483648
    %v930 = vor.u32 1.1754944e-38, %v929
    %v931 = vsel %vm928, %v930, %v926
    %v932 = vmul.f32 1.0, %v931
    %v933 = vtanh.pop %v913
    %v934 = vmul.f32 %v932, %v715
    %936 = vrot.lane.b32.xlu0 %v933, 64
    %v937 = vpop.permute.xlu0 %936
    %v939 = vmul.f32 %v932, %v937
    %941 = vrot.lane.b32.xlu0 %v939, 32
    %v942 = vpop.permute.xlu0 %941
    %v944 = vadd.f32 %v934, %v942
    %v945 = vtanh.pop %v944
    %947 = vrot.lane.b32.xlu0 %v945, 64
    %v948 = vpop.permute.xlu0 %947
    %v950 = vmul.f32 %v932, %v948
    %951 = vst [vmem:[#allocation1] ss:$4 sm:$0xff] %v788
    %v952 = vld.sshfl [vmem:[#allocation1] sm:$0xff pattern:$0x73625140]
    %953 = vrot.lane.b32.xlu0 %v952, 32
    %v954 = vpop.permute.xlu0 %953
    %v955 = vsel %vm203, %v954, 0
    %957 = vmatpush.msra.mxu0 0.0
    %958 = vmatpush.msra.mxu0 0.0
    %959 = vmatpush.msra.mxu0 0.0
    %960 = vmatpush.msra.mxu0 0.0
    %961 = vmatpush.msra.mxu0 0.0
    %962 = vmatpush.msra.mxu0 0.0
    %963 = vmatpush.msra.mxu0 0.0
    %964 = vmatpush.msra.mxu0 0.0
    %965 = vmatpush.msra.mxu0 0.0
    %966 = vmatpush.msra.mxu0 0.0
    %967 = vmatpush.msra.mxu0 0.0
    %968 = vmatpush.msra.mxu0 0.0
    %969 = vmatpush.msra.mxu0 %v185
    %970 = vmatpush.msra.mxu0 %v184
    %971 = vmatpush.msra.mxu0 %v183
    %972 = vmatpush.msra.mxu0 %v182
    %973 = vmatmul.f32.gmra.mxu0 %v955
    %v974 = vpop.f32.mrf.mxu0
    %v975 = vadd.f32 0.0, %v974
    %976 = vdwg.mxu0
    %v978 = vrot.slane %v171, 2
    %v980 = vadd.f32 %v978, %v975
    %v981 = vxor.u32 %v980, 2147483648
    %v982 = vmul.f32 %v981, 1.442695
    %v983 = vpow.pop %v982
    %v984 = vadd.f32 %v983, 1.0
    %v985 = vrcp.pop %v984
    %v986 = vmul.f32 %v984, %v985
    %v987 = vsub.f32 1.0, %v986
    %v988 = vmul.f32 %v985, %v987
    %v989 = vadd.f32 %v985, %v988
    %vm990 = vweird.f32 %v984
    %vm991 = vweird.f32 %v985
    %vm992 = vmor %vm990, %vm991
    %v993 = vsel %vm992, %v985, %v989
    %v994 = vand.u32 2147483647, %v984
    %vm995 = vcmp.eq.f32.partialorder %v994, 8.507059e+37
    %v996 = vand.u32 %v984, 2147483648
    %v997 = vor.u32 1.1754944e-38, %v996
    %v998 = vsel %vm995, %v997, %v993
    %v999 = vmul.f32 1.0, %v998
    %v1000 = vtanh.pop %v980
    %v1001 = vmul.f32 %v999, %v782
    %1003 = vrot.lane.b32.xlu0 %v1000, 64
    %v1004 = vpop.permute.xlu0 %1003
    %v1006 = vmul.f32 %v999, %v1004
    %1008 = vrot.lane.b32.xlu0 %v1006, 32
    %v1009 = vpop.permute.xlu0 %1008
    %v1011 = vadd.f32 %v1001, %v1009
    %v1012 = vtanh.pop %v1011
    %1014 = vrot.lane.b32.xlu0 %v1012, 64
    %v1015 = vpop.permute.xlu0 %1014
    %v1017 = vmul.f32 %v999, %v1015
    %1019 = vst [vmem:[#allocation1] ss:$4 sm:$0xff] %v950
    %v1020 = vld.sshfl [vmem:[#allocation1] sm:$0xff pattern:$0x73625140]
    %1021 = vrot.lane.b32.xlu0 %v1020, 32
    %v1022 = vpop.permute.xlu0 %1021
    %v1023 = vsel %vm203, %v1022, 0
    %1025 = vmatpush.msra.mxu0 0.0
    %1026 = vmatpush.msra.mxu0 0.0
    %1027 = vmatpush.msra.mxu0 0.0
    %1028 = vmatpush.msra.mxu0 0.0
    %1029 = vmatpush.msra.mxu0 0.0
    %1030 = vmatpush.msra.mxu0 0.0
    %1031 = vmatpush.msra.mxu0 0.0
    %1032 = vmatpush.msra.mxu0 0.0
    %1033 = vmatpush.msra.mxu0 0.0
    %1034 = vmatpush.msra.mxu0 0.0
    %1035 = vmatpush.msra.mxu0 0.0
    %1036 = vmatpush.msra.mxu0 0.0
    %1037 = vmatpush.msra.mxu0 %v192
    %1038 = vmatpush.msra.mxu0 %v190
    %1039 = vmatpush.msra.mxu0 %v188
    %1040 = vmatpush.msra.mxu0 %v186
    %1041 = vmatmul.f32.gmra.mxu0 %v1023
    %v1042 = vpop.f32.mrf.mxu0
    %v1043 = vadd.f32 0.0, %v1042
    %1044 = vdwg.mxu0
    %1045 = vmatpush.msra.mxu0 0.0
    %1046 = vmatpush.msra.mxu0 0.0
    %1047 = vmatpush.msra.mxu0 0.0
    %1048 = vmatpush.msra.mxu0 0.0
    %1049 = vmatpush.msra.mxu0 0.0
    %1050 = vmatpush.msra.mxu0 0.0
    %1051 = vmatpush.msra.mxu0 0.0
    %1052 = vmatpush.msra.mxu0 0.0
    %1053 = vmatpush.msra.mxu0 0.0
    %1054 = vmatpush.msra.mxu0 0.0
    %1055 = vmatpush.msra.mxu0 0.0
    %1056 = vmatpush.msra.mxu0 0.0
    %1057 = vmatpush.msra.mxu0 %v193
    %1058 = vmatpush.msra.mxu0 %v191
    %1059 = vmatpush.msra.mxu0 %v189
    %1060 = vmatpush.msra.mxu0 %v187
    %1061 = vmatmul.f32.gmra.mxu0 %v1023
    %v1062 = vpop.f32.mrf.mxu0
    %v1063 = vadd.f32 0.0, %v1062
    %1064 = vdwg.mxu0
    %v1065 = vadd.f32 %v374, %v1043
    %v1066 = vadd.f32 %v375, %v1063
    %1068 = vst [vmem:[#allocation1] ss:$4 sm:$0xff] %v1017
    %v1069 = vld.sshfl [vmem:[#allocation1] sm:$0xff pattern:$0x73625140]
    %1070 = vrot.lane.b32.xlu0 %v1069, 32
    %v1071 = vpop.permute.xlu0 %1070
    %v1072 = vsel %vm203, %v1071, 0
    %1074 = vmatpush.msra.mxu0 0.0
    %1075 = vmatpush.msra.mxu0 0.0
    %1076 = vmatpush.msra.mxu0 0.0
    %1077 = vmatpush.msra.mxu0 0.0
    %1078 = vmatpush.msra.mxu0 0.0
    %1079 = vmatpush.msra.mxu0 0.0
    %1080 = vmatpush.msra.mxu0 0.0
    %1081 = vmatpush.msra.mxu0 0.0
    %1082 = vmatpush.msra.mxu0 0.0
    %1083 = vmatpush.msra.mxu0 0.0
    %1084 = vmatpush.msra.mxu0 0.0
    %1085 = vmatpush.msra.mxu0 0.0
    %1086 = vmatpush.msra.mxu0 %v200
    %1087 = vmatpush.msra.mxu0 %v198
    %1088 = vmatpush.msra.mxu0 %v196
    %1089 = vmatpush.msra.mxu0 %v194
    %1090 = vmatmul.f32.gmra.mxu0 %v1072
    %v1091 = vpop.f32.mrf.mxu0
    %v1092 = vadd.f32 0.0, %v1091
    %1093 = vdwg.mxu0
    %1094 = vmatpush.msra.mxu0 0.0
    %1095 = vmatpush.msra.mxu0 0.0
    %1096 = vmatpush.msra.mxu0 0.0
    %1097 = vmatpush.msra.mxu0 0.0
    %1098 = vmatpush.msra.mxu0 0.0
    %1099 = vmatpush.msra.mxu0 0.0
    %1100 = vmatpush.msra.mxu0 0.0
    %1101 = vmatpush.msra.mxu0 0.0
    %1102 = vmatpush.msra.mxu0 0.0
    %1103 = vmatpush.msra.mxu0 0.0
    %1104 = vmatpush.msra.mxu0 0.0
    %1105 = vmatpush.msra.mxu0 0.0
    %1106 = vmatpush.msra.mxu0 %v201
    %1107 = vmatpush.msra.mxu0 %v199
    %1108 = vmatpush.msra.mxu0 %v197
    %1109 = vmatpush.msra.mxu0 %v195
    %1110 = vmatmul.f32.gmra.mxu0 %v1072
    %v1111 = vpop.f32.mrf.mxu0
    %v1112 = vadd.f32 0.0, %v1111
    %1113 = vdwg.mxu0
    %v1114 = vadd.f32 %v374, %v1092
    %v1115 = vadd.f32 %v375, %v1112
    %1116 = vst [vmem:[#allocation1] ss:$4 sm:$0xff] %v950
    %v1117 = vld.sshfl [vmem:[#allocation1] sm:$0xff pattern:$0x73625140]
    %1118 = vrot.lane.b32.xlu0 %v1117, 32
    %v1119 = vpop.permute.xlu0 %1118
    %v1120 = vsel %vm203, %v1119, 0
    %1122 = vmatpush.msra.mxu0 0.0
    %1123 = vmatpush.msra.mxu0 0.0
    %1124 = vmatpush.msra.mxu0 0.0
    %1125 = vmatpush.msra.mxu0 0.0
    %1126 = vmatpush.msra.mxu0 0.0
    %1127 = vmatpush.msra.mxu0 0.0
    %1128 = vmatpush.msra.mxu0 0.0
    %1129 = vmatpush.msra.mxu0 0.0
    %1130 = vmatpush.msra.mxu0 0.0
    %1131 = vmatpush.msra.mxu0 0.0
    %1132 = vmatpush.msra.mxu0 0.0
    %1133 = vmatpush.msra.mxu0 0.0
    %1134 = vmatpush.msra.mxu0 %v181
    %1135 = vmatpush.msra.mxu0 %v180
    %1136 = vmatpush.msra.mxu0 %v179
    %1137 = vmatpush.msra.mxu0 %v178
    %1138 = vmatmul.f32.gmra.mxu0 %v1120
    %v1139 = vpop.f32.mrf.mxu0
    %v1140 = vadd.f32 0.0, %v1139
    %1141 = vdwg.mxu0
    %v1142 = vadd.f32 %v171, %v1140
    %v1143 = vxor.u32 %v1142, 2147483648
    %v1144 = vmul.f32 %v1143, 1.442695
    %v1145 = vpow.pop %v1144
    %v1146 = vadd.f32 %v1145, 1.0
    %v1147 = vrcp.pop %v1146
    %v1148 = vmul.f32 %v1146, %v1147
    %v1149 = vsub.f32 1.0, %v1148
    %v1150 = vmul.f32 %v1147, %v1149
    %v1151 = vadd.f32 %v1147, %v1150
    %vm1152 = vweird.f32 %v1146
    %vm1153 = vweird.f32 %v1147
    %vm1154 = vmor %vm1152, %vm1153
    %v1155 = vsel %vm1154, %v1147, %v1151
    %v1156 = vand.u32 2147483647, %v1146
    %vm1157 = vcmp.eq.f32.partialorder %v1156, 8.507059e+37
    %v1158 = vand.u32 %v1146, 2147483648
    %v1159 = vor.u32 1.1754944e-38, %v1158
    %v1160 = vsel %vm1157, %v1159, %v1155
    %v1161 = vmul.f32 1.0, %v1160
    %v1162 = vtanh.pop %v1142
    %v1163 = vmul.f32 %v1161, %v944
    %1165 = vrot.lane.b32.xlu0 %v1162, 64
    %v1166 = vpop.permute.xlu0 %1165
    %v1168 = vmul.f32 %v1161, %v1166
    %1170 = vrot.lane.b32.xlu0 %v1168, 32
    %v1171 = vpop.permute.xlu0 %1170
    %v1173 = vadd.f32 %v1163, %v1171
    %v1174 = vtanh.pop %v1173
    %1176 = vrot.lane.b32.xlu0 %v1174, 64
    %v1177 = vpop.permute.xlu0 %1176
    %v1179 = vmul.f32 %v1161, %v1177
    %1180 = vst [vmem:[#allocation1] ss:$4 sm:$0xff] %v1017
    %v1181 = vld.sshfl [vmem:[#allocation1] sm:$0xff pattern:$0x73625140]
    %1182 = vrot.lane.b32.xlu0 %v1181, 32
    %v1183 = vpop.permute.xlu0 %1182
    %v1184 = vsel %vm203, %v1183, 0
    %1186 = vmatpush.msra.mxu0 0.0
    %1187 = vmatpush.msra.mxu0 0.0
    %1188 = vmatpush.msra.mxu0 0.0
    %1189 = vmatpush.msra.mxu0 0.0
    %1190 = vmatpush.msra.mxu0 0.0
    %1191 = vmatpush.msra.mxu0 0.0
    %1192 = vmatpush.msra.mxu0 0.0
    %1193 = vmatpush.msra.mxu0 0.0
    %1194 = vmatpush.msra.mxu0 0.0
    %1195 = vmatpush.msra.mxu0 0.0
    %1196 = vmatpush.msra.mxu0 0.0
    %1197 = vmatpush.msra.mxu0 0.0
    %1198 = vmatpush.msra.mxu0 %v185
    %1199 = vmatpush.msra.mxu0 %v184
    %1200 = vmatpush.msra.mxu0 %v183
    %1201 = vmatpush.msra.mxu0 %v182
    %1202 = vmatmul.f32.gmra.mxu0 %v1184
    %v1203 = vpop.f32.mrf.mxu0
    %v1204 = vadd.f32 0.0, %v1203
    %1205 = vdwg.mxu0
    %v1207 = vrot.slane %v169, 2
    %v1209 = vadd.f32 %v1207, %v1204
    %v1210 = vxor.u32 %v1209, 2147483648
    %v1211 = vmul.f32 %v1210, 1.442695
    %v1212 = vpow.pop %v1211
    %v1213 = vadd.f32 %v1212, 1.0
    %v1214 = vrcp.pop %v1213
    %v1215 = vmul.f32 %v1213, %v1214
    %v1216 = vsub.f32 1.0, %v1215
    %v1217 = vmul.f32 %v1214, %v1216
    %v1218 = vadd.f32 %v1214, %v1217
    %vm1219 = vweird.f32 %v1213
    %vm1220 = vweird.f32 %v1214
    %vm1221 = vmor %vm1219, %vm1220
    %v1222 = vsel %vm1221, %v1214, %v1218
    %v1223 = vand.u32 2147483647, %v1213
    %vm1224 = vcmp.eq.f32.partialorder %v1223, 8.507059e+37
    %v1225 = vand.u32 %v1213, 2147483648
    %v1226 = vor.u32 1.1754944e-38, %v1225
    %v1227 = vsel %vm1224, %v1226, %v1222
    %v1228 = vmul.f32 1.0, %v1227
    %v1229 = vtanh.pop %v1209
    %v1230 = vmul.f32 %v1228, %v1011
    %1232 = vrot.lane.b32.xlu0 %v1229, 64
    %v1233 = vpop.permute.xlu0 %1232
    %v1235 = vmul.f32 %v1228, %v1233
    %1237 = vrot.lane.b32.xlu0 %v1235, 32
    %v1238 = vpop.permute.xlu0 %1237
    %v1240 = vadd.f32 %v1230, %v1238
    %v1241 = vtanh.pop %v1240
    %1243 = vrot.lane.b32.xlu0 %v1241, 64
    %v1244 = vpop.permute.xlu0 %1243
    %v1246 = vmul.f32 %v1228, %v1244
    %1248 = vst [vmem:[#allocation1] ss:$4 sm:$0xff] %v1179
    %v1249 = vld.sshfl [vmem:[#allocation1] sm:$0xff pattern:$0x73625140]
    %1250 = vrot.lane.b32.xlu0 %v1249, 32
    %v1251 = vpop.permute.xlu0 %1250
    %v1252 = vsel %vm203, %v1251, 0
    %1254 = vmatpush.msra.mxu0 0.0
    %1255 = vmatpush.msra.mxu0 0.0
    %1256 = vmatpush.msra.mxu0 0.0
    %1257 = vmatpush.msra.mxu0 0.0
    %1258 = vmatpush.msra.mxu0 0.0
    %1259 = vmatpush.msra.mxu0 0.0
    %1260 = vmatpush.msra.mxu0 0.0
    %1261 = vmatpush.msra.mxu0 0.0
    %1262 = vmatpush.msra.mxu0 0.0
    %1263 = vmatpush.msra.mxu0 0.0
    %1264 = vmatpush.msra.mxu0 0.0
    %1265 = vmatpush.msra.mxu0 0.0
    %1266 = vmatpush.msra.mxu0 %v192
    %1267 = vmatpush.msra.mxu0 %v190
    %1268 = vmatpush.msra.mxu0 %v188
    %1269 = vmatpush.msra.mxu0 %v186
    %1270 = vmatmul.f32.gmra.mxu0 %v1252
    %v1271 = vpop.f32.mrf.mxu0
    %v1272 = vadd.f32 0.0, %v1271
    %1273 = vdwg.mxu0
    %1274 = vmatpush.msra.mxu0 0.0
    %1275 = vmatpush.msra.mxu0 0.0
    %1276 = vmatpush.msra.mxu0 0.0
    %1277 = vmatpush.msra.mxu0 0.0
    %1278 = vmatpush.msra.mxu0 0.0
    %1279 = vmatpush.msra.mxu0 0.0
    %1280 = vmatpush.msra.mxu0 0.0
    %1281 = vmatpush.msra.mxu0 0.0
    %1282 = vmatpush.msra.mxu0 0.0
    %1283 = vmatpush.msra.mxu0 0.0
    %1284 = vmatpush.msra.mxu0 0.0
    %1285 = vmatpush.msra.mxu0 0.0
    %1286 = vmatpush.msra.mxu0 %v193
    %1287 = vmatpush.msra.mxu0 %v191
    %1288 = vmatpush.msra.mxu0 %v189
    %1289 = vmatpush.msra.mxu0 %v187
    %1290 = vmatmul.f32.gmra.mxu0 %v1252
    %v1291 = vpop.f32.mrf.mxu0
    %v1292 = vadd.f32 0.0, %v1291
    %1293 = vdwg.mxu0
    %v1294 = vadd.f32 %v1114, %v1272
    %v1295 = vadd.f32 %v1115, %v1292
    %1297 = vst [vmem:[#allocation1] ss:$4 sm:$0xff] %v1246
    %v1298 = vld.sshfl [vmem:[#allocation1] sm:$0xff pattern:$0x73625140]
    %1299 = vrot.lane.b32.xlu0 %v1298, 32
    %v1300 = vpop.permute.xlu0 %1299
    %v1301 = vsel %vm203, %v1300, 0
    %1303 = vmatpush.msra.mxu0 0.0
    %1304 = vmatpush.msra.mxu0 0.0
    %1305 = vmatpush.msra.mxu0 0.0
    %1306 = vmatpush.msra.mxu0 0.0
    %1307 = vmatpush.msra.mxu0 0.0
    %1308 = vmatpush.msra.mxu0 0.0
    %1309 = vmatpush.msra.mxu0 0.0
    %1310 = vmatpush.msra.mxu0 0.0
    %1311 = vmatpush.msra.mxu0 0.0
    %1312 = vmatpush.msra.mxu0 0.0
    %1313 = vmatpush.msra.mxu0 0.0
    %1314 = vmatpush.msra.mxu0 0.0
    %1315 = vmatpush.msra.mxu0 %v200
    %1316 = vmatpush.msra.mxu0 %v198
    %1317 = vmatpush.msra.mxu0 %v196
    %1318 = vmatpush.msra.mxu0 %v194
    %1319 = vmatmul.f32.gmra.mxu0 %v1301
    %v1320 = vpop.f32.mrf.mxu0
    %v1321 = vadd.f32 0.0, %v1320
    %1322 = vdwg.mxu0
    %1323 = vmatpush.msra.mxu0 0.0
    %1324 = vmatpush.msra.mxu0 0.0
    %1325 = vmatpush.msra.mxu0 0.0
    %1326 = vmatpush.msra.mxu0 0.0
    %1327 = vmatpush.msra.mxu0 0.0
    %1328 = vmatpush.msra.mxu0 0.0
    %1329 = vmatpush.msra.mxu0 0.0
    %1330 = vmatpush.msra.mxu0 0.0
    %1331 = vmatpush.msra.mxu0 0.0
    %1332 = vmatpush.msra.mxu0 0.0
    %1333 = vmatpush.msra.mxu0 0.0
    %1334 = vmatpush.msra.mxu0 0.0
    %1335 = vmatpush.msra.mxu0 %v201
    %1336 = vmatpush.msra.mxu0 %v199
    %1337 = vmatpush.msra.mxu0 %v197
    %1338 = vmatpush.msra.mxu0 %v195
    %1339 = vmatmul.f32.gmra.mxu0 %v1301
    %v1340 = vpop.f32.mrf.mxu0
    %v1341 = vadd.f32 0.0, %v1340
    %1342 = vdwg.mxu0
    %v1343 = vadd.f32 %v1065, %v1321
    %v1344 = vadd.f32 %v1066, %v1341
    %1345 = vst [vmem:[#allocation1] ss:$4 sm:$0xff] %v1179
    %v1346 = vld.sshfl [vmem:[#allocation1] sm:$0xff pattern:$0x73625140]
    %1347 = vrot.lane.b32.xlu0 %v1346, 32
    %v1348 = vpop.permute.xlu0 %1347
    %v1349 = vsel %vm203, %v1348, 0
    %1351 = vmatpush.msra.mxu0 0.0
    %1352 = vmatpush.msra.mxu0 0.0
    %1353 = vmatpush.msra.mxu0 0.0
    %1354 = vmatpush.msra.mxu0 0.0
    %1355 = vmatpush.msra.mxu0 0.0
    %1356 = vmatpush.msra.mxu0 0.0
    %1357 = vmatpush.msra.mxu0 0.0
    %1358 = vmatpush.msra.mxu0 0.0
    %1359 = vmatpush.msra.mxu0 0.0
    %1360 = vmatpush.msra.mxu0 0.0
    %1361 = vmatpush.msra.mxu0 0.0
    %1362 = vmatpush.msra.mxu0 0.0
    %1363 = vmatpush.msra.mxu0 %v181
    %1364 = vmatpush.msra.mxu0 %v180
    %1365 = vmatpush.msra.mxu0 %v179
    %1366 = vmatpush.msra.mxu0 %v178
    %1367 = vmatmul.f32.gmra.mxu0 %v1349
    %v1368 = vpop.f32.mrf.mxu0
    %v1369 = vadd.f32 0.0, %v1368
    %1370 = vdwg.mxu0
    %v1371 = vadd.f32 %v173, %v1369
    %v1372 = vxor.u32 %v1371, 2147483648
    %v1373 = vmul.f32 %v1372, 1.442695
    %v1374 = vpow.pop %v1373
    %v1375 = vadd.f32 %v1374, 1.0
    %v1376 = vrcp.pop %v1375
    %v1377 = vmul.f32 %v1375, %v1376
    %v1378 = vsub.f32 1.0, %v1377
    %v1379 = vmul.f32 %v1376, %v1378
    %v1380 = vadd.f32 %v1376, %v1379
    %vm1381 = vweird.f32 %v1375
    %vm1382 = vweird.f32 %v1376
    %vm1383 = vmor %vm1381, %vm1382
    %v1384 = vsel %vm1383, %v1376, %v1380
    %v1385 = vand.u32 2147483647, %v1375
    %vm1386 = vcmp.eq.f32.partialorder %v1385, 8.507059e+37
    %v1387 = vand.u32 %v1375, 2147483648
    %v1388 = vor.u32 1.1754944e-38, %v1387
    %v1389 = vsel %vm1386, %v1388, %v1384
    %v1390 = vmul.f32 1.0, %v1389
    %v1391 = vtanh.pop %v1371
    %v1392 = vmul.f32 %v1390, %v1173
    %1394 = vrot.lane.b32.xlu0 %v1391, 64
    %v1395 = vpop.permute.xlu0 %1394
    %v1397 = vmul.f32 %v1390, %v1395
    %1399 = vrot.lane.b32.xlu0 %v1397, 32
    %v1400 = vpop.permute.xlu0 %1399
    %v1402 = vadd.f32 %v1392, %v1400
    %v1403 = vtanh.pop %v1402
    %1405 = vrot.lane.b32.xlu0 %v1403, 64
    %v1406 = vpop.permute.xlu0 %1405
    %v1408 = vmul.f32 %v1390, %v1406
    %1409 = vst [vmem:[#allocation1] ss:$4 sm:$0xff] %v1246
    %v1410 = vld.sshfl [vmem:[#allocation1] sm:$0xff pattern:$0x73625140]
    %1411 = vrot.lane.b32.xlu0 %v1410, 32
    %v1412 = vpop.permute.xlu0 %1411
    %v1413 = vsel %vm203, %v1412, 0
    %1415 = vmatpush.msra.mxu0 0.0
    %1416 = vmatpush.msra.mxu0 0.0
    %1417 = vmatpush.msra.mxu0 0.0
    %1418 = vmatpush.msra.mxu0 0.0
    %1419 = vmatpush.msra.mxu0 0.0
    %1420 = vmatpush.msra.mxu0 0.0
    %1421 = vmatpush.msra.mxu0 0.0
    %1422 = vmatpush.msra.mxu0 0.0
    %1423 = vmatpush.msra.mxu0 0.0
    %1424 = vmatpush.msra.mxu0 0.0
    %1425 = vmatpush.msra.mxu0 0.0
    %1426 = vmatpush.msra.mxu0 0.0
    %1427 = vmatpush.msra.mxu0 %v185
    %1428 = vmatpush.msra.mxu0 %v184
    %1429 = vmatpush.msra.mxu0 %v183
    %1430 = vmatpush.msra.mxu0 %v182
    %1431 = vmatmul.f32.gmra.mxu0 %v1413
    %v1432 = vpop.f32.mrf.mxu0
    %v1433 = vadd.f32 0.0, %v1432
    %1434 = vdwg.mxu0
    %v1436 = vrot.slane %v167, 2
    %v1438 = vadd.f32 %v1436, %v1433
    %v1439 = vxor.u32 %v1438, 2147483648
    %v1440 = vmul.f32 %v1439, 1.442695
    %v1441 = vpow.pop %v1440
    %v1442 = vadd.f32 %v1441, 1.0
    %v1443 = vrcp.pop %v1442
    %v1444 = vmul.f32 %v1442, %v1443
    %v1445 = vsub.f32 1.0, %v1444
    %v1446 = vmul.f32 %v1443, %v1445
    %v1447 = vadd.f32 %v1443, %v1446
    %vm1448 = vweird.f32 %v1442
    %vm1449 = vweird.f32 %v1443
    %vm1450 = vmor %vm1448, %vm1449
    %v1451 = vsel %vm1450, %v1443, %v1447
    %v1452 = vand.u32 2147483647, %v1442
    %vm1453 = vcmp.eq.f32.partialorder %v1452, 8.507059e+37
    %v1454 = vand.u32 %v1442, 2147483648
    %v1455 = vor.u32 1.1754944e-38, %v1454
    %v1456 = vsel %vm1453, %v1455, %v1451
    %v1457 = vmul.f32 1.0, %v1456
    %v1458 = vtanh.pop %v1438
    %v1459 = vmul.f32 %v1457, %v1240
    %1461 = vrot.lane.b32.xlu0 %v1458, 64
    %v1462 = vpop.permute.xlu0 %1461
    %v1464 = vmul.f32 %v1457, %v1462
    %1466 = vrot.lane.b32.xlu0 %v1464, 32
    %v1467 = vpop.permute.xlu0 %1466
    %v1469 = vadd.f32 %v1459, %v1467
    %v1470 = vtanh.pop %v1469
    %1472 = vrot.lane.b32.xlu0 %v1470, 64
    %v1473 = vpop.permute.xlu0 %1472
    %v1475 = vmul.f32 %v1457, %v1473
    %1477 = vst [vmem:[#allocation1] ss:$4 sm:$0xff] %v1408
    %v1478 = vld.sshfl [vmem:[#allocation1] sm:$0xff pattern:$0x73625140]
    %1479 = vrot.lane.b32.xlu0 %v1478, 32
    %v1480 = vpop.permute.xlu0 %1479
    %v1481 = vsel %vm203, %v1480, 0
    %1483 = vmatpush.msra.mxu0 0.0
    %1484 = vmatpush.msra.mxu0 0.0
    %1485 = vmatpush.msra.mxu0 0.0
    %1486 = vmatpush.msra.mxu0 0.0
    %1487 = vmatpush.msra.mxu0 0.0
    %1488 = vmatpush.msra.mxu0 0.0
    %1489 = vmatpush.msra.mxu0 0.0
    %1490 = vmatpush.msra.mxu0 0.0
    %1491 = vmatpush.msra.mxu0 0.0
    %1492 = vmatpush.msra.mxu0 0.0
    %1493 = vmatpush.msra.mxu0 0.0
    %1494 = vmatpush.msra.mxu0 0.0
    %1495 = vmatpush.msra.mxu0 %v192
    %1496 = vmatpush.msra.mxu0 %v190
    %1497 = vmatpush.msra.mxu0 %v188
    %1498 = vmatpush.msra.mxu0 %v186
    %1499 = vmatmul.f32.gmra.mxu0 %v1481
    %v1500 = vpop.f32.mrf.mxu0
    %v1501 = vadd.f32 0.0, %v1500
    %1502 = vdwg.mxu0
    %1503 = vmatpush.msra.mxu0 0.0
    %1504 = vmatpush.msra.mxu0 0.0
    %1505 = vmatpush.msra.mxu0 0.0
    %1506 = vmatpush.msra.mxu0 0.0
    %1507 = vmatpush.msra.mxu0 0.0
    %1508 = vmatpush.msra.mxu0 0.0
    %1509 = vmatpush.msra.mxu0 0.0
    %1510 = vmatpush.msra.mxu0 0.0
    %1511 = vmatpush.msra.mxu0 0.0
    %1512 = vmatpush.msra.mxu0 0.0
    %1513 = vmatpush.msra.mxu0 0.0
    %1514 = vmatpush.msra.mxu0 0.0
    %1515 = vmatpush.msra.mxu0 %v193
    %1516 = vmatpush.msra.mxu0 %v191
    %1517 = vmatpush.msra.mxu0 %v189
    %1518 = vmatpush.msra.mxu0 %v187
    %1519 = vmatmul.f32.gmra.mxu0 %v1481
    %v1520 = vpop.f32.mrf.mxu0
    %v1521 = vadd.f32 0.0, %v1520
    %1522 = vdwg.mxu0
    %v1523 = vadd.f32 %v885, %v1501
    %v1524 = vadd.f32 %v886, %v1521
    %1526 = vst [vmem:[#allocation1] ss:$4 sm:$0xff] %v1475
    %v1527 = vld.sshfl [vmem:[#allocation1] sm:$0xff pattern:$0x73625140]
    %1528 = vrot.lane.b32.xlu0 %v1527, 32
    %v1529 = vpop.permute.xlu0 %1528
    %v1530 = vsel %vm203, %v1529, 0
    %1532 = vmatpush.msra.mxu0 0.0
    %1533 = vmatpush.msra.mxu0 0.0
    %1534 = vmatpush.msra.mxu0 0.0
    %1535 = vmatpush.msra.mxu0 0.0
    %1536 = vmatpush.msra.mxu0 0.0
    %1537 = vmatpush.msra.mxu0 0.0
    %1538 = vmatpush.msra.mxu0 0.0
    %1539 = vmatpush.msra.mxu0 0.0
    %1540 = vmatpush.msra.mxu0 0.0
    %1541 = vmatpush.msra.mxu0 0.0
    %1542 = vmatpush.msra.mxu0 0.0
    %1543 = vmatpush.msra.mxu0 0.0
    %1544 = vmatpush.msra.mxu0 %v200
    %1545 = vmatpush.msra.mxu0 %v198
    %1546 = vmatpush.msra.mxu0 %v196
    %1547 = vmatpush.msra.mxu0 %v194
    %1548 = vmatmul.f32.gmra.mxu0 %v1530
    %v1549 = vpop.f32.mrf.mxu0
    %v1550 = vadd.f32 0.0, %v1549
    %1551 = vdwg.mxu0
    %1552 = vmatpush.msra.mxu0 0.0
    %1553 = vmatpush.msra.mxu0 0.0
    %1554 = vmatpush.msra.mxu0 0.0
    %1555 = vmatpush.msra.mxu0 0.0
    %1556 = vmatpush.msra.mxu0 0.0
    %1557 = vmatpush.msra.mxu0 0.0
    %1558 = vmatpush.msra.mxu0 0.0
    %1559 = vmatpush.msra.mxu0 0.0
    %1560 = vmatpush.msra.mxu0 0.0
    %1561 = vmatpush.msra.mxu0 0.0
    %1562 = vmatpush.msra.mxu0 0.0
    %1563 = vmatpush.msra.mxu0 0.0
    %1564 = vmatpush.msra.mxu0 %v201
    %1565 = vmatpush.msra.mxu0 %v199
    %1566 = vmatpush.msra.mxu0 %v197
    %1567 = vmatpush.msra.mxu0 %v195
    %1568 = vmatmul.f32.gmra.mxu0 %v1530
    %v1569 = vpop.f32.mrf.mxu0
    %v1570 = vadd.f32 0.0, %v1569
    %1571 = vdwg.mxu0
    %v1572 = vadd.f32 %v836, %v1550
    %v1573 = vadd.f32 %v837, %v1570
    %1574 = vst [vmem:[#allocation1] ss:$4 sm:$0xff] %v1408
    %v1575 = vld.sshfl [vmem:[#allocation1] sm:$0xff pattern:$0x73625140]
    %1576 = vrot.lane.b32.xlu0 %v1575, 32
    %v1577 = vpop.permute.xlu0 %1576
    %v1578 = vsel %vm203, %v1577, 0
    %1580 = vmatpush.msra.mxu0 0.0
    %1581 = vmatpush.msra.mxu0 0.0
    %1582 = vmatpush.msra.mxu0 0.0
    %1583 = vmatpush.msra.mxu0 0.0
    %1584 = vmatpush.msra.mxu0 0.0
    %1585 = vmatpush.msra.mxu0 0.0
    %1586 = vmatpush.msra.mxu0 0.0
    %1587 = vmatpush.msra.mxu0 0.0
    %1588 = vmatpush.msra.mxu0 0.0
    %1589 = vmatpush.msra.mxu0 0.0
    %1590 = vmatpush.msra.mxu0 0.0
    %1591 = vmatpush.msra.mxu0 0.0
    %1592 = vmatpush.msra.mxu0 %v181
    %1593 = vmatpush.msra.mxu0 %v180
    %1594 = vmatpush.msra.mxu0 %v179
    %1595 = vmatpush.msra.mxu0 %v178
    %1596 = vmatmul.f32.gmra.mxu0 %v1578
    %v1597 = vpop.f32.mrf.mxu0
    %v1598 = vadd.f32 0.0, %v1597
    %1599 = vdwg.mxu0
    %v1600 = vadd.f32 %v175, %v1598
    %v1601 = vxor.u32 %v1600, 2147483648
    %v1602 = vmul.f32 %v1601, 1.442695
    %v1603 = vpow.pop %v1602
    %v1604 = vadd.f32 %v1603, 1.0
    %v1605 = vrcp.pop %v1604
    %v1606 = vmul.f32 %v1604, %v1605
    %v1607 = vsub.f32 1.0, %v1606
    %v1608 = vmul.f32 %v1605, %v1607
    %v1609 = vadd.f32 %v1605, %v1608
    %vm1610 = vweird.f32 %v1604
    %vm1611 = vweird.f32 %v1605
    %vm1612 = vmor %vm1610, %vm1611
    %v1613 = vsel %vm1612, %v1605, %v1609
    %v1614 = vand.u32 2147483647, %v1604
    %vm1615 = vcmp.eq.f32.partialorder %v1614, 8.507059e+37
    %v1616 = vand.u32 %v1604, 2147483648
    %v1617 = vor.u32 1.1754944e-38, %v1616
    %v1618 = vsel %vm1615, %v1617, %v1613
    %v1619 = vmul.f32 1.0, %v1618
    %v1620 = vtanh.pop %v1600
    %v1621 = vmul.f32 %v1619, %v1402
    %1623 = vrot.lane.b32.xlu0 %v1620, 64
    %v1624 = vpop.permute.xlu0 %1623
    %v1626 = vmul.f32 %v1619, %v1624
    %1628 = vrot.lane.b32.xlu0 %v1626, 32
    %v1629 = vpop.permute.xlu0 %1628
    %v1631 = vadd.f32 %v1621, %v1629
    %v1632 = vtanh.pop %v1631
    %1634 = vrot.lane.b32.xlu0 %v1632, 64
    %v1635 = vpop.permute.xlu0 %1634
    %v1637 = vmul.f32 %v1619, %v1635
    %1638 = vst [vmem:[#allocation1] ss:$4 sm:$0xff] %v1475
    %v1639 = vld.sshfl [vmem:[#allocation1] sm:$0xff pattern:$0x73625140]
    %1640 = vrot.lane.b32.xlu0 %v1639, 32
    %v1641 = vpop.permute.xlu0 %1640
    %v1642 = vsel %vm203, %v1641, 0
    %1644 = vmatpush.msra.mxu0 0.0
    %1645 = vmatpush.msra.mxu0 0.0
    %1646 = vmatpush.msra.mxu0 0.0
    %1647 = vmatpush.msra.mxu0 0.0
    %1648 = vmatpush.msra.mxu0 0.0
    %1649 = vmatpush.msra.mxu0 0.0
    %1650 = vmatpush.msra.mxu0 0.0
    %1651 = vmatpush.msra.mxu0 0.0
    %1652 = vmatpush.msra.mxu0 0.0
    %1653 = vmatpush.msra.mxu0 0.0
    %1654 = vmatpush.msra.mxu0 0.0
    %1655 = vmatpush.msra.mxu0 0.0
    %1656 = vmatpush.msra.mxu0 %v185
    %1657 = vmatpush.msra.mxu0 %v184
    %1658 = vmatpush.msra.mxu0 %v183
    %1659 = vmatpush.msra.mxu0 %v182
    %1660 = vmatmul.f32.gmra.mxu0 %v1642
    %v1661 = vpop.f32.mrf.mxu0
    %v1662 = vadd.f32 0.0, %v1661
    %1663 = vdwg.mxu0
    %v1665 = vrot.slane %v165, 2
    %v1667 = vadd.f32 %v1665, %v1662
    %v1668 = vxor.u32 %v1667, 2147483648
    %v1669 = vmul.f32 %v1668, 1.442695
    %v1670 = vpow.pop %v1669
    %v1671 = vadd.f32 %v1670, 1.0
    %v1672 = vrcp.pop %v1671
    %v1673 = vmul.f32 %v1671, %v1672
    %v1674 = vsub.f32 1.0, %v1673
    %v1675 = vmul.f32 %v1672, %v1674
    %v1676 = vadd.f32 %v1672, %v1675
    %vm1677 = vweird.f32 %v1671
    %vm1678 = vweird.f32 %v1672
    %vm1679 = vmor %vm1677, %vm1678
    %v1680 = vsel %vm1679, %v1672, %v1676
    %v1681 = vand.u32 2147483647, %v1671
    %vm1682 = vcmp.eq.f32.partialorder %v1681, 8.507059e+37
    %v1683 = vand.u32 %v1671, 2147483648
    %v1684 = vor.u32 1.1754944e-38, %v1683
    %v1685 = vsel %vm1682, %v1684, %v1680
    %v1686 = vmul.f32 1.0, %v1685
    %v1687 = vtanh.pop %v1667
    %v1688 = vmul.f32 %v1686, %v1469
    %1690 = vrot.lane.b32.xlu0 %v1687, 64
    %v1691 = vpop.permute.xlu0 %1690
    %v1693 = vmul.f32 %v1686, %v1691
    %1695 = vrot.lane.b32.xlu0 %v1693, 32
    %v1696 = vpop.permute.xlu0 %1695
    %v1698 = vadd.f32 %v1688, %v1696
    %v1699 = vtanh.pop %v1698
    %1701 = vrot.lane.b32.xlu0 %v1699, 64
    %v1702 = vpop.permute.xlu0 %1701
    %v1704 = vmul.f32 %v1686, %v1702
    %1706 = vst [vmem:[#allocation1] ss:$4 sm:$0xff] %v1637
    %v1707 = vld.sshfl [vmem:[#allocation1] sm:$0xff pattern:$0x73625140]
    %1708 = vrot.lane.b32.xlu0 %v1707, 32
    %v1709 = vpop.permute.xlu0 %1708
    %v1710 = vsel %vm203, %v1709, 0
    %1712 = vmatpush.msra.mxu0 0.0
    %1713 = vmatpush.msra.mxu0 0.0
    %1714 = vmatpush.msra.mxu0 0.0
    %1715 = vmatpush.msra.mxu0 0.0
    %1716 = vmatpush.msra.mxu0 0.0
    %1717 = vmatpush.msra.mxu0 0.0
    %1718 = vmatpush.msra.mxu0 0.0
    %1719 = vmatpush.msra.mxu0 0.0
    %1720 = vmatpush.msra.mxu0 0.0
    %1721 = vmatpush.msra.mxu0 0.0
    %1722 = vmatpush.msra.mxu0 0.0
    %1723 = vmatpush.msra.mxu0 0.0
    %1724 = vmatpush.msra.mxu0 %v192
    %1725 = vmatpush.msra.mxu0 %v190
    %1726 = vmatpush.msra.mxu0 %v188
    %1727 = vmatpush.msra.mxu0 %v186
    %1728 = vmatmul.f32.gmra.mxu0 %v1710
    %v1729 = vpop.f32.mrf.mxu0
    %v1730 = vadd.f32 0.0, %v1729
    %1731 = vdwg.mxu0
    %1732 = vmatpush.msra.mxu0 0.0
    %1733 = vmatpush.msra.mxu0 0.0
    %1734 = vmatpush.msra.mxu0 0.0
    %1735 = vmatpush.msra.mxu0 0.0
    %1736 = vmatpush.msra.mxu0 0.0
    %1737 = vmatpush.msra.mxu0 0.0
    %1738 = vmatpush.msra.mxu0 0.0
    %1739 = vmatpush.msra.mxu0 0.0
    %1740 = vmatpush.msra.mxu0 0.0
    %1741 = vmatpush.msra.mxu0 0.0
    %1742 = vmatpush.msra.mxu0 0.0
    %1743 = vmatpush.msra.mxu0 0.0
    %1744 = vmatpush.msra.mxu0 %v193
    %1745 = vmatpush.msra.mxu0 %v191
    %1746 = vmatpush.msra.mxu0 %v189
    %1747 = vmatpush.msra.mxu0 %v187
    %1748 = vmatmul.f32.gmra.mxu0 %v1710
    %v1749 = vpop.f32.mrf.mxu0
    %v1750 = vadd.f32 0.0, %v1749
    %1751 = vdwg.mxu0
    %v1752 = vadd.f32 %v656, %v1730
    %v1753 = vadd.f32 %v657, %v1750
    %1755 = vst [vmem:[#allocation1] ss:$4 sm:$0xff] %v1704
    %v1756 = vld.sshfl [vmem:[#allocation1] sm:$0xff pattern:$0x73625140]
    %1757 = vrot.lane.b32.xlu0 %v1756, 32
    %v1758 = vpop.permute.xlu0 %1757
    %v1759 = vsel %vm203, %v1758, 0
    %1761 = vmatpush.msra.mxu0 0.0
    %1762 = vmatpush.msra.mxu0 0.0
    %1763 = vmatpush.msra.mxu0 0.0
    %1764 = vmatpush.msra.mxu0 0.0
    %1765 = vmatpush.msra.mxu0 0.0
    %1766 = vmatpush.msra.mxu0 0.0
    %1767 = vmatpush.msra.mxu0 0.0
    %1768 = vmatpush.msra.mxu0 0.0
    %1769 = vmatpush.msra.mxu0 0.0
    %1770 = vmatpush.msra.mxu0 0.0
    %1771 = vmatpush.msra.mxu0 0.0
    %1772 = vmatpush.msra.mxu0 0.0
    %1773 = vmatpush.msra.mxu0 %v200
    %1774 = vmatpush.msra.mxu0 %v198
    %1775 = vmatpush.msra.mxu0 %v196
    %1776 = vmatpush.msra.mxu0 %v194
    %1777 = vmatmul.f32.gmra.mxu0 %v1759
    %v1778 = vpop.f32.mrf.mxu0
    %v1779 = vadd.f32 0.0, %v1778
    %1780 = vdwg.mxu0
    %1781 = vmatpush.msra.mxu0 0.0
    %1782 = vmatpush.msra.mxu0 0.0
    %1783 = vmatpush.msra.mxu0 0.0
    %1784 = vmatpush.msra.mxu0 0.0
    %1785 = vmatpush.msra.mxu0 0.0
    %1786 = vmatpush.msra.mxu0 0.0
    %1787 = vmatpush.msra.mxu0 0.0
    %1788 = vmatpush.msra.mxu0 0.0
    %1789 = vmatpush.msra.mxu0 0.0
    %1790 = vmatpush.msra.mxu0 0.0
    %1791 = vmatpush.msra.mxu0 0.0
    %1792 = vmatpush.msra.mxu0 0.0
    %1793 = vmatpush.msra.mxu0 %v201
    %1794 = vmatpush.msra.mxu0 %v199
    %1795 = vmatpush.msra.mxu0 %v197
    %1796 = vmatpush.msra.mxu0 %v195
    %1797 = vmatmul.f32.gmra.mxu0 %v1759
    %v1798 = vpop.f32.mrf.mxu0
    %v1799 = vadd.f32 0.0, %v1798
    %1800 = vdwg.mxu0
    %v1801 = vadd.f32 %v607, %v1779
    %v1802 = vadd.f32 %v608, %v1799
    %1803 = vst [vmem:[#allocation1] ss:$4 sm:$0xff] %v1637
    %v1804 = vld.sshfl [vmem:[#allocation1] sm:$0xff pattern:$0x73625140]
    %1805 = vrot.lane.b32.xlu0 %v1804, 32
    %v1806 = vpop.permute.xlu0 %1805
    %v1807 = vsel %vm203, %v1806, 0
    %1809 = vmatpush.msra.mxu0 0.0
    %1810 = vmatpush.msra.mxu0 0.0
    %1811 = vmatpush.msra.mxu0 0.0
    %1812 = vmatpush.msra.mxu0 0.0
    %1813 = vmatpush.msra.mxu0 0.0
    %1814 = vmatpush.msra.mxu0 0.0
    %1815 = vmatpush.msra.mxu0 0.0
    %1816 = vmatpush.msra.mxu0 0.0
    %1817 = vmatpush.msra.mxu0 0.0
    %1818 = vmatpush.msra.mxu0 0.0
    %1819 = vmatpush.msra.mxu0 0.0
    %1820 = vmatpush.msra.mxu0 0.0
    %1821 = vmatpush.msra.mxu0 %v181
    %1822 = vmatpush.msra.mxu0 %v180
    %1823 = vmatpush.msra.mxu0 %v179
    %1824 = vmatpush.msra.mxu0 %v178
    %1825 = vmatmul.f32.gmra.mxu0 %v1807
    %v1826 = vpop.f32.mrf.mxu0
    %v1827 = vadd.f32 0.0, %v1826
    %1828 = vdwg.mxu0
    %v1829 = vadd.f32 %v177, %v1827
    %v1830 = vxor.u32 %v1829, 2147483648
    %v1831 = vmul.f32 %v1830, 1.442695
    %v1832 = vpow.pop %v1831
    %v1833 = vadd.f32 %v1832, 1.0
    %v1834 = vrcp.pop %v1833
    %v1835 = vmul.f32 %v1833, %v1834
    %v1836 = vsub.f32 1.0, %v1835
    %v1837 = vmul.f32 %v1834, %v1836
    %v1838 = vadd.f32 %v1834, %v1837
    %vm1839 = vweird.f32 %v1833
    %vm1840 = vweird.f32 %v1834
    %vm1841 = vmor %vm1839, %vm1840
    %v1842 = vsel %vm1841, %v1834, %v1838
    %v1843 = vand.u32 2147483647, %v1833
    %vm1844 = vcmp.eq.f32.partialorder %v1843, 8.507059e+37
    %v1845 = vand.u32 %v1833, 2147483648
    %v1846 = vor.u32 1.1754944e-38, %v1845
    %v1847 = vsel %vm1844, %v1846, %v1842
    %v1848 = vmul.f32 1.0, %v1847
    %v1849 = vtanh.pop %v1829
    %v1850 = vmul.f32 %v1848, %v1631
    %1852 = vrot.lane.b32.xlu0 %v1849, 64
    %v1853 = vpop.permute.xlu0 %1852
    %v1855 = vmul.f32 %v1848, %v1853
    %1857 = vrot.lane.b32.xlu0 %v1855, 32
    %v1858 = vpop.permute.xlu0 %1857
    %v1860 = vadd.f32 %v1850, %v1858
    %v1861 = vtanh.pop %v1860
    %1863 = vrot.lane.b32.xlu0 %v1861, 64
    %v1864 = vpop.permute.xlu0 %1863
    %v1866 = vmul.f32 %v1848, %v1864
    %1867 = vst [vmem:[#allocation1] ss:$4 sm:$0xff] %v1704
    %v1868 = vld.sshfl [vmem:[#allocation1] sm:$0xff pattern:$0x73625140]
    %1869 = vrot.lane.b32.xlu0 %v1868, 32
    %v1870 = vpop.permute.xlu0 %1869
    %v1871 = vsel %vm203, %v1870, 0
    %1873 = vmatpush.msra.mxu0 0.0
    %1874 = vmatpush.msra.mxu0 0.0
    %1875 = vmatpush.msra.mxu0 0.0
    %1876 = vmatpush.msra.mxu0 0.0
    %1877 = vmatpush.msra.mxu0 0.0
    %1878 = vmatpush.msra.mxu0 0.0
    %1879 = vmatpush.msra.mxu0 0.0
    %1880 = vmatpush.msra.mxu0 0.0
    %1881 = vmatpush.msra.mxu0 0.0
    %1882 = vmatpush.msra.mxu0 0.0
    %1883 = vmatpush.msra.mxu0 0.0
    %1884 = vmatpush.msra.mxu0 0.0
    %1885 = vmatpush.msra.mxu0 %v185
    %1886 = vmatpush.msra.mxu0 %v184
    %1887 = vmatpush.msra.mxu0 %v183
    %1888 = vmatpush.msra.mxu0 %v182
    %1889 = vmatmul.f32.gmra.mxu0 %v1871
    %v1890 = vpop.f32.mrf.mxu0
    %v1891 = vadd.f32 0.0, %v1890
    %1892 = vdwg.mxu0
    %v1894 = vrot.slane %v163, 2
    %v1896 = vadd.f32 %v1894, %v1891
    %v1897 = vxor.u32 %v1896, 2147483648
    %v1898 = vmul.f32 %v1897, 1.442695
    %v1899 = vpow.pop %v1898
    %v1900 = vadd.f32 %v1899, 1.0
    %v1901 = vrcp.pop %v1900
    %v1902 = vmul.f32 %v1900, %v1901
    %v1903 = vsub.f32 1.0, %v1902
    %v1904 = vmul.f32 %v1901, %v1903
    %v1905 = vadd.f32 %v1901, %v1904
    %vm1906 = vweird.f32 %v1900
    %vm1907 = vweird.f32 %v1901
    %vm1908 = vmor %vm1906, %vm1907
    %v1909 = vsel %vm1908, %v1901, %v1905
    %v1910 = vand.u32 2147483647, %v1900
    %vm1911 = vcmp.eq.f32.partialorder %v1910, 8.507059e+37
    %v1912 = vand.u32 %v1900, 2147483648
    %v1913 = vor.u32 1.1754944e-38, %v1912
    %v1914 = vsel %vm1911, %v1913, %v1909
    %v1915 = vmul.f32 1.0, %v1914
    %v1916 = vtanh.pop %v1896
    %v1917 = vmul.f32 %v1915, %v1698
    %1919 = vrot.lane.b32.xlu0 %v1916, 64
    %v1920 = vpop.permute.xlu0 %1919
    %v1922 = vmul.f32 %v1915, %v1920
    %1924 = vrot.lane.b32.xlu0 %v1922, 32
    %v1925 = vpop.permute.xlu0 %1924
    %v1927 = vadd.f32 %v1917, %v1925
    %v1928 = vtanh.pop %v1927
    %1930 = vrot.lane.b32.xlu0 %v1928, 64
    %v1931 = vpop.permute.xlu0 %1930
    %v1933 = vmul.f32 %v1915, %v1931
    %1935 = vst [vmem:[#allocation1] ss:$4 sm:$0xff] %v1866
    %v1936 = vld.sshfl [vmem:[#allocation1] sm:$0xff pattern:$0x73625140]
    %1937 = vrot.lane.b32.xlu0 %v1936, 32
    %v1938 = vpop.permute.xlu0 %1937
    %v1939 = vsel %vm203, %v1938, 0
    %1941 = vmatpush.msra.mxu0 0.0
    %1942 = vmatpush.msra.mxu0 0.0
    %1943 = vmatpush.msra.mxu0 0.0
    %1944 = vmatpush.msra.mxu0 0.0
    %1945 = vmatpush.msra.mxu0 0.0
    %1946 = vmatpush.msra.mxu0 0.0
    %1947 = vmatpush.msra.mxu0 0.0
    %1948 = vmatpush.msra.mxu0 0.0
    %1949 = vmatpush.msra.mxu0 0.0
    %1950 = vmatpush.msra.mxu0 0.0
    %1951 = vmatpush.msra.mxu0 0.0
    %1952 = vmatpush.msra.mxu0 0.0
    %1953 = vmatpush.msra.mxu0 %v192
    %1954 = vmatpush.msra.mxu0 %v190
    %1955 = vmatpush.msra.mxu0 %v188
    %1956 = vmatpush.msra.mxu0 %v186
    %1957 = vmatmul.f32.gmra.mxu0 %v1939
    %v1958 = vpop.f32.mrf.mxu0
    %v1959 = vadd.f32 0.0, %v1958
    %1960 = vdwg.mxu0
    %1961 = vmatpush.msra.mxu0 0.0
    %1962 = vmatpush.msra.mxu0 0.0
    %1963 = vmatpush.msra.mxu0 0.0
    %1964 = vmatpush.msra.mxu0 0.0
    %1965 = vmatpush.msra.mxu0 0.0
    %1966 = vmatpush.msra.mxu0 0.0
    %1967 = vmatpush.msra.mxu0 0.0
    %1968 = vmatpush.msra.mxu0 0.0
    %1969 = vmatpush.msra.mxu0 0.0
    %1970 = vmatpush.msra.mxu0 0.0
    %1971 = vmatpush.msra.mxu0 0.0
    %1972 = vmatpush.msra.mxu0 0.0
    %1973 = vmatpush.msra.mxu0 %v193
    %1974 = vmatpush.msra.mxu0 %v191
    %1975 = vmatpush.msra.mxu0 %v189
    %1976 = vmatpush.msra.mxu0 %v187
    %1977 = vmatmul.f32.gmra.mxu0 %v1939
    %v1978 = vpop.f32.mrf.mxu0
    %v1979 = vadd.f32 0.0, %v1978
    %1980 = vdwg.mxu0
    %v1981 = vadd.f32 %v427, %v1959
    %v1982 = vadd.f32 %v428, %v1979
    %1984 = vst [vmem:[#allocation1] ss:$4 sm:$0xff] %v1933
    %v1985 = vld.sshfl [vmem:[#allocation1] sm:$0xff pattern:$0x73625140]
    %1986 = vrot.lane.b32.xlu0 %v1985, 32
    %v1987 = vpop.permute.xlu0 %1986
    %v1988 = vsel %vm203, %v1987, 0
    %1990 = vmatpush.msra.mxu0 0.0
    %1991 = vmatpush.msra.mxu0 0.0
    %1992 = vmatpush.msra.mxu0 0.0
    %1993 = vmatpush.msra.mxu0 0.0
    %1994 = vmatpush.msra.mxu0 0.0
    %1995 = vmatpush.msra.mxu0 0.0
    %1996 = vmatpush.msra.mxu0 0.0
    %1997 = vmatpush.msra.mxu0 0.0
    %1998 = vmatpush.msra.mxu0 0.0
    %1999 = vmatpush.msra.mxu0 0.0
    %2000 = vmatpush.msra.mxu0 0.0
    %2001 = vmatpush.msra.mxu0 0.0
    %2002 = vmatpush.msra.mxu0 %v200
    %2003 = vmatpush.msra.mxu0 %v198
    %2004 = vmatpush.msra.mxu0 %v196
    %2005 = vmatpush.msra.mxu0 %v194
    %2006 = vmatmul.f32.gmra.mxu0 %v1988
    %v2007 = vpop.f32.mrf.mxu0
    %v2008 = vadd.f32 0.0, %v2007
    %2009 = vdwg.mxu0
    %2010 = vmatpush.msra.mxu0 0.0
    %2011 = vmatpush.msra.mxu0 0.0
    %2012 = vmatpush.msra.mxu0 0.0
    %2013 = vmatpush.msra.mxu0 0.0
    %2014 = vmatpush.msra.mxu0 0.0
    %2015 = vmatpush.msra.mxu0 0.0
    %2016 = vmatpush.msra.mxu0 0.0
    %2017 = vmatpush.msra.mxu0 0.0
    %2018 = vmatpush.msra.mxu0 0.0
    %2019 = vmatpush.msra.mxu0 0.0
    %2020 = vmatpush.msra.mxu0 0.0
    %2021 = vmatpush.msra.mxu0 0.0
    %2022 = vmatpush.msra.mxu0 %v201
    %2023 = vmatpush.msra.mxu0 %v199
    %2024 = vmatpush.msra.mxu0 %v197
    %2025 = vmatpush.msra.mxu0 %v195
    %2026 = vmatmul.f32.gmra.mxu0 %v1988
    %v2027 = vpop.f32.mrf.mxu0
    %v2028 = vadd.f32 0.0, %v2027
    %2029 = vdwg.mxu0
    %v2030 = vadd.f32 %v378, %v2008
    %v2031 = vadd.f32 %v379, %v2028
    %v2032 = vld [vmem:[#allocation5] sm:$0xff]
    %v2033 = vld [vmem:[#allocation5 + $0x8] sm:$0xff]
    %v2034 = vld [vmem:[#allocation5 + $0x10] sm:$0xff]
    %v2035 = vld [vmem:[#allocation5 + $0x18] sm:$0xff]
    %v2036 = vld [vmem:[#allocation7] sm:$0xff]
    %v2037 = vld [vmem:[#allocation7 + $0x8] sm:$0xff]
    %v2038 = vld [vmem:[#allocation7 + $0x10] sm:$0xff]
    %v2039 = vld [vmem:[#allocation7 + $0x18] sm:$0xff]
    %v2040 = vld [vmem:[#allocation8] sm:$0xff]
    %v2041 = vld [vmem:[#allocation8 + $0x8] sm:$0xff]
    %v2042 = vld [vmem:[#allocation8 + $0x10] sm:$0xff]
    %v2043 = vld [vmem:[#allocation8 + $0x18] sm:$0xff]
    %v2044 = vld [vmem:[#allocation10] sm:$0xff]
    %v2045 = vld [vmem:[#allocation10 + $0x8] sm:$0xff]
    %v2046 = vld [vmem:[#allocation10 + $0x10] sm:$0xff]
    %v2047 = vld [vmem:[#allocation10 + $0x18] sm:$0xff]
    %v2048 = vld [vmem:[%s11] sm:$0x1]
    %2049 = vmatpush.msra.mxu0 0.0
    %2050 = vmatpush.msra.mxu0 0.0
    %2051 = vmatpush.msra.mxu0 0.0
    %2052 = vmatpush.msra.mxu0 0.0
    %2053 = vmatpush.msra.mxu0 0.0
    %2054 = vmatpush.msra.mxu0 0.0
    %2055 = vmatpush.msra.mxu0 0.0
    %2056 = vmatpush.msra.mxu0 0.0
    %2057 = vmatpush.msra.mxu0 0.0
    %2058 = vmatpush.msra.mxu0 0.0
    %2059 = vmatpush.msra.mxu0 0.0
    %2060 = vmatpush.msra.mxu0 0.0
    %2061 = vmatpush.msra.mxu0 %v2035
    %2062 = vmatpush.msra.mxu0 %v2034
    %2063 = vmatpush.msra.mxu0 %v2033
    %2064 = vmatpush.msra.mxu0 %v2032
    %2065 = vmatmul.f32.gmra.mxu0 %v205
    %v2066 = vpop.f32.mrf.mxu0
    %v2067 = vadd.f32 0.0, %v2066
    %2068 = vdwg.mxu0
    %v2069 = vadd.f32 %v2030, %v2067
    %v2070 = vxor.u32 %v2069, 2147483648
    %v2071 = vmul.f32 %v2070, 1.442695
    %v2072 = vpow.pop %v2071
    %v2073 = vadd.f32 %v2072, 1.0
    %v2074 = vrcp.pop %v2073
    %v2075 = vmul.f32 %v2073, %v2074
    %v2076 = vsub.f32 1.0, %v2075
    %v2077 = vmul.f32 %v2074, %v2076
    %v2078 = vadd.f32 %v2074, %v2077
    %vm2079 = vweird.f32 %v2073
    %vm2080 = vweird.f32 %v2074
    %vm2081 = vmor %vm2079, %vm2080
    %v2082 = vsel %vm2081, %v2074, %v2078
    %v2083 = vand.u32 2147483647, %v2073
    %vm2084 = vcmp.eq.f32.partialorder %v2083, 8.507059e+37
    %v2085 = vand.u32 %v2073, 2147483648
    %v2086 = vor.u32 1.1754944e-38, %v2085
    %v2087 = vsel %vm2084, %v2086, %v2082
    %v2088 = vmul.f32 1.0, %v2087
    %v2089 = vtanh.pop %v2069
    %v2090 = vmul.f32 %v2088, 0.0
    %2092 = vrot.lane.b32.xlu0 %v2089, 64
    %v2093 = vpop.permute.xlu0 %2092
    %v2095 = vmul.f32 %v2088, %v2093
    %2097 = vrot.lane.b32.xlu0 %v2095, 32
    %v2098 = vpop.permute.xlu0 %2097
    %v2100 = vadd.f32 %v2090, %v2098
    %v2101 = vtanh.pop %v2100
    %2103 = vrot.lane.b32.xlu0 %v2101, 64
    %v2104 = vpop.permute.xlu0 %2103
    %v2106 = vmul.f32 %v2088, %v2104
    %2107 = vmatpush.msra.mxu0 0.0
    %2108 = vmatpush.msra.mxu0 0.0
    %2109 = vmatpush.msra.mxu0 0.0
    %2110 = vmatpush.msra.mxu0 0.0
    %2111 = vmatpush.msra.mxu0 0.0
    %2112 = vmatpush.msra.mxu0 0.0
    %2113 = vmatpush.msra.mxu0 0.0
    %2114 = vmatpush.msra.mxu0 0.0
    %2115 = vmatpush.msra.mxu0 0.0
    %2116 = vmatpush.msra.mxu0 0.0
    %2117 = vmatpush.msra.mxu0 0.0
    %2118 = vmatpush.msra.mxu0 0.0
    %2119 = vmatpush.msra.mxu0 %v2039
    %2120 = vmatpush.msra.mxu0 %v2038
    %2121 = vmatpush.msra.mxu0 %v2037
    %2122 = vmatpush.msra.mxu0 %v2036
    %2123 = vmatmul.f32.gmra.mxu0 %v205
    %v2124 = vpop.f32.mrf.mxu0
    %v2125 = vadd.f32 0.0, %v2124
    %2126 = vdwg.mxu0
    %v2127 = vadd.f32 %v1982, %v2125
    %v2128 = vxor.u32 %v2127, 2147483648
    %v2129 = vmul.f32 %v2128, 1.442695
    %v2130 = vpow.pop %v2129
    %v2131 = vadd.f32 %v2130, 1.0
    %v2132 = vrcp.pop %v2131
    %v2133 = vmul.f32 %v2131, %v2132
    %v2134 = vsub.f32 1.0, %v2133
    %v2135 = vmul.f32 %v2132, %v2134
    %v2136 = vadd.f32 %v2132, %v2135
    %vm2137 = vweird.f32 %v2131
    %vm2138 = vweird.f32 %v2132
    %vm2139 = vmor %vm2137, %vm2138
    %v2140 = vsel %vm2139, %v2132, %v2136
    %v2141 = vand.u32 2147483647, %v2131
    %vm2142 = vcmp.eq.f32.partialorder %v2141, 8.507059e+37
    %v2143 = vand.u32 %v2131, 2147483648
    %v2144 = vor.u32 1.1754944e-38, %v2143
    %v2145 = vsel %vm2142, %v2144, %v2140
    %v2146 = vmul.f32 1.0, %v2145
    %v2147 = vtanh.pop %v2127
    %v2148 = vmul.f32 %v2146, 0.0
    %2150 = vrot.lane.b32.xlu0 %v2147, 64
    %v2151 = vpop.permute.xlu0 %2150
    %v2153 = vmul.f32 %v2146, %v2151
    %2155 = vrot.lane.b32.xlu0 %v2153, 32
    %v2156 = vpop.permute.xlu0 %2155
    %v2158 = vadd.f32 %v2148, %v2156
    %v2159 = vtanh.pop %v2158
    %2161 = vrot.lane.b32.xlu0 %v2159, 64
    %v2162 = vpop.permute.xlu0 %2161
    %v2164 = vmul.f32 %v2146, %v2162
    %2166 = vrot.lane.b32.xlu0 %v2106, 32
    %v2167 = vpop.permute.xlu0 %2166
    %v2168 = vsel %vm203, %v2167, 0
    %2170 = vmatpush.msra.mxu0 0.0
    %2171 = vmatpush.msra.mxu0 0.0
    %2172 = vmatpush.msra.mxu0 0.0
    %2173 = vmatpush.msra.mxu0 0.0
    %2174 = vmatpush.msra.mxu0 0.0
    %2175 = vmatpush.msra.mxu0 0.0
    %2176 = vmatpush.msra.mxu0 0.0
    %2177 = vmatpush.msra.mxu0 0.0
    %2178 = vmatpush.msra.mxu0 0.0
    %2179 = vmatpush.msra.mxu0 0.0
    %2180 = vmatpush.msra.mxu0 0.0
    %2181 = vmatpush.msra.mxu0 0.0
    %2182 = vmatpush.msra.mxu0 %v2043
    %2183 = vmatpush.msra.mxu0 %v2042
    %2184 = vmatpush.msra.mxu0 %v2041
    %2185 = vmatpush.msra.mxu0 %v2040
    %2186 = vmatmul.f32.gmra.mxu0 %v2168
    %v2187 = vpop.f32.mrf.mxu0
    %v2188 = vadd.f32 0.0, %v2187
    %2189 = vdwg.mxu0
    %v2191 = vperm.slane %v2048, 0
    %v2193 = vadd.f32 %v2191, %v2188
    %2195 = vrot.lane.b32.xlu0 %v2164, 32
    %v2196 = vpop.permute.xlu0 %2195
    %v2197 = vsel %vm203, %v2196, 0
    %2199 = vmatpush.msra.mxu0 0.0
    %2200 = vmatpush.msra.mxu0 0.0
    %2201 = vmatpush.msra.mxu0 0.0
    %2202 = vmatpush.msra.mxu0 0.0
    %2203 = vmatpush.msra.mxu0 0.0
    %2204 = vmatpush.msra.mxu0 0.0
    %2205 = vmatpush.msra.mxu0 0.0
    %2206 = vmatpush.msra.mxu0 0.0
    %2207 = vmatpush.msra.mxu0 0.0
    %2208 = vmatpush.msra.mxu0 0.0
    %2209 = vmatpush.msra.mxu0 0.0
    %2210 = vmatpush.msra.mxu0 0.0
    %2211 = vmatpush.msra.mxu0 %v2047
    %2212 = vmatpush.msra.mxu0 %v2046
    %2213 = vmatpush.msra.mxu0 %v2045
    %2214 = vmatpush.msra.mxu0 %v2044
    %2215 = vmatmul.f32.gmra.mxu0 %v2197
    %v2216 = vpop.f32.mrf.mxu0
    %v2217 = vadd.f32 0.0, %v2216
    %2218 = vdwg.mxu0
    %v2219 = vadd.f32 %v2191, %v2217
    %2220 = vmatpush.msra.mxu0 0.0
    %2221 = vmatpush.msra.mxu0 0.0
    %2222 = vmatpush.msra.mxu0 0.0
    %2223 = vmatpush.msra.mxu0 0.0
    %2224 = vmatpush.msra.mxu0 0.0
    %2225 = vmatpush.msra.mxu0 0.0
    %2226 = vmatpush.msra.mxu0 0.0
    %2227 = vmatpush.msra.mxu0 0.0
    %2228 = vmatpush.msra.mxu0 0.0
    %2229 = vmatpush.msra.mxu0 0.0
    %2230 = vmatpush.msra.mxu0 0.0
    %2231 = vmatpush.msra.mxu0 0.0
    %2232 = vmatpush.msra.mxu0 %v2035
    %2233 = vmatpush.msra.mxu0 %v2034
    %2234 = vmatpush.msra.mxu0 %v2033
    %2235 = vmatpush.msra.mxu0 %v2032
    %2236 = vmatmul.f32.gmra.mxu0 %v2168
    %v2237 = vpop.f32.mrf.mxu0
    %v2238 = vadd.f32 0.0, %v2237
    %2239 = vdwg.mxu0
    %v2240 = vadd.f32 %v1801, %v2238
    %v2241 = vxor.u32 %v2240, 2147483648
    %v2242 = vmul.f32 %v2241, 1.442695
    %v2243 = vpow.pop %v2242
    %v2244 = vadd.f32 %v2243, 1.0
    %v2245 = vrcp.pop %v2244
    %v2246 = vmul.f32 %v2244, %v2245
    %v2247 = vsub.f32 1.0, %v2246
    %v2248 = vmul.f32 %v2245, %v2247
    %v2249 = vadd.f32 %v2245, %v2248
    %vm2250 = vweird.f32 %v2244
    %vm2251 = vweird.f32 %v2245
    %vm2252 = vmor %vm2250, %vm2251
    %v2253 = vsel %vm2252, %v2245, %v2249
    %v2254 = vand.u32 2147483647, %v2244
    %vm2255 = vcmp.eq.f32.partialorder %v2254, 8.507059e+37
    %v2256 = vand.u32 %v2244, 2147483648
    %v2257 = vor.u32 1.1754944e-38, %v2256
    %v2258 = vsel %vm2255, %v2257, %v2253
    %v2259 = vmul.f32 1.0, %v2258
    %v2260 = vtanh.pop %v2240
    %v2261 = vmul.f32 %v2259, %v2100
    %2263 = vrot.lane.b32.xlu0 %v2260, 64
    %v2264 = vpop.permute.xlu0 %2263
    %v2266 = vmul.f32 %v2259, %v2264
    %2268 = vrot.lane.b32.xlu0 %v2266, 32
    %v2269 = vpop.permute.xlu0 %2268
    %v2271 = vadd.f32 %v2261, %v2269
    %v2272 = vtanh.pop %v2271
    %2274 = vrot.lane.b32.xlu0 %v2272, 64
    %v2275 = vpop.permute.xlu0 %2274
    %v2277 = vmul.f32 %v2259, %v2275
    %2278 = vmatpush.msra.mxu0 0.0
    %2279 = vmatpush.msra.mxu0 0.0
    %2280 = vmatpush.msra.mxu0 0.0
    %2281 = vmatpush.msra.mxu0 0.0
    %2282 = vmatpush.msra.mxu0 0.0
    %2283 = vmatpush.msra.mxu0 0.0
    %2284 = vmatpush.msra.mxu0 0.0
    %2285 = vmatpush.msra.mxu0 0.0
    %2286 = vmatpush.msra.mxu0 0.0
    %2287 = vmatpush.msra.mxu0 0.0
    %2288 = vmatpush.msra.mxu0 0.0
    %2289 = vmatpush.msra.mxu0 0.0
    %2290 = vmatpush.msra.mxu0 %v2039
    %2291 = vmatpush.msra.mxu0 %v2038
    %2292 = vmatpush.msra.mxu0 %v2037
    %2293 = vmatpush.msra.mxu0 %v2036
    %2294 = vmatmul.f32.gmra.mxu0 %v2197
    %v2295 = vpop.f32.mrf.mxu0
    %v2296 = vadd.f32 0.0, %v2295
    %2297 = vdwg.mxu0
    %v2298 = vadd.f32 %v1753, %v2296
    %v2299 = vxor.u32 %v2298, 2147483648
    %v2300 = vmul.f32 %v2299, 1.442695
    %v2301 = vpow.pop %v2300
    %v2302 = vadd.f32 %v2301, 1.0
    %v2303 = vrcp.pop %v2302
    %v2304 = vmul.f32 %v2302, %v2303
    %v2305 = vsub.f32 1.0, %v2304
    %v2306 = vmul.f32 %v2303, %v2305
    %v2307 = vadd.f32 %v2303, %v2306
    %vm2308 = vweird.f32 %v2302
    %vm2309 = vweird.f32 %v2303
    %vm2310 = vmor %vm2308, %vm2309
    %v2311 = vsel %vm2310, %v2303, %v2307
    %v2312 = vand.u32 2147483647, %v2302
    %vm2313 = vcmp.eq.f32.partialorder %v2312, 8.507059e+37
    %v2314 = vand.u32 %v2302, 2147483648
    %v2315 = vor.u32 1.1754944e-38, %v2314
    %v2316 = vsel %vm2313, %v2315, %v2311
    %v2317 = vmul.f32 1.0, %v2316
    %v2318 = vtanh.pop %v2298
    %v2319 = vmul.f32 %v2317, %v2158
    %2321 = vrot.lane.b32.xlu0 %v2318, 64
    %v2322 = vpop.permute.xlu0 %2321
    %v2324 = vmul.f32 %v2317, %v2322
    %2326 = vrot.lane.b32.xlu0 %v2324, 32
    %v2327 = vpop.permute.xlu0 %2326
    %v2329 = vadd.f32 %v2319, %v2327
    %v2330 = vtanh.pop %v2329
    %2332 = vrot.lane.b32.xlu0 %v2330, 64
    %v2333 = vpop.permute.xlu0 %2332
    %v2335 = vmul.f32 %v2317, %v2333
    %2337 = vrot.lane.b32.xlu0 %v2277, 32
    %v2338 = vpop.permute.xlu0 %2337
    %v2339 = vsel %vm203, %v2338, 0
    %2341 = vmatpush.msra.mxu0 0.0
    %2342 = vmatpush.msra.mxu0 0.0
    %2343 = vmatpush.msra.mxu0 0.0
    %2344 = vmatpush.msra.mxu0 0.0
    %2345 = vmatpush.msra.mxu0 0.0
    %2346 = vmatpush.msra.mxu0 0.0
    %2347 = vmatpush.msra.mxu0 0.0
    %2348 = vmatpush.msra.mxu0 0.0
    %2349 = vmatpush.msra.mxu0 0.0
    %2350 = vmatpush.msra.mxu0 0.0
    %2351 = vmatpush.msra.mxu0 0.0
    %2352 = vmatpush.msra.mxu0 0.0
    %2353 = vmatpush.msra.mxu0 %v2043
    %2354 = vmatpush.msra.mxu0 %v2042
    %2355 = vmatpush.msra.mxu0 %v2041
    %2356 = vmatpush.msra.mxu0 %v2040
    %2357 = vmatmul.f32.gmra.mxu0 %v2339
    %v2358 = vpop.f32.mrf.mxu0
    %v2359 = vadd.f32 0.0, %v2358
    %2360 = vdwg.mxu0
    %v2361 = vadd.f32 %v2191, %v2359
    %2363 = vrot.lane.b32.xlu0 %v2335, 32
    %v2364 = vpop.permute.xlu0 %2363
    %v2365 = vsel %vm203, %v2364, 0
    %2367 = vmatpush.msra.mxu0 0.0
    %2368 = vmatpush.msra.mxu0 0.0
    %2369 = vmatpush.msra.mxu0 0.0
    %2370 = vmatpush.msra.mxu0 0.0
    %2371 = vmatpush.msra.mxu0 0.0
    %2372 = vmatpush.msra.mxu0 0.0
    %2373 = vmatpush.msra.mxu0 0.0
    %2374 = vmatpush.msra.mxu0 0.0
    %2375 = vmatpush.msra.mxu0 0.0
    %2376 = vmatpush.msra.mxu0 0.0
    %2377 = vmatpush.msra.mxu0 0.0
    %2378 = vmatpush.msra.mxu0 0.0
    %2379 = vmatpush.msra.mxu0 %v2047
    %2380 = vmatpush.msra.mxu0 %v2046
    %2381 = vmatpush.msra.mxu0 %v2045
    %2382 = vmatpush.msra.mxu0 %v2044
    %2383 = vmatmul.f32.gmra.mxu0 %v2365
    %v2384 = vpop.f32.mrf.mxu0
    %v2385 = vadd.f32 0.0, %v2384
    %2386 = vdwg.mxu0
    %v2387 = vadd.f32 %v2191, %v2385
    %2388 = vmatpush.msra.mxu0 0.0
    %2389 = vmatpush.msra.mxu0 0.0
    %2390 = vmatpush.msra.mxu0 0.0
    %2391 = vmatpush.msra.mxu0 0.0
    %2392 = vmatpush.msra.mxu0 0.0
    %2393 = vmatpush.msra.mxu0 0.0
    %2394 = vmatpush.msra.mxu0 0.0
    %2395 = vmatpush.msra.mxu0 0.0
    %2396 = vmatpush.msra.mxu0 0.0
    %2397 = vmatpush.msra.mxu0 0.0
    %2398 = vmatpush.msra.mxu0 0.0
    %2399 = vmatpush.msra.mxu0 0.0
    %2400 = vmatpush.msra.mxu0 %v2035
    %2401 = vmatpush.msra.mxu0 %v2034
    %2402 = vmatpush.msra.mxu0 %v2033
    %2403 = vmatpush.msra.mxu0 %v2032
    %2404 = vmatmul.f32.gmra.mxu0 %v2339
    %v2405 = vpop.f32.mrf.mxu0
    %v2406 = vadd.f32 0.0, %v2405
    %2407 = vdwg.mxu0
    %v2408 = vadd.f32 %v1572, %v2406
    %v2409 = vxor.u32 %v2408, 2147483648
    %v2410 = vmul.f32 %v2409, 1.442695
    %v2411 = vpow.pop %v2410
    %v2412 = vadd.f32 %v2411, 1.0
    %v2413 = vrcp.pop %v2412
    %v2414 = vmul.f32 %v2412, %v2413
    %v2415 = vsub.f32 1.0, %v2414
    %v2416 = vmul.f32 %v2413, %v2415
    %v2417 = vadd.f32 %v2413, %v2416
    %vm2418 = vweird.f32 %v2412
    %vm2419 = vweird.f32 %v2413
    %vm2420 = vmor %vm2418, %vm2419
    %v2421 = vsel %vm2420, %v2413, %v2417
    %v2422 = vand.u32 2147483647, %v2412
    %vm2423 = vcmp.eq.f32.partialorder %v2422, 8.507059e+37
    %v2424 = vand.u32 %v2412, 2147483648
    %v2425 = vor.u32 1.1754944e-38, %v2424
    %v2426 = vsel %vm2423, %v2425, %v2421
    %v2427 = vmul.f32 1.0, %v2426
    %v2428 = vtanh.pop %v2408
    %v2429 = vmul.f32 %v2427, %v2271
    %2431 = vrot.lane.b32.xlu0 %v2428, 64
    %v2432 = vpop.permute.xlu0 %2431
    %v2434 = vmul.f32 %v2427, %v2432
    %2436 = vrot.lane.b32.xlu0 %v2434, 32
    %v2437 = vpop.permute.xlu0 %2436
    %v2439 = vadd.f32 %v2429, %v2437
    %v2440 = vtanh.pop %v2439
    %2442 = vrot.lane.b32.xlu0 %v2440, 64
    %v2443 = vpop.permute.xlu0 %2442
    %v2445 = vmul.f32 %v2427, %v2443
    %2446 = vmatpush.msra.mxu0 0.0
    %2447 = vmatpush.msra.mxu0 0.0
    %2448 = vmatpush.msra.mxu0 0.0
    %2449 = vmatpush.msra.mxu0 0.0
    %2450 = vmatpush.msra.mxu0 0.0
    %2451 = vmatpush.msra.mxu0 0.0
    %2452 = vmatpush.msra.mxu0 0.0
    %2453 = vmatpush.msra.mxu0 0.0
    %2454 = vmatpush.msra.mxu0 0.0
    %2455 = vmatpush.msra.mxu0 0.0
    %2456 = vmatpush.msra.mxu0 0.0
    %2457 = vmatpush.msra.mxu0 0.0
    %2458 = vmatpush.msra.mxu0 %v2039
    %2459 = vmatpush.msra.mxu0 %v2038
    %2460 = vmatpush.msra.mxu0 %v2037
    %2461 = vmatpush.msra.mxu0 %v2036
    %2462 = vmatmul.f32.gmra.mxu0 %v2365
    %v2463 = vpop.f32.mrf.mxu0
    %v2464 = vadd.f32 0.0, %v2463
    %2465 = vdwg.mxu0
    %v2466 = vadd.f32 %v1524, %v2464
    %v2467 = vxor.u32 %v2466, 2147483648
    %v2468 = vmul.f32 %v2467, 1.442695
    %v2469 = vpow.pop %v2468
    %v2470 = vadd.f32 %v2469, 1.0
    %v2471 = vrcp.pop %v2470
    %v2472 = vmul.f32 %v2470, %v2471
    %v2473 = vsub.f32 1.0, %v2472
    %v2474 = vmul.f32 %v2471, %v2473
    %v2475 = vadd.f32 %v2471, %v2474
    %vm2476 = vweird.f32 %v2470
    %vm2477 = vweird.f32 %v2471
    %vm2478 = vmor %vm2476, %vm2477
    %v2479 = vsel %vm2478, %v2471, %v2475
    %v2480 = vand.u32 2147483647, %v2470
    %vm2481 = vcmp.eq.f32.partialorder %v2480, 8.507059e+37
    %v2482 = vand.u32 %v2470, 2147483648
    %v2483 = vor.u32 1.1754944e-38, %v2482
    %v2484 = vsel %vm2481, %v2483, %v2479
    %v2485 = vmul.f32 1.0, %v2484
    %v2486 = vtanh.pop %v2466
    %v2487 = vmul.f32 %v2485, %v2329
    %2489 = vrot.lane.b32.xlu0 %v2486, 64
    %v2490 = vpop.permute.xlu0 %2489
    %v2492 = vmul.f32 %v2485, %v2490
    %2494 = vrot.lane.b32.xlu0 %v2492, 32
    %v2495 = vpop.permute.xlu0 %2494
    %v2497 = vadd.f32 %v2487, %v2495
    %v2498 = vtanh.pop %v2497
    %2500 = vrot.lane.b32.xlu0 %v2498, 64
    %v2501 = vpop.permute.xlu0 %2500
    %v2503 = vmul.f32 %v2485, %v2501
    %2505 = vrot.lane.b32.xlu0 %v2445, 32
    %v2506 = vpop.permute.xlu0 %2505
    %v2507 = vsel %vm203, %v2506, 0
    %2509 = vmatpush.msra.mxu0 0.0
    %2510 = vmatpush.msra.mxu0 0.0
    %2511 = vmatpush.msra.mxu0 0.0
    %2512 = vmatpush.msra.mxu0 0.0
    %2513 = vmatpush.msra.mxu0 0.0
    %2514 = vmatpush.msra.mxu0 0.0
    %2515 = vmatpush.msra.mxu0 0.0
    %2516 = vmatpush.msra.mxu0 0.0
    %2517 = vmatpush.msra.mxu0 0.0
    %2518 = vmatpush.msra.mxu0 0.0
    %2519 = vmatpush.msra.mxu0 0.0
    %2520 = vmatpush.msra.mxu0 0.0
    %2521 = vmatpush.msra.mxu0 %v2043
    %2522 = vmatpush.msra.mxu0 %v2042
    %2523 = vmatpush.msra.mxu0 %v2041
    %2524 = vmatpush.msra.mxu0 %v2040
    %2525 = vmatmul.f32.gmra.mxu0 %v2507
    %v2526 = vpop.f32.mrf.mxu0
    %v2527 = vadd.f32 0.0, %v2526
    %2528 = vdwg.mxu0
    %v2529 = vadd.f32 %v2191, %v2527
    %2531 = vrot.lane.b32.xlu0 %v2503, 32
    %v2532 = vpop.permute.xlu0 %2531
    %v2533 = vsel %vm203, %v2532, 0
    %2535 = vmatpush.msra.mxu0 0.0
    %2536 = vmatpush.msra.mxu0 0.0
    %2537 = vmatpush.msra.mxu0 0.0
    %2538 = vmatpush.msra.mxu0 0.0
    %2539 = vmatpush.msra.mxu0 0.0
    %2540 = vmatpush.msra.mxu0 0.0
    %2541 = vmatpush.msra.mxu0 0.0
    %2542 = vmatpush.msra.mxu0 0.0
    %2543 = vmatpush.msra.mxu0 0.0
    %2544 = vmatpush.msra.mxu0 0.0
    %2545 = vmatpush.msra.mxu0 0.0
    %2546 = vmatpush.msra.mxu0 0.0
    %2547 = vmatpush.msra.mxu0 %v2047
    %2548 = vmatpush.msra.mxu0 %v2046
    %2549 = vmatpush.msra.mxu0 %v2045
    %2550 = vmatpush.msra.mxu0 %v2044
    %2551 = vmatmul.f32.gmra.mxu0 %v2533
    %v2552 = vpop.f32.mrf.mxu0
    %v2553 = vadd.f32 0.0, %v2552
    %2554 = vdwg.mxu0
    %v2555 = vadd.f32 %v2191, %v2553
    %2556 = vmatpush.msra.mxu0 0.0
    %2557 = vmatpush.msra.mxu0 0.0
    %2558 = vmatpush.msra.mxu0 0.0
    %2559 = vmatpush.msra.mxu0 0.0
    %2560 = vmatpush.msra.mxu0 0.0
    %2561 = vmatpush.msra.mxu0 0.0
    %2562 = vmatpush.msra.mxu0 0.0
    %2563 = vmatpush.msra.mxu0 0.0
    %2564 = vmatpush.msra.mxu0 0.0
    %2565 = vmatpush.msra.mxu0 0.0
    %2566 = vmatpush.msra.mxu0 0.0
    %2567 = vmatpush.msra.mxu0 0.0
    %2568 = vmatpush.msra.mxu0 %v2035
    %2569 = vmatpush.msra.mxu0 %v2034
    %2570 = vmatpush.msra.mxu0 %v2033
    %2571 = vmatpush.msra.mxu0 %v2032
    %2572 = vmatmul.f32.gmra.mxu0 %v2507
    %v2573 = vpop.f32.mrf.mxu0
    %v2574 = vadd.f32 0.0, %v2573
    %2575 = vdwg.mxu0
    %v2576 = vadd.f32 %v1343, %v2574
    %v2577 = vxor.u32 %v2576, 2147483648
    %v2578 = vmul.f32 %v2577, 1.442695
    %v2579 = vpow.pop %v2578
    %v2580 = vadd.f32 %v2579, 1.0
    %v2581 = vrcp.pop %v2580
    %v2582 = vmul.f32 %v2580, %v2581
    %v2583 = vsub.f32 1.0, %v2582
    %v2584 = vmul.f32 %v2581, %v2583
    %v2585 = vadd.f32 %v2581, %v2584
    %vm2586 = vweird.f32 %v2580
    %vm2587 = vweird.f32 %v2581
    %vm2588 = vmor %vm2586, %vm2587
    %v2589 = vsel %vm2588, %v2581, %v2585
    %v2590 = vand.u32 2147483647, %v2580
    %vm2591 = vcmp.eq.f32.partialorder %v2590, 8.507059e+37
    %v2592 = vand.u32 %v2580, 2147483648
    %v2593 = vor.u32 1.1754944e-38, %v2592
    %v2594 = vsel %vm2591, %v2593, %v2589
    %v2595 = vmul.f32 1.0, %v2594
    %v2596 = vtanh.pop %v2576
    %v2597 = vmul.f32 %v2595, %v2439
    %2599 = vrot.lane.b32.xlu0 %v2596, 64
    %v2600 = vpop.permute.xlu0 %2599
    %v2602 = vmul.f32 %v2595, %v2600
    %2604 = vrot.lane.b32.xlu0 %v2602, 32
    %v2605 = vpop.permute.xlu0 %2604
    %v2607 = vadd.f32 %v2597, %v2605
    %v2608 = vtanh.pop %v2607
    %2610 = vrot.lane.b32.xlu0 %v2608, 64
    %v2611 = vpop.permute.xlu0 %2610
    %v2613 = vmul.f32 %v2595, %v2611
    %2614 = vmatpush.msra.mxu0 0.0
    %2615 = vmatpush.msra.mxu0 0.0
    %2616 = vmatpush.msra.mxu0 0.0
    %2617 = vmatpush.msra.mxu0 0.0
    %2618 = vmatpush.msra.mxu0 0.0
    %2619 = vmatpush.msra.mxu0 0.0
    %2620 = vmatpush.msra.mxu0 0.0
    %2621 = vmatpush.msra.mxu0 0.0
    %2622 = vmatpush.msra.mxu0 0.0
    %2623 = vmatpush.msra.mxu0 0.0
    %2624 = vmatpush.msra.mxu0 0.0
    %2625 = vmatpush.msra.mxu0 0.0
    %2626 = vmatpush.msra.mxu0 %v2039
    %2627 = vmatpush.msra.mxu0 %v2038
    %2628 = vmatpush.msra.mxu0 %v2037
    %2629 = vmatpush.msra.mxu0 %v2036
    %2630 = vmatmul.f32.gmra.mxu0 %v2533
    %v2631 = vpop.f32.mrf.mxu0
    %v2632 = vadd.f32 0.0, %v2631
    %2633 = vdwg.mxu0
    %v2634 = vadd.f32 %v1295, %v2632
    %v2635 = vxor.u32 %v2634, 2147483648
    %v2636 = vmul.f32 %v2635, 1.442695
    %v2637 = vpow.pop %v2636
    %v2638 = vadd.f32 %v2637, 1.0
    %v2639 = vrcp.pop %v2638
    %v2640 = vmul.f32 %v2638, %v2639
    %v2641 = vsub.f32 1.0, %v2640
    %v2642 = vmul.f32 %v2639, %v2641
    %v2643 = vadd.f32 %v2639, %v2642
    %vm2644 = vweird.f32 %v2638
    %vm2645 = vweird.f32 %v2639
    %vm2646 = vmor %vm2644, %vm2645
    %v2647 = vsel %vm2646, %v2639, %v2643
    %v2648 = vand.u32 2147483647, %v2638
    %vm2649 = vcmp.eq.f32.partialorder %v2648, 8.507059e+37
    %v2650 = vand.u32 %v2638, 2147483648
    %v2651 = vor.u32 1.1754944e-38, %v2650
    %v2652 = vsel %vm2649, %v2651, %v2647
    %v2653 = vmul.f32 1.0, %v2652
    %v2654 = vtanh.pop %v2634
    %v2655 = vmul.f32 %v2653, %v2497
    %2657 = vrot.lane.b32.xlu0 %v2654, 64
    %v2658 = vpop.permute.xlu0 %2657
    %v2660 = vmul.f32 %v2653, %v2658
    %2662 = vrot.lane.b32.xlu0 %v2660, 32
    %v2663 = vpop.permute.xlu0 %2662
    %v2665 = vadd.f32 %v2655, %v2663
    %v2666 = vtanh.pop %v2665
    %2668 = vrot.lane.b32.xlu0 %v2666, 64
    %v2669 = vpop.permute.xlu0 %2668
    %v2671 = vmul.f32 %v2653, %v2669
    %2673 = vrot.lane.b32.xlu0 %v2613, 32
    %v2674 = vpop.permute.xlu0 %2673
    %v2675 = vsel %vm203, %v2674, 0
    %2677 = vmatpush.msra.mxu0 0.0
    %2678 = vmatpush.msra.mxu0 0.0
    %2679 = vmatpush.msra.mxu0 0.0
    %2680 = vmatpush.msra.mxu0 0.0
    %2681 = vmatpush.msra.mxu0 0.0
    %2682 = vmatpush.msra.mxu0 0.0
    %2683 = vmatpush.msra.mxu0 0.0
    %2684 = vmatpush.msra.mxu0 0.0
    %2685 = vmatpush.msra.mxu0 0.0
    %2686 = vmatpush.msra.mxu0 0.0
    %2687 = vmatpush.msra.mxu0 0.0
    %2688 = vmatpush.msra.mxu0 0.0
    %2689 = vmatpush.msra.mxu0 %v2043
    %2690 = vmatpush.msra.mxu0 %v2042
    %2691 = vmatpush.msra.mxu0 %v2041
    %2692 = vmatpush.msra.mxu0 %v2040
    %2693 = vmatmul.f32.gmra.mxu0 %v2675
    %v2694 = vpop.f32.mrf.mxu0
    %v2695 = vadd.f32 0.0, %v2694
    %2696 = vdwg.mxu0
    %v2697 = vadd.f32 %v2191, %v2695
    %2699 = vrot.lane.b32.xlu0 %v2671, 32
    %v2700 = vpop.permute.xlu0 %2699
    %v2701 = vsel %vm203, %v2700, 0
    %2703 = vmatpush.msra.mxu0 0.0
    %2704 = vmatpush.msra.mxu0 0.0
    %2705 = vmatpush.msra.mxu0 0.0
    %2706 = vmatpush.msra.mxu0 0.0
    %2707 = vmatpush.msra.mxu0 0.0
    %2708 = vmatpush.msra.mxu0 0.0
    %2709 = vmatpush.msra.mxu0 0.0
    %2710 = vmatpush.msra.mxu0 0.0
    %2711 = vmatpush.msra.mxu0 0.0
    %2712 = vmatpush.msra.mxu0 0.0
    %2713 = vmatpush.msra.mxu0 0.0
    %2714 = vmatpush.msra.mxu0 0.0
    %2715 = vmatpush.msra.mxu0 %v2047
    %2716 = vmatpush.msra.mxu0 %v2046
    %2717 = vmatpush.msra.mxu0 %v2045
    %2718 = vmatpush.msra.mxu0 %v2044
    %2719 = vmatmul.f32.gmra.mxu0 %v2701
    %v2720 = vpop.f32.mrf.mxu0
    %v2721 = vadd.f32 0.0, %v2720
    %2722 = vdwg.mxu0
    %v2723 = vadd.f32 %v2191, %v2721
    %2724 = vmatpush.msra.mxu0 0.0
    %2725 = vmatpush.msra.mxu0 0.0
    %2726 = vmatpush.msra.mxu0 0.0
    %2727 = vmatpush.msra.mxu0 0.0
    %2728 = vmatpush.msra.mxu0 0.0
    %2729 = vmatpush.msra.mxu0 0.0
    %2730 = vmatpush.msra.mxu0 0.0
    %2731 = vmatpush.msra.mxu0 0.0
    %2732 = vmatpush.msra.mxu0 0.0
    %2733 = vmatpush.msra.mxu0 0.0
    %2734 = vmatpush.msra.mxu0 0.0
    %2735 = vmatpush.msra.mxu0 0.0
    %2736 = vmatpush.msra.mxu0 %v2035
    %2737 = vmatpush.msra.mxu0 %v2034
    %2738 = vmatpush.msra.mxu0 %v2033
    %2739 = vmatpush.msra.mxu0 %v2032
    %2740 = vmatmul.f32.gmra.mxu0 %v2675
    %v2741 = vpop.f32.mrf.mxu0
    %v2742 = vadd.f32 0.0, %v2741
    %2743 = vdwg.mxu0
    %v2744 = vadd.f32 %v1294, %v2742
    %v2745 = vxor.u32 %v2744, 2147483648
    %v2746 = vmul.f32 %v2745, 1.442695
    %v2747 = vpow.pop %v2746
    %v2748 = vadd.f32 %v2747, 1.0
    %v2749 = vrcp.pop %v2748
    %v2750 = vmul.f32 %v2748, %v2749
    %v2751 = vsub.f32 1.0, %v2750
    %v2752 = vmul.f32 %v2749, %v2751
    %v2753 = vadd.f32 %v2749, %v2752
    %vm2754 = vweird.f32 %v2748
    %vm2755 = vweird.f32 %v2749
    %vm2756 = vmor %vm2754, %vm2755
    %v2757 = vsel %vm2756, %v2749, %v2753
    %v2758 = vand.u32 2147483647, %v2748
    %vm2759 = vcmp.eq.f32.partialorder %v2758, 8.507059e+37
    %v2760 = vand.u32 %v2748, 2147483648
    %v2761 = vor.u32 1.1754944e-38, %v2760
    %v2762 = vsel %vm2759, %v2761, %v2757
    %v2763 = vmul.f32 1.0, %v2762
    %v2764 = vtanh.pop %v2744
    %v2765 = vmul.f32 %v2763, %v2607
    %2767 = vrot.lane.b32.xlu0 %v2764, 64
    %v2768 = vpop.permute.xlu0 %2767
    %v2770 = vmul.f32 %v2763, %v2768
    %2772 = vrot.lane.b32.xlu0 %v2770, 32
    %v2773 = vpop.permute.xlu0 %2772
    %v2775 = vadd.f32 %v2765, %v2773
    %v2776 = vtanh.pop %v2775
    %2778 = vrot.lane.b32.xlu0 %v2776, 64
    %v2779 = vpop.permute.xlu0 %2778
    %v2781 = vmul.f32 %v2763, %v2779
    %2782 = vmatpush.msra.mxu0 0.0
    %2783 = vmatpush.msra.mxu0 0.0
    %2784 = vmatpush.msra.mxu0 0.0
    %2785 = vmatpush.msra.mxu0 0.0
    %2786 = vmatpush.msra.mxu0 0.0
    %2787 = vmatpush.msra.mxu0 0.0
    %2788 = vmatpush.msra.mxu0 0.0
    %2789 = vmatpush.msra.mxu0 0.0
    %2790 = vmatpush.msra.mxu0 0.0
    %2791 = vmatpush.msra.mxu0 0.0
    %2792 = vmatpush.msra.mxu0 0.0
    %2793 = vmatpush.msra.mxu0 0.0
    %2794 = vmatpush.msra.mxu0 %v2039
    %2795 = vmatpush.msra.mxu0 %v2038
    %2796 = vmatpush.msra.mxu0 %v2037
    %2797 = vmatpush.msra.mxu0 %v2036
    %2798 = vmatmul.f32.gmra.mxu0 %v2701
    %v2799 = vpop.f32.mrf.mxu0
    %v2800 = vadd.f32 0.0, %v2799
    %2801 = vdwg.mxu0
    %v2802 = vadd.f32 %v1344, %v2800
    %v2803 = vxor.u32 %v2802, 2147483648
    %v2804 = vmul.f32 %v2803, 1.442695
    %v2805 = vpow.pop %v2804
    %v2806 = vadd.f32 %v2805, 1.0
    %v2807 = vrcp.pop %v2806
    %v2808 = vmul.f32 %v2806, %v2807
    %v2809 = vsub.f32 1.0, %v2808
    %v2810 = vmul.f32 %v2807, %v2809
    %v2811 = vadd.f32 %v2807, %v2810
    %vm2812 = vweird.f32 %v2806
    %vm2813 = vweird.f32 %v2807
    %vm2814 = vmor %vm2812, %vm2813
    %v2815 = vsel %vm2814, %v2807, %v2811
    %v2816 = vand.u32 2147483647, %v2806
    %vm2817 = vcmp.eq.f32.partialorder %v2816, 8.507059e+37
    %v2818 = vand.u32 %v2806, 2147483648
    %v2819 = vor.u32 1.1754944e-38, %v2818
    %v2820 = vsel %vm2817, %v2819, %v2815
    %v2821 = vmul.f32 1.0, %v2820
    %v2822 = vtanh.pop %v2802
    %v2823 = vmul.f32 %v2821, %v2665
    %2825 = vrot.lane.b32.xlu0 %v2822, 64
    %v2826 = vpop.permute.xlu0 %2825
    %v2828 = vmul.f32 %v2821, %v2826
    %2830 = vrot.lane.b32.xlu0 %v2828, 32
    %v2831 = vpop.permute.xlu0 %2830
    %v2833 = vadd.f32 %v2823, %v2831
    %v2834 = vtanh.pop %v2833
    %2836 = vrot.lane.b32.xlu0 %v2834, 64
    %v2837 = vpop.permute.xlu0 %2836
    %v2839 = vmul.f32 %v2821, %v2837
    %2841 = vrot.lane.b32.xlu0 %v2781, 32
    %v2842 = vpop.permute.xlu0 %2841
    %v2843 = vsel %vm203, %v2842, 0
    %2845 = vmatpush.msra.mxu0 0.0
    %2846 = vmatpush.msra.mxu0 0.0
    %2847 = vmatpush.msra.mxu0 0.0
    %2848 = vmatpush.msra.mxu0 0.0
    %2849 = vmatpush.msra.mxu0 0.0
    %2850 = vmatpush.msra.mxu0 0.0
    %2851 = vmatpush.msra.mxu0 0.0
    %2852 = vmatpush.msra.mxu0 0.0
    %2853 = vmatpush.msra.mxu0 0.0
    %2854 = vmatpush.msra.mxu0 0.0
    %2855 = vmatpush.msra.mxu0 0.0
    %2856 = vmatpush.msra.mxu0 0.0
    %2857 = vmatpush.msra.mxu0 %v2043
    %2858 = vmatpush.msra.mxu0 %v2042
    %2859 = vmatpush.msra.mxu0 %v2041
    %2860 = vmatpush.msra.mxu0 %v2040
    %2861 = vmatmul.f32.gmra.mxu0 %v2843
    %v2862 = vpop.f32.mrf.mxu0
    %v2863 = vadd.f32 0.0, %v2862
    %2864 = vdwg.mxu0
    %v2865 = vadd.f32 %v2723, %v2863
    %2867 = vrot.lane.b32.xlu0 %v2839, 32
    %v2868 = vpop.permute.xlu0 %2867
    %v2869 = vsel %vm203, %v2868, 0
    %2871 = vmatpush.msra.mxu0 0.0
    %2872 = vmatpush.msra.mxu0 0.0
    %2873 = vmatpush.msra.mxu0 0.0
    %2874 = vmatpush.msra.mxu0 0.0
    %2875 = vmatpush.msra.mxu0 0.0
    %2876 = vmatpush.msra.mxu0 0.0
    %2877 = vmatpush.msra.mxu0 0.0
    %2878 = vmatpush.msra.mxu0 0.0
    %2879 = vmatpush.msra.mxu0 0.0
    %2880 = vmatpush.msra.mxu0 0.0
    %2881 = vmatpush.msra.mxu0 0.0
    %2882 = vmatpush.msra.mxu0 0.0
    %2883 = vmatpush.msra.mxu0 %v2047
    %2884 = vmatpush.msra.mxu0 %v2046
    %2885 = vmatpush.msra.mxu0 %v2045
    %2886 = vmatpush.msra.mxu0 %v2044
    %2887 = vmatmul.f32.gmra.mxu0 %v2869
    %v2888 = vpop.f32.mrf.mxu0
    %v2889 = vadd.f32 0.0, %v2888
    %2890 = vdwg.mxu0
    %v2891 = vadd.f32 %v2697, %v2889
    %2892 = vmatpush.msra.mxu0 0.0
    %2893 = vmatpush.msra.mxu0 0.0
    %2894 = vmatpush.msra.mxu0 0.0
    %2895 = vmatpush.msra.mxu0 0.0
    %2896 = vmatpush.msra.mxu0 0.0
    %2897 = vmatpush.msra.mxu0 0.0
    %2898 = vmatpush.msra.mxu0 0.0
    %2899 = vmatpush.msra.mxu0 0.0
    %2900 = vmatpush.msra.mxu0 0.0
    %2901 = vmatpush.msra.mxu0 0.0
    %2902 = vmatpush.msra.mxu0 0.0
    %2903 = vmatpush.msra.mxu0 0.0
    %2904 = vmatpush.msra.mxu0 %v2035
    %2905 = vmatpush.msra.mxu0 %v2034
    %2906 = vmatpush.msra.mxu0 %v2033
    %2907 = vmatpush.msra.mxu0 %v2032
    %2908 = vmatmul.f32.gmra.mxu0 %v2843
    %v2909 = vpop.f32.mrf.mxu0
    %v2910 = vadd.f32 0.0, %v2909
    %2911 = vdwg.mxu0
    %v2912 = vadd.f32 %v1523, %v2910
    %v2913 = vxor.u32 %v2912, 2147483648
    %v2914 = vmul.f32 %v2913, 1.442695
    %v2915 = vpow.pop %v2914
    %v2916 = vadd.f32 %v2915, 1.0
    %v2917 = vrcp.pop %v2916
    %v2918 = vmul.f32 %v2916, %v2917
    %v2919 = vsub.f32 1.0, %v2918
    %v2920 = vmul.f32 %v2917, %v2919
    %v2921 = vadd.f32 %v2917, %v2920
    %vm2922 = vweird.f32 %v2916
    %vm2923 = vweird.f32 %v2917
    %vm2924 = vmor %vm2922, %vm2923
    %v2925 = vsel %vm2924, %v2917, %v2921
    %v2926 = vand.u32 2147483647, %v2916
    %vm2927 = vcmp.eq.f32.partialorder %v2926, 8.507059e+37
    %v2928 = vand.u32 %v2916, 2147483648
    %v2929 = vor.u32 1.1754944e-38, %v2928
    %v2930 = vsel %vm2927, %v2929, %v2925
    %v2931 = vmul.f32 1.0, %v2930
    %v2932 = vtanh.pop %v2912
    %v2933 = vmul.f32 %v2931, %v2775
    %2935 = vrot.lane.b32.xlu0 %v2932, 64
    %v2936 = vpop.permute.xlu0 %2935
    %v2938 = vmul.f32 %v2931, %v2936
    %2940 = vrot.lane.b32.xlu0 %v2938, 32
    %v2941 = vpop.permute.xlu0 %2940
    %v2943 = vadd.f32 %v2933, %v2941
    %v2944 = vtanh.pop %v2943
    %2946 = vrot.lane.b32.xlu0 %v2944, 64
    %v2947 = vpop.permute.xlu0 %2946
    %v2949 = vmul.f32 %v2931, %v2947
    %2950 = vmatpush.msra.mxu0 0.0
    %2951 = vmatpush.msra.mxu0 0.0
    %2952 = vmatpush.msra.mxu0 0.0
    %2953 = vmatpush.msra.mxu0 0.0
    %2954 = vmatpush.msra.mxu0 0.0
    %2955 = vmatpush.msra.mxu0 0.0
    %2956 = vmatpush.msra.mxu0 0.0
    %2957 = vmatpush.msra.mxu0 0.0
    %2958 = vmatpush.msra.mxu0 0.0
    %2959 = vmatpush.msra.mxu0 0.0
    %2960 = vmatpush.msra.mxu0 0.0
    %2961 = vmatpush.msra.mxu0 0.0
    %2962 = vmatpush.msra.mxu0 %v2039
    %2963 = vmatpush.msra.mxu0 %v2038
    %2964 = vmatpush.msra.mxu0 %v2037
    %2965 = vmatpush.msra.mxu0 %v2036
    %2966 = vmatmul.f32.gmra.mxu0 %v2869
    %v2967 = vpop.f32.mrf.mxu0
    %v2968 = vadd.f32 0.0, %v2967
    %2969 = vdwg.mxu0
    %v2970 = vadd.f32 %v1573, %v2968
    %v2971 = vxor.u32 %v2970, 2147483648
    %v2972 = vmul.f32 %v2971, 1.442695
    %v2973 = vpow.pop %v2972
    %v2974 = vadd.f32 %v2973, 1.0
    %v2975 = vrcp.pop %v2974
    %v2976 = vmul.f32 %v2974, %v2975
    %v2977 = vsub.f32 1.0, %v2976
    %v2978 = vmul.f32 %v2975, %v2977
    %v2979 = vadd.f32 %v2975, %v2978
    %vm2980 = vweird.f32 %v2974
    %vm2981 = vweird.f32 %v2975
    %vm2982 = vmor %vm2980, %vm2981
    %v2983 = vsel %vm2982, %v2975, %v2979
    %v2984 = vand.u32 2147483647, %v2974
    %vm2985 = vcmp.eq.f32.partialorder %v2984, 8.507059e+37
    %v2986 = vand.u32 %v2974, 2147483648
    %v2987 = vor.u32 1.1754944e-38, %v2986
    %v2988 = vsel %vm2985, %v2987, %v2983
    %v2989 = vmul.f32 1.0, %v2988
    %v2990 = vtanh.pop %v2970
    %v2991 = vmul.f32 %v2989, %v2833
    %2993 = vrot.lane.b32.xlu0 %v2990, 64
    %v2994 = vpop.permute.xlu0 %2993
    %v2996 = vmul.f32 %v2989, %v2994
    %2998 = vrot.lane.b32.xlu0 %v2996, 32
    %v2999 = vpop.permute.xlu0 %2998
    %v3001 = vadd.f32 %v2991, %v2999
    %v3002 = vtanh.pop %v3001
    %3004 = vrot.lane.b32.xlu0 %v3002, 64
    %v3005 = vpop.permute.xlu0 %3004
    %v3007 = vmul.f32 %v2989, %v3005
    %3009 = vrot.lane.b32.xlu0 %v2949, 32
    %v3010 = vpop.permute.xlu0 %3009
    %v3011 = vsel %vm203, %v3010, 0
    %3013 = vmatpush.msra.mxu0 0.0
    %3014 = vmatpush.msra.mxu0 0.0
    %3015 = vmatpush.msra.mxu0 0.0
    %3016 = vmatpush.msra.mxu0 0.0
    %3017 = vmatpush.msra.mxu0 0.0
    %3018 = vmatpush.msra.mxu0 0.0
    %3019 = vmatpush.msra.mxu0 0.0
    %3020 = vmatpush.msra.mxu0 0.0
    %3021 = vmatpush.msra.mxu0 0.0
    %3022 = vmatpush.msra.mxu0 0.0
    %3023 = vmatpush.msra.mxu0 0.0
    %3024 = vmatpush.msra.mxu0 0.0
    %3025 = vmatpush.msra.mxu0 %v2043
    %3026 = vmatpush.msra.mxu0 %v2042
    %3027 = vmatpush.msra.mxu0 %v2041
    %3028 = vmatpush.msra.mxu0 %v2040
    %3029 = vmatmul.f32.gmra.mxu0 %v3011
    %v3030 = vpop.f32.mrf.mxu0
    %v3031 = vadd.f32 0.0, %v3030
    %3032 = vdwg.mxu0
    %v3033 = vadd.f32 %v2555, %v3031
    %3035 = vrot.lane.b32.xlu0 %v3007, 32
    %v3036 = vpop.permute.xlu0 %3035
    %v3037 = vsel %vm203, %v3036, 0
    %3039 = vmatpush.msra.mxu0 0.0
    %3040 = vmatpush.msra.mxu0 0.0
    %3041 = vmatpush.msra.mxu0 0.0
    %3042 = vmatpush.msra.mxu0 0.0
    %3043 = vmatpush.msra.mxu0 0.0
    %3044 = vmatpush.msra.mxu0 0.0
    %3045 = vmatpush.msra.mxu0 0.0
    %3046 = vmatpush.msra.mxu0 0.0
    %3047 = vmatpush.msra.mxu0 0.0
    %3048 = vmatpush.msra.mxu0 0.0
    %3049 = vmatpush.msra.mxu0 0.0
    %3050 = vmatpush.msra.mxu0 0.0
    %3051 = vmatpush.msra.mxu0 %v2047
    %3052 = vmatpush.msra.mxu0 %v2046
    %3053 = vmatpush.msra.mxu0 %v2045
    %3054 = vmatpush.msra.mxu0 %v2044
    %3055 = vmatmul.f32.gmra.mxu0 %v3037
    %v3056 = vpop.f32.mrf.mxu0
    %v3057 = vadd.f32 0.0, %v3056
    %3058 = vdwg.mxu0
    %v3059 = vadd.f32 %v2529, %v3057
    %3060 = vmatpush.msra.mxu0 0.0
    %3061 = vmatpush.msra.mxu0 0.0
    %3062 = vmatpush.msra.mxu0 0.0
    %3063 = vmatpush.msra.mxu0 0.0
    %3064 = vmatpush.msra.mxu0 0.0
    %3065 = vmatpush.msra.mxu0 0.0
    %3066 = vmatpush.msra.mxu0 0.0
    %3067 = vmatpush.msra.mxu0 0.0
    %3068 = vmatpush.msra.mxu0 0.0
    %3069 = vmatpush.msra.mxu0 0.0
    %3070 = vmatpush.msra.mxu0 0.0
    %3071 = vmatpush.msra.mxu0 0.0
    %3072 = vmatpush.msra.mxu0 %v2035
    %3073 = vmatpush.msra.mxu0 %v2034
    %3074 = vmatpush.msra.mxu0 %v2033
    %3075 = vmatpush.msra.mxu0 %v2032
    %3076 = vmatmul.f32.gmra.mxu0 %v3011
    %v3077 = vpop.f32.mrf.mxu0
    %v3078 = vadd.f32 0.0, %v3077
    %3079 = vdwg.mxu0
    %v3080 = vadd.f32 %v1752, %v3078
    %v3081 = vxor.u32 %v3080, 2147483648
    %v3082 = vmul.f32 %v3081, 1.442695
    %v3083 = vpow.pop %v3082
    %v3084 = vadd.f32 %v3083, 1.0
    %v3085 = vrcp.pop %v3084
    %v3086 = vmul.f32 %v3084, %v3085
    %v3087 = vsub.f32 1.0, %v3086
    %v3088 = vmul.f32 %v3085, %v3087
    %v3089 = vadd.f32 %v3085, %v3088
    %vm3090 = vweird.f32 %v3084
    %vm3091 = vweird.f32 %v3085
    %vm3092 = vmor %vm3090, %vm3091
    %v3093 = vsel %vm3092, %v3085, %v3089
    %v3094 = vand.u32 2147483647, %v3084
    %vm3095 = vcmp.eq.f32.partialorder %v3094, 8.507059e+37
    %v3096 = vand.u32 %v3084, 2147483648
    %v3097 = vor.u32 1.1754944e-38, %v3096
    %v3098 = vsel %vm3095, %v3097, %v3093
    %v3099 = vmul.f32 1.0, %v3098
    %v3100 = vtanh.pop %v3080
    %v3101 = vmul.f32 %v3099, %v2943
    %3103 = vrot.lane.b32.xlu0 %v3100, 64
    %v3104 = vpop.permute.xlu0 %3103
    %v3106 = vmul.f32 %v3099, %v3104
    %3108 = vrot.lane.b32.xlu0 %v3106, 32
    %v3109 = vpop.permute.xlu0 %3108
    %v3111 = vadd.f32 %v3101, %v3109
    %v3112 = vtanh.pop %v3111
    %3114 = vrot.lane.b32.xlu0 %v3112, 64
    %v3115 = vpop.permute.xlu0 %3114
    %v3117 = vmul.f32 %v3099, %v3115
    %3118 = vmatpush.msra.mxu0 0.0
    %3119 = vmatpush.msra.mxu0 0.0
    %3120 = vmatpush.msra.mxu0 0.0
    %3121 = vmatpush.msra.mxu0 0.0
    %3122 = vmatpush.msra.mxu0 0.0
    %3123 = vmatpush.msra.mxu0 0.0
    %3124 = vmatpush.msra.mxu0 0.0
    %3125 = vmatpush.msra.mxu0 0.0
    %3126 = vmatpush.msra.mxu0 0.0
    %3127 = vmatpush.msra.mxu0 0.0
    %3128 = vmatpush.msra.mxu0 0.0
    %3129 = vmatpush.msra.mxu0 0.0
    %3130 = vmatpush.msra.mxu0 %v2039
    %3131 = vmatpush.msra.mxu0 %v2038
    %3132 = vmatpush.msra.mxu0 %v2037
    %3133 = vmatpush.msra.mxu0 %v2036
    %3134 = vmatmul.f32.gmra.mxu0 %v3037
    %v3135 = vpop.f32.mrf.mxu0
    %v3136 = vadd.f32 0.0, %v3135
    %3137 = vdwg.mxu0
    %v3138 = vadd.f32 %v1802, %v3136
    %v3139 = vxor.u32 %v3138, 2147483648
    %v3140 = vmul.f32 %v3139, 1.442695
    %v3141 = vpow.pop %v3140
    %v3142 = vadd.f32 %v3141, 1.0
    %v3143 = vrcp.pop %v3142
    %v3144 = vmul.f32 %v3142, %v3143
    %v3145 = vsub.f32 1.0, %v3144
    %v3146 = vmul.f32 %v3143, %v3145
    %v3147 = vadd.f32 %v3143, %v3146
    %vm3148 = vweird.f32 %v3142
    %vm3149 = vweird.f32 %v3143
    %vm3150 = vmor %vm3148, %vm3149
    %v3151 = vsel %vm3150, %v3143, %v3147
    %v3152 = vand.u32 2147483647, %v3142
    %vm3153 = vcmp.eq.f32.partialorder %v3152, 8.507059e+37
    %v3154 = vand.u32 %v3142, 2147483648
    %v3155 = vor.u32 1.1754944e-38, %v3154
    %v3156 = vsel %vm3153, %v3155, %v3151
    %v3157 = vmul.f32 1.0, %v3156
    %v3158 = vtanh.pop %v3138
    %v3159 = vmul.f32 %v3157, %v3001
    %3161 = vrot.lane.b32.xlu0 %v3158, 64
    %v3162 = vpop.permute.xlu0 %3161
    %v3164 = vmul.f32 %v3157, %v3162
    %3166 = vrot.lane.b32.xlu0 %v3164, 32
    %v3167 = vpop.permute.xlu0 %3166
    %v3169 = vadd.f32 %v3159, %v3167
    %v3170 = vtanh.pop %v3169
    %3172 = vrot.lane.b32.xlu0 %v3170, 64
    %v3173 = vpop.permute.xlu0 %3172
    %v3175 = vmul.f32 %v3157, %v3173
    %3177 = vrot.lane.b32.xlu0 %v3117, 32
    %v3178 = vpop.permute.xlu0 %3177
    %v3179 = vsel %vm203, %v3178, 0
    %3181 = vmatpush.msra.mxu0 0.0
    %3182 = vmatpush.msra.mxu0 0.0
    %3183 = vmatpush.msra.mxu0 0.0
    %3184 = vmatpush.msra.mxu0 0.0
    %3185 = vmatpush.msra.mxu0 0.0
    %3186 = vmatpush.msra.mxu0 0.0
    %3187 = vmatpush.msra.mxu0 0.0
    %3188 = vmatpush.msra.mxu0 0.0
    %3189 = vmatpush.msra.mxu0 0.0
    %3190 = vmatpush.msra.mxu0 0.0
    %3191 = vmatpush.msra.mxu0 0.0
    %3192 = vmatpush.msra.mxu0 0.0
    %3193 = vmatpush.msra.mxu0 %v2043
    %3194 = vmatpush.msra.mxu0 %v2042
    %3195 = vmatpush.msra.mxu0 %v2041
    %3196 = vmatpush.msra.mxu0 %v2040
    %3197 = vmatmul.f32.gmra.mxu0 %v3179
    %v3198 = vpop.f32.mrf.mxu0
    %v3199 = vadd.f32 0.0, %v3198
    %3200 = vdwg.mxu0
    %v3201 = vadd.f32 %v2387, %v3199
    %3203 = vrot.lane.b32.xlu0 %v3175, 32
    %v3204 = vpop.permute.xlu0 %3203
    %v3205 = vsel %vm203, %v3204, 0
    %3207 = vmatpush.msra.mxu0 0.0
    %3208 = vmatpush.msra.mxu0 0.0
    %3209 = vmatpush.msra.mxu0 0.0
    %3210 = vmatpush.msra.mxu0 0.0
    %3211 = vmatpush.msra.mxu0 0.0
    %3212 = vmatpush.msra.mxu0 0.0
    %3213 = vmatpush.msra.mxu0 0.0
    %3214 = vmatpush.msra.mxu0 0.0
    %3215 = vmatpush.msra.mxu0 0.0
    %3216 = vmatpush.msra.mxu0 0.0
    %3217 = vmatpush.msra.mxu0 0.0
    %3218 = vmatpush.msra.mxu0 0.0
    %3219 = vmatpush.msra.mxu0 %v2047
    %3220 = vmatpush.msra.mxu0 %v2046
    %3221 = vmatpush.msra.mxu0 %v2045
    %3222 = vmatpush.msra.mxu0 %v2044
    %3223 = vmatmul.f32.gmra.mxu0 %v3205
    %v3224 = vpop.f32.mrf.mxu0
    %v3225 = vadd.f32 0.0, %v3224
    %3226 = vdwg.mxu0
    %v3227 = vadd.f32 %v2361, %v3225
    %3228 = vmatpush.msra.mxu0 0.0
    %3229 = vmatpush.msra.mxu0 0.0
    %3230 = vmatpush.msra.mxu0 0.0
    %3231 = vmatpush.msra.mxu0 0.0
    %3232 = vmatpush.msra.mxu0 0.0
    %3233 = vmatpush.msra.mxu0 0.0
    %3234 = vmatpush.msra.mxu0 0.0
    %3235 = vmatpush.msra.mxu0 0.0
    %3236 = vmatpush.msra.mxu0 0.0
    %3237 = vmatpush.msra.mxu0 0.0
    %3238 = vmatpush.msra.mxu0 0.0
    %3239 = vmatpush.msra.mxu0 0.0
    %3240 = vmatpush.msra.mxu0 %v2035
    %3241 = vmatpush.msra.mxu0 %v2034
    %3242 = vmatpush.msra.mxu0 %v2033
    %3243 = vmatpush.msra.mxu0 %v2032
    %3244 = vmatmul.f32.gmra.mxu0 %v3179
    %v3245 = vpop.f32.mrf.mxu0
    %v3246 = vadd.f32 0.0, %v3245
    %3247 = vdwg.mxu0
    %v3248 = vadd.f32 %v1981, %v3246
    %v3249 = vxor.u32 %v3248, 2147483648
    %v3250 = vmul.f32 %v3249, 1.442695
    %v3251 = vpow.pop %v3250
    %v3252 = vadd.f32 %v3251, 1.0
    %v3253 = vrcp.pop %v3252
    %v3254 = vmul.f32 %v3252, %v3253
    %v3255 = vsub.f32 1.0, %v3254
    %v3256 = vmul.f32 %v3253, %v3255
    %v3257 = vadd.f32 %v3253, %v3256
    %vm3258 = vweird.f32 %v3252
    %vm3259 = vweird.f32 %v3253
    %vm3260 = vmor %vm3258, %vm3259
    %v3261 = vsel %vm3260, %v3253, %v3257
    %v3262 = vand.u32 2147483647, %v3252
    %vm3263 = vcmp.eq.f32.partialorder %v3262, 8.507059e+37
    %v3264 = vand.u32 %v3252, 2147483648
    %v3265 = vor.u32 1.1754944e-38, %v3264
    %v3266 = vsel %vm3263, %v3265, %v3261
    %v3267 = vmul.f32 1.0, %v3266
    %v3268 = vtanh.pop %v3248
    %v3269 = vmul.f32 %v3267, %v3111
    %3271 = vrot.lane.b32.xlu0 %v3268, 64
    %v3272 = vpop.permute.xlu0 %3271
    %v3274 = vmul.f32 %v3267, %v3272
    %3276 = vrot.lane.b32.xlu0 %v3274, 32
    %v3277 = vpop.permute.xlu0 %3276
    %v3279 = vadd.f32 %v3269, %v3277
    %v3280 = vtanh.pop %v3279
    %3282 = vrot.lane.b32.xlu0 %v3280, 64
    %v3283 = vpop.permute.xlu0 %3282
    %v3285 = vmul.f32 %v3267, %v3283
    %3286 = vmatpush.msra.mxu0 0.0
    %3287 = vmatpush.msra.mxu0 0.0
    %3288 = vmatpush.msra.mxu0 0.0
    %3289 = vmatpush.msra.mxu0 0.0
    %3290 = vmatpush.msra.mxu0 0.0
    %3291 = vmatpush.msra.mxu0 0.0
    %3292 = vmatpush.msra.mxu0 0.0
    %3293 = vmatpush.msra.mxu0 0.0
    %3294 = vmatpush.msra.mxu0 0.0
    %3295 = vmatpush.msra.mxu0 0.0
    %3296 = vmatpush.msra.mxu0 0.0
    %3297 = vmatpush.msra.mxu0 0.0
    %3298 = vmatpush.msra.mxu0 %v2039
    %3299 = vmatpush.msra.mxu0 %v2038
    %3300 = vmatpush.msra.mxu0 %v2037
    %3301 = vmatpush.msra.mxu0 %v2036
    %3302 = vmatmul.f32.gmra.mxu0 %v3205
    %v3303 = vpop.f32.mrf.mxu0
    %v3304 = vadd.f32 0.0, %v3303
    %3305 = vdwg.mxu0
    %v3306 = vadd.f32 %v2031, %v3304
    %v3307 = vxor.u32 %v3306, 2147483648
    %v3308 = vmul.f32 %v3307, 1.442695
    %v3309 = vpow.pop %v3308
    %v3310 = vadd.f32 %v3309, 1.0
    %v3311 = vrcp.pop %v3310
    %v3312 = vmul.f32 %v3310, %v3311
    %v3313 = vsub.f32 1.0, %v3312
    %v3314 = vmul.f32 %v3311, %v3313
    %v3315 = vadd.f32 %v3311, %v3314
    %vm3316 = vweird.f32 %v3310
    %vm3317 = vweird.f32 %v3311
    %vm3318 = vmor %vm3316, %vm3317
    %v3319 = vsel %vm3318, %v3311, %v3315
    %v3320 = vand.u32 2147483647, %v3310
    %vm3321 = vcmp.eq.f32.partialorder %v3320, 8.507059e+37
    %v3322 = vand.u32 %v3310, 2147483648
    %v3323 = vor.u32 1.1754944e-38, %v3322
    %v3324 = vsel %vm3321, %v3323, %v3319
    %v3325 = vmul.f32 1.0, %v3324
    %v3326 = vtanh.pop %v3306
    %v3327 = vmul.f32 %v3325, %v3169
    %3329 = vrot.lane.b32.xlu0 %v3326, 64
    %v3330 = vpop.permute.xlu0 %3329
    %v3332 = vmul.f32 %v3325, %v3330
    %3334 = vrot.lane.b32.xlu0 %v3332, 32
    %v3335 = vpop.permute.xlu0 %3334
    %v3337 = vadd.f32 %v3327, %v3335
    %v3338 = vtanh.pop %v3337
    %3340 = vrot.lane.b32.xlu0 %v3338, 64
    %v3341 = vpop.permute.xlu0 %3340
    %v3343 = vmul.f32 %v3325, %v3341
    %3345 = vrot.lane.b32.xlu0 %v3285, 32
    %v3346 = vpop.permute.xlu0 %3345
    %v3347 = vsel %vm203, %v3346, 0
    %3349 = vmatpush.msra.mxu0 0.0
    %3350 = vmatpush.msra.mxu0 0.0
    %3351 = vmatpush.msra.mxu0 0.0
    %3352 = vmatpush.msra.mxu0 0.0
    %3353 = vmatpush.msra.mxu0 0.0
    %3354 = vmatpush.msra.mxu0 0.0
    %3355 = vmatpush.msra.mxu0 0.0
    %3356 = vmatpush.msra.mxu0 0.0
    %3357 = vmatpush.msra.mxu0 0.0
    %3358 = vmatpush.msra.mxu0 0.0
    %3359 = vmatpush.msra.mxu0 0.0
    %3360 = vmatpush.msra.mxu0 0.0
    %3361 = vmatpush.msra.mxu0 %v2043
    %3362 = vmatpush.msra.mxu0 %v2042
    %3363 = vmatpush.msra.mxu0 %v2041
    %3364 = vmatpush.msra.mxu0 %v2040
    %3365 = vmatmul.f32.gmra.mxu0 %v3347
    %v3366 = vpop.f32.mrf.mxu0
    %v3367 = vadd.f32 0.0, %v3366
    %3368 = vdwg.mxu0
    %v3369 = vadd.f32 %v2219, %v3367
    %3371 = vrot.lane.b32.xlu0 %v3343, 32
    %v3372 = vpop.permute.xlu0 %3371
    %v3373 = vsel %vm203, %v3372, 0
    %3375 = vmatpush.msra.mxu0 0.0
    %3376 = vmatpush.msra.mxu0 0.0
    %3377 = vmatpush.msra.mxu0 0.0
    %3378 = vmatpush.msra.mxu0 0.0
    %3379 = vmatpush.msra.mxu0 0.0
    %3380 = vmatpush.msra.mxu0 0.0
    %3381 = vmatpush.msra.mxu0 0.0
    %3382 = vmatpush.msra.mxu0 0.0
    %3383 = vmatpush.msra.mxu0 0.0
    %3384 = vmatpush.msra.mxu0 0.0
    %3385 = vmatpush.msra.mxu0 0.0
    %3386 = vmatpush.msra.mxu0 0.0
    %3387 = vmatpush.msra.mxu0 %v2047
    %3388 = vmatpush.msra.mxu0 %v2046
    %3389 = vmatpush.msra.mxu0 %v2045
    %3390 = vmatpush.msra.mxu0 %v2044
    %3391 = vmatmul.f32.gmra.mxu0 %v3373
    %v3392 = vpop.f32.mrf.mxu0
    %v3393 = vadd.f32 0.0, %v3392
    %3394 = vdwg.mxu0
    %v3395 = vadd.f32 %v2193, %v3393
    %v3396 = vld [vmem:[#allocation11] sm:$0xff]
    %v3397 = vld [vmem:[#allocation11 + $0x8] sm:$0xff]
    %v3398 = vld [vmem:[#allocation11 + $0x10] sm:$0xff]
    %v3399 = vld [vmem:[#allocation11 + $0x18] sm:$0xff]
    %3400 = vmatpush.msra.mxu0 0.0
    %3401 = vmatpush.msra.mxu0 0.0
    %3402 = vmatpush.msra.mxu0 0.0
    %3403 = vmatpush.msra.mxu0 0.0
    %3404 = vmatpush.msra.mxu0 0.0
    %3405 = vmatpush.msra.mxu0 0.0
    %3406 = vmatpush.msra.mxu0 0.0
    %3407 = vmatpush.msra.mxu0 0.0
    %3408 = vmatpush.msra.mxu0 0.0
    %3409 = vmatpush.msra.mxu0 0.0
    %3410 = vmatpush.msra.mxu0 0.0
    %3411 = vmatpush.msra.mxu0 0.0
    %3412 = vmatpush.msra.mxu0 %v3399
    %3413 = vmatpush.msra.mxu0 %v3398
    %3414 = vmatpush.msra.mxu0 %v3397
    %3415 = vmatpush.msra.mxu0 %v3396
    %3416 = vmatmul.f32.gmra.mxu0 %v205
    %v3417 = vpop.f32.mrf.mxu0
    %v3418 = vadd.f32 0.0, %v3417
    %3419 = vdwg.mxu0
    %v3420 = vadd.f32 %v3395, %v3418
    %v3421 = vxor.u32 %v3420, 2147483648
    %v3422 = vmul.f32 %v3421, 1.442695
    %v3423 = vpow.pop %v3422
    %v3424 = vadd.f32 %v3423, 1.0
    %v3425 = vrcp.pop %v3424
    %v3426 = vmul.f32 %v3424, %v3425
    %v3427 = vsub.f32 1.0, %v3426
    %v3428 = vmul.f32 %v3425, %v3427
    %v3429 = vadd.f32 %v3425, %v3428
    %vm3430 = vweird.f32 %v3424
    %vm3431 = vweird.f32 %v3425
    %vm3432 = vmor %vm3430, %vm3431
    %v3433 = vsel %vm3432, %v3425, %v3429
    %v3434 = vand.u32 2147483647, %v3424
    %vm3435 = vcmp.eq.f32.partialorder %v3434, 8.507059e+37
    %v3436 = vand.u32 %v3424, 2147483648
    %v3437 = vor.u32 1.1754944e-38, %v3436
    %v3438 = vsel %vm3435, %v3437, %v3433
    %v3439 = vmul.f32 1.0, %v3438
    %v3440 = vtanh.pop %v3420
    %v3441 = vmul.f32 %v3439, 0.0
    %3443 = vrot.lane.b32.xlu0 %v3440, 64
    %v3444 = vpop.permute.xlu0 %3443
    %v3446 = vmul.f32 %v3439, %v3444
    %3448 = vrot.lane.b32.xlu0 %v3446, 32
    %v3449 = vpop.permute.xlu0 %3448
    %v3451 = vadd.f32 %v3441, %v3449
    %v3452 = vtanh.pop %v3451
    %3454 = vrot.lane.b32.xlu0 %v3452, 64
    %v3455 = vpop.permute.xlu0 %3454
    %v3457 = vmul.f32 %v3439, %v3455
    %3459 = vrot.lane.b32.xlu0 %v3457, 32
    %v3460 = vpop.permute.xlu0 %3459
    %v3461 = vsel %vm203, %v3460, 0
    %3463 = vmatpush.msra.mxu0 0.0
    %3464 = vmatpush.msra.mxu0 0.0
    %3465 = vmatpush.msra.mxu0 0.0
    %3466 = vmatpush.msra.mxu0 0.0
    %3467 = vmatpush.msra.mxu0 0.0
    %3468 = vmatpush.msra.mxu0 0.0
    %3469 = vmatpush.msra.mxu0 0.0
    %3470 = vmatpush.msra.mxu0 0.0
    %3471 = vmatpush.msra.mxu0 0.0
    %3472 = vmatpush.msra.mxu0 0.0
    %3473 = vmatpush.msra.mxu0 0.0
    %3474 = vmatpush.msra.mxu0 0.0
    %3475 = vmatpush.msra.mxu0 %v3399
    %3476 = vmatpush.msra.mxu0 %v3398
    %3477 = vmatpush.msra.mxu0 %v3397
    %3478 = vmatpush.msra.mxu0 %v3396
    %3479 = vmatmul.f32.gmra.mxu0 %v3461
    %v3480 = vpop.f32.mrf.mxu0
    %v3481 = vadd.f32 0.0, %v3480
    %3482 = vdwg.mxu0
    %v3483 = vadd.f32 %v3227, %v3481
    %v3484 = vxor.u32 %v3483, 2147483648
    %v3485 = vmul.f32 %v3484, 1.442695
    %v3486 = vpow.pop %v3485
    %v3487 = vadd.f32 %v3486, 1.0
    %v3488 = vrcp.pop %v3487
    %v3489 = vmul.f32 %v3487, %v3488
    %v3490 = vsub.f32 1.0, %v3489
    %v3491 = vmul.f32 %v3488, %v3490
    %v3492 = vadd.f32 %v3488, %v3491
    %vm3493 = vweird.f32 %v3487
    %vm3494 = vweird.f32 %v3488
    %vm3495 = vmor %vm3493, %vm3494
    %v3496 = vsel %vm3495, %v3488, %v3492
    %v3497 = vand.u32 2147483647, %v3487
    %vm3498 = vcmp.eq.f32.partialorder %v3497, 8.507059e+37
    %v3499 = vand.u32 %v3487, 2147483648
    %v3500 = vor.u32 1.1754944e-38, %v3499
    %v3501 = vsel %vm3498, %v3500, %v3496
    %v3502 = vmul.f32 1.0, %v3501
    %v3503 = vtanh.pop %v3483
    %v3504 = vmul.f32 %v3502, %v3451
    %3506 = vrot.lane.b32.xlu0 %v3503, 64
    %v3507 = vpop.permute.xlu0 %3506
    %v3509 = vmul.f32 %v3502, %v3507
    %3511 = vrot.lane.b32.xlu0 %v3509, 32
    %v3512 = vpop.permute.xlu0 %3511
    %v3514 = vadd.f32 %v3504, %v3512
    %v3515 = vtanh.pop %v3514
    %3517 = vrot.lane.b32.xlu0 %v3515, 64
    %v3518 = vpop.permute.xlu0 %3517
    %v3520 = vmul.f32 %v3502, %v3518
    %3522 = vrot.lane.b32.xlu0 %v3520, 32
    %v3523 = vpop.permute.xlu0 %3522
    %v3524 = vsel %vm203, %v3523, 0
    %3526 = vmatpush.msra.mxu0 0.0
    %3527 = vmatpush.msra.mxu0 0.0
    %3528 = vmatpush.msra.mxu0 0.0
    %3529 = vmatpush.msra.mxu0 0.0
    %3530 = vmatpush.msra.mxu0 0.0
    %3531 = vmatpush.msra.mxu0 0.0
    %3532 = vmatpush.msra.mxu0 0.0
    %3533 = vmatpush.msra.mxu0 0.0
    %3534 = vmatpush.msra.mxu0 0.0
    %3535 = vmatpush.msra.mxu0 0.0
    %3536 = vmatpush.msra.mxu0 0.0
    %3537 = vmatpush.msra.mxu0 0.0
    %3538 = vmatpush.msra.mxu0 %v3399
    %3539 = vmatpush.msra.mxu0 %v3398
    %3540 = vmatpush.msra.mxu0 %v3397
    %3541 = vmatpush.msra.mxu0 %v3396
    %3542 = vmatmul.f32.gmra.mxu0 %v3524
    %v3543 = vpop.f32.mrf.mxu0
    %v3544 = vadd.f32 0.0, %v3543
    %3545 = vdwg.mxu0
    %v3546 = vadd.f32 %v3059, %v3544
    %v3547 = vxor.u32 %v3546, 2147483648
    %v3548 = vmul.f32 %v3547, 1.442695
    %v3549 = vpow.pop %v3548
    %v3550 = vadd.f32 %v3549, 1.0
    %v3551 = vrcp.pop %v3550
    %v3552 = vmul.f32 %v3550, %v3551
    %v3553 = vsub.f32 1.0, %v3552
    %v3554 = vmul.f32 %v3551, %v3553
    %v3555 = vadd.f32 %v3551, %v3554
    %vm3556 = vweird.f32 %v3550
    %vm3557 = vweird.f32 %v3551
    %vm3558 = vmor %vm3556, %vm3557
    %v3559 = vsel %vm3558, %v3551, %v3555
    %v3560 = vand.u32 2147483647, %v3550
    %vm3561 = vcmp.eq.f32.partialorder %v3560, 8.507059e+37
    %v3562 = vand.u32 %v3550, 2147483648
    %v3563 = vor.u32 1.1754944e-38, %v3562
    %v3564 = vsel %vm3561, %v3563, %v3559
    %v3565 = vmul.f32 1.0, %v3564
    %v3566 = vtanh.pop %v3546
    %v3567 = vmul.f32 %v3565, %v3514
    %3569 = vrot.lane.b32.xlu0 %v3566, 64
    %v3570 = vpop.permute.xlu0 %3569
    %v3572 = vmul.f32 %v3565, %v3570
    %3574 = vrot.lane.b32.xlu0 %v3572, 32
    %v3575 = vpop.permute.xlu0 %3574
    %v3577 = vadd.f32 %v3567, %v3575
    %v3578 = vtanh.pop %v3577
    %3580 = vrot.lane.b32.xlu0 %v3578, 64
    %v3581 = vpop.permute.xlu0 %3580
    %v3583 = vmul.f32 %v3565, %v3581
    %3585 = vrot.lane.b32.xlu0 %v3583, 32
    %v3586 = vpop.permute.xlu0 %3585
    %v3587 = vsel %vm203, %v3586, 0
    %3589 = vmatpush.msra.mxu0 0.0
    %3590 = vmatpush.msra.mxu0 0.0
    %3591 = vmatpush.msra.mxu0 0.0
    %3592 = vmatpush.msra.mxu0 0.0
    %3593 = vmatpush.msra.mxu0 0.0
    %3594 = vmatpush.msra.mxu0 0.0
    %3595 = vmatpush.msra.mxu0 0.0
    %3596 = vmatpush.msra.mxu0 0.0
    %3597 = vmatpush.msra.mxu0 0.0
    %3598 = vmatpush.msra.mxu0 0.0
    %3599 = vmatpush.msra.mxu0 0.0
    %3600 = vmatpush.msra.mxu0 0.0
    %3601 = vmatpush.msra.mxu0 %v3399
    %3602 = vmatpush.msra.mxu0 %v3398
    %3603 = vmatpush.msra.mxu0 %v3397
    %3604 = vmatpush.msra.mxu0 %v3396
    %3605 = vmatmul.f32.gmra.mxu0 %v3587
    %v3606 = vpop.f32.mrf.mxu0
    %v3607 = vadd.f32 0.0, %v3606
    %3608 = vdwg.mxu0
    %v3609 = vadd.f32 %v2891, %v3607
    %v3610 = vxor.u32 %v3609, 2147483648
    %v3611 = vmul.f32 %v3610, 1.442695
    %v3612 = vpow.pop %v3611
    %v3613 = vadd.f32 %v3612, 1.0
    %v3614 = vrcp.pop %v3613
    %v3615 = vmul.f32 %v3613, %v3614
    %v3616 = vsub.f32 1.0, %v3615
    %v3617 = vmul.f32 %v3614, %v3616
    %v3618 = vadd.f32 %v3614, %v3617
    %vm3619 = vweird.f32 %v3613
    %vm3620 = vweird.f32 %v3614
    %vm3621 = vmor %vm3619, %vm3620
    %v3622 = vsel %vm3621, %v3614, %v3618
    %v3623 = vand.u32 2147483647, %v3613
    %vm3624 = vcmp.eq.f32.partialorder %v3623, 8.507059e+37
    %v3625 = vand.u32 %v3613, 2147483648
    %v3626 = vor.u32 1.1754944e-38, %v3625
    %v3627 = vsel %vm3624, %v3626, %v3622
    %v3628 = vmul.f32 1.0, %v3627
    %v3629 = vtanh.pop %v3609
    %v3630 = vmul.f32 %v3628, %v3577
    %3632 = vrot.lane.b32.xlu0 %v3629, 64
    %v3633 = vpop.permute.xlu0 %3632
    %v3635 = vmul.f32 %v3628, %v3633
    %3637 = vrot.lane.b32.xlu0 %v3635, 32
    %v3638 = vpop.permute.xlu0 %3637
    %v3640 = vadd.f32 %v3630, %v3638
    %v3641 = vtanh.pop %v3640
    %3643 = vrot.lane.b32.xlu0 %v3641, 64
    %v3644 = vpop.permute.xlu0 %3643
    %v3646 = vmul.f32 %v3628, %v3644
    %3648 = vrot.lane.b32.xlu0 %v3646, 32
    %v3649 = vpop.permute.xlu0 %3648
    %v3650 = vsel %vm203, %v3649, 0
    %3652 = vmatpush.msra.mxu0 0.0
    %3653 = vmatpush.msra.mxu0 0.0
    %3654 = vmatpush.msra.mxu0 0.0
    %3655 = vmatpush.msra.mxu0 0.0
    %3656 = vmatpush.msra.mxu0 0.0
    %3657 = vmatpush.msra.mxu0 0.0
    %3658 = vmatpush.msra.mxu0 0.0
    %3659 = vmatpush.msra.mxu0 0.0
    %3660 = vmatpush.msra.mxu0 0.0
    %3661 = vmatpush.msra.mxu0 0.0
    %3662 = vmatpush.msra.mxu0 0.0
    %3663 = vmatpush.msra.mxu0 0.0
    %3664 = vmatpush.msra.mxu0 %v3399
    %3665 = vmatpush.msra.mxu0 %v3398
    %3666 = vmatpush.msra.mxu0 %v3397
    %3667 = vmatpush.msra.mxu0 %v3396
    %3668 = vmatmul.f32.gmra.mxu0 %v3650
    %v3669 = vpop.f32.mrf.mxu0
    %v3670 = vadd.f32 0.0, %v3669
    %3671 = vdwg.mxu0
    %v3672 = vadd.f32 %v2865, %v3670
    %v3673 = vxor.u32 %v3672, 2147483648
    %v3674 = vmul.f32 %v3673, 1.442695
    %v3675 = vpow.pop %v3674
    %v3676 = vadd.f32 %v3675, 1.0
    %v3677 = vrcp.pop %v3676
    %v3678 = vmul.f32 %v3676, %v3677
    %v3679 = vsub.f32 1.0, %v3678
    %v3680 = vmul.f32 %v3677, %v3679
    %v3681 = vadd.f32 %v3677, %v3680
    %vm3682 = vweird.f32 %v3676
    %vm3683 = vweird.f32 %v3677
    %vm3684 = vmor %vm3682, %vm3683
    %v3685 = vsel %vm3684, %v3677, %v3681
    %v3686 = vand.u32 2147483647, %v3676
    %vm3687 = vcmp.eq.f32.partialorder %v3686, 8.507059e+37
    %v3688 = vand.u32 %v3676, 2147483648
    %v3689 = vor.u32 1.1754944e-38, %v3688
    %v3690 = vsel %vm3687, %v3689, %v3685
    %v3691 = vmul.f32 1.0, %v3690
    %v3692 = vtanh.pop %v3672
    %v3693 = vmul.f32 %v3691, %v3640
    %3695 = vrot.lane.b32.xlu0 %v3692, 64
    %v3696 = vpop.permute.xlu0 %3695
    %v3698 = vmul.f32 %v3691, %v3696
    %3700 = vrot.lane.b32.xlu0 %v3698, 32
    %v3701 = vpop.permute.xlu0 %3700
    %v3703 = vadd.f32 %v3693, %v3701
    %v3704 = vtanh.pop %v3703
    %3706 = vrot.lane.b32.xlu0 %v3704, 64
    %v3707 = vpop.permute.xlu0 %3706
    %v3709 = vmul.f32 %v3691, %v3707
    %3711 = vrot.lane.b32.xlu0 %v3709, 32
    %v3712 = vpop.permute.xlu0 %3711
    %v3713 = vsel %vm203, %v3712, 0
    %3715 = vmatpush.msra.mxu0 0.0
    %3716 = vmatpush.msra.mxu0 0.0
    %3717 = vmatpush.msra.mxu0 0.0
    %3718 = vmatpush.msra.mxu0 0.0
    %3719 = vmatpush.msra.mxu0 0.0
    %3720 = vmatpush.msra.mxu0 0.0
    %3721 = vmatpush.msra.mxu0 0.0
    %3722 = vmatpush.msra.mxu0 0.0
    %3723 = vmatpush.msra.mxu0 0.0
    %3724 = vmatpush.msra.mxu0 0.0
    %3725 = vmatpush.msra.mxu0 0.0
    %3726 = vmatpush.msra.mxu0 0.0
    %3727 = vmatpush.msra.mxu0 %v3399
    %3728 = vmatpush.msra.mxu0 %v3398
    %3729 = vmatpush.msra.mxu0 %v3397
    %3730 = vmatpush.msra.mxu0 %v3396
    %3731 = vmatmul.f32.gmra.mxu0 %v3713
    %v3732 = vpop.f32.mrf.mxu0
    %v3733 = vadd.f32 0.0, %v3732
    %3734 = vdwg.mxu0
    %v3735 = vadd.f32 %v3033, %v3733
    %v3736 = vxor.u32 %v3735, 2147483648
    %v3737 = vmul.f32 %v3736, 1.442695
    %v3738 = vpow.pop %v3737
    %v3739 = vadd.f32 %v3738, 1.0
    %v3740 = vrcp.pop %v3739
    %v3741 = vmul.f32 %v3739, %v3740
    %v3742 = vsub.f32 1.0, %v3741
    %v3743 = vmul.f32 %v3740, %v3742
    %v3744 = vadd.f32 %v3740, %v3743
    %vm3745 = vweird.f32 %v3739
    %vm3746 = vweird.f32 %v3740
    %vm3747 = vmor %vm3745, %vm3746
    %v3748 = vsel %vm3747, %v3740, %v3744
    %v3749 = vand.u32 2147483647, %v3739
    %vm3750 = vcmp.eq.f32.partialorder %v3749, 8.507059e+37
    %v3751 = vand.u32 %v3739, 2147483648
    %v3752 = vor.u32 1.1754944e-38, %v3751
    %v3753 = vsel %vm3750, %v3752, %v3748
    %v3754 = vmul.f32 1.0, %v3753
    %v3755 = vtanh.pop %v3735
    %v3756 = vmul.f32 %v3754, %v3703
    %3758 = vrot.lane.b32.xlu0 %v3755, 64
    %v3759 = vpop.permute.xlu0 %3758
    %v3761 = vmul.f32 %v3754, %v3759
    %3763 = vrot.lane.b32.xlu0 %v3761, 32
    %v3764 = vpop.permute.xlu0 %3763
    %v3766 = vadd.f32 %v3756, %v3764
    %v3767 = vtanh.pop %v3766
    %3769 = vrot.lane.b32.xlu0 %v3767, 64
    %v3770 = vpop.permute.xlu0 %3769
    %v3772 = vmul.f32 %v3754, %v3770
    %3774 = vrot.lane.b32.xlu0 %v3772, 32
    %v3775 = vpop.permute.xlu0 %3774
    %v3776 = vsel %vm203, %v3775, 0
    %3778 = vmatpush.msra.mxu0 0.0
    %3779 = vmatpush.msra.mxu0 0.0
    %3780 = vmatpush.msra.mxu0 0.0
    %3781 = vmatpush.msra.mxu0 0.0
    %3782 = vmatpush.msra.mxu0 0.0
    %3783 = vmatpush.msra.mxu0 0.0
    %3784 = vmatpush.msra.mxu0 0.0
    %3785 = vmatpush.msra.mxu0 0.0
    %3786 = vmatpush.msra.mxu0 0.0
    %3787 = vmatpush.msra.mxu0 0.0
    %3788 = vmatpush.msra.mxu0 0.0
    %3789 = vmatpush.msra.mxu0 0.0
    %3790 = vmatpush.msra.mxu0 %v3399
    %3791 = vmatpush.msra.mxu0 %v3398
    %3792 = vmatpush.msra.mxu0 %v3397
    %3793 = vmatpush.msra.mxu0 %v3396
    %3794 = vmatmul.f32.gmra.mxu0 %v3776
    %v3795 = vpop.f32.mrf.mxu0
    %v3796 = vadd.f32 0.0, %v3795
    %3797 = vdwg.mxu0
    %v3798 = vadd.f32 %v3201, %v3796
    %v3799 = vxor.u32 %v3798, 2147483648
    %v3800 = vmul.f32 %v3799, 1.442695
    %v3801 = vpow.pop %v3800
    %v3802 = vadd.f32 %v3801, 1.0
    %v3803 = vrcp.pop %v3802
    %v3804 = vmul.f32 %v3802, %v3803
    %v3805 = vsub.f32 1.0, %v3804
    %v3806 = vmul.f32 %v3803, %v3805
    %v3807 = vadd.f32 %v3803, %v3806
    %vm3808 = vweird.f32 %v3802
    %vm3809 = vweird.f32 %v3803
    %vm3810 = vmor %vm3808, %vm3809
    %v3811 = vsel %vm3810, %v3803, %v3807
    %v3812 = vand.u32 2147483647, %v3802
    %vm3813 = vcmp.eq.f32.partialorder %v3812, 8.507059e+37
    %v3814 = vand.u32 %v3802, 2147483648
    %v3815 = vor.u32 1.1754944e-38, %v3814
    %v3816 = vsel %vm3813, %v3815, %v3811
    %v3817 = vmul.f32 1.0, %v3816
    %v3818 = vtanh.pop %v3798
    %v3819 = vmul.f32 %v3817, %v3766
    %3821 = vrot.lane.b32.xlu0 %v3818, 64
    %v3822 = vpop.permute.xlu0 %3821
    %v3824 = vmul.f32 %v3817, %v3822
    %3826 = vrot.lane.b32.xlu0 %v3824, 32
    %v3827 = vpop.permute.xlu0 %3826
    %v3829 = vadd.f32 %v3819, %v3827
    %v3830 = vtanh.pop %v3829
    %3832 = vrot.lane.b32.xlu0 %v3830, 64
    %v3833 = vpop.permute.xlu0 %3832
    %v3835 = vmul.f32 %v3817, %v3833
    %3837 = vrot.lane.b32.xlu0 %v3835, 32
    %v3838 = vpop.permute.xlu0 %3837
    %v3839 = vsel %vm203, %v3838, 0
    %3841 = vmatpush.msra.mxu0 0.0
    %3842 = vmatpush.msra.mxu0 0.0
    %3843 = vmatpush.msra.mxu0 0.0
    %3844 = vmatpush.msra.mxu0 0.0
    %3845 = vmatpush.msra.mxu0 0.0
    %3846 = vmatpush.msra.mxu0 0.0
    %3847 = vmatpush.msra.mxu0 0.0
    %3848 = vmatpush.msra.mxu0 0.0
    %3849 = vmatpush.msra.mxu0 0.0
    %3850 = vmatpush.msra.mxu0 0.0
    %3851 = vmatpush.msra.mxu0 0.0
    %3852 = vmatpush.msra.mxu0 0.0
    %3853 = vmatpush.msra.mxu0 %v3399
    %3854 = vmatpush.msra.mxu0 %v3398
    %3855 = vmatpush.msra.mxu0 %v3397
    %3856 = vmatpush.msra.mxu0 %v3396
    %3857 = vmatmul.f32.gmra.mxu0 %v3839
    %v3858 = vpop.f32.mrf.mxu0
    %v3859 = vadd.f32 0.0, %v3858
    %3860 = vdwg.mxu0
    %v3861 = vadd.f32 %v3369, %v3859
    %v3862 = vxor.u32 %v3861, 2147483648
    %v3863 = vmul.f32 %v3862, 1.442695
    %v3864 = vpow.pop %v3863
    %v3865 = vadd.f32 %v3864, 1.0
    %v3866 = vrcp.pop %v3865
    %v3867 = vmul.f32 %v3865, %v3866
    %v3868 = vsub.f32 1.0, %v3867
    %v3869 = vmul.f32 %v3866, %v3868
    %v3870 = vadd.f32 %v3866, %v3869
    %vm3871 = vweird.f32 %v3865
    %vm3872 = vweird.f32 %v3866
    %vm3873 = vmor %vm3871, %vm3872
    %v3874 = vsel %vm3873, %v3866, %v3870
    %v3875 = vand.u32 2147483647, %v3865
    %vm3876 = vcmp.eq.f32.partialorder %v3875, 8.507059e+37
    %v3877 = vand.u32 %v3865, 2147483648
    %v3878 = vor.u32 1.1754944e-38, %v3877
    %v3879 = vsel %vm3876, %v3878, %v3874
    %v3880 = vmul.f32 1.0, %v3879
    %v3881 = vtanh.pop %v3861
    %v3882 = vmul.f32 %v3880, %v3829
    %3884 = vrot.lane.b32.xlu0 %v3881, 64
    %v3885 = vpop.permute.xlu0 %3884
    %v3887 = vmul.f32 %v3880, %v3885
    %3889 = vrot.lane.b32.xlu0 %v3887, 32
    %v3890 = vpop.permute.xlu0 %3889
    %v3892 = vadd.f32 %v3882, %v3890
    %v3893 = vtanh.pop %v3892
    %3895 = vrot.lane.b32.xlu0 %v3893, 64
    %v3896 = vpop.permute.xlu0 %3895
    %v3898 = vmul.f32 %v3880, %v3896
    %v3899 = vld [vmem:[#allocation13] sm:$0xff]
    %v3900 = vld [vmem:[#allocation13 + $0x8] sm:$0xff]
    %v3901 = vld [vmem:[#allocation13 + $0x10] sm:$0xff]
    %v3902 = vld [vmem:[#allocation13 + $0x18] sm:$0xff]
    %v3903 = vld [vmem:[%s13] sm:$0x1]
    %v3905 = vperm.slane %v3903, 0
    %3908 = vrot.lane.b32.xlu0 %v3898, 32
    %v3909 = vpop.permute.xlu0 %3908
    %v3910 = vsel %vm203, %v3909, 0
    %3912 = vmatpush.msra.mxu0 0.0
    %3913 = vmatpush.msra.mxu0 0.0
    %3914 = vmatpush.msra.mxu0 0.0
    %3915 = vmatpush.msra.mxu0 0.0
    %3916 = vmatpush.msra.mxu0 0.0
    %3917 = vmatpush.msra.mxu0 0.0
    %3918 = vmatpush.msra.mxu0 0.0
    %3919 = vmatpush.msra.mxu0 0.0
    %3920 = vmatpush.msra.mxu0 0.0
    %3921 = vmatpush.msra.mxu0 0.0
    %3922 = vmatpush.msra.mxu0 0.0
    %3923 = vmatpush.msra.mxu0 0.0
    %3924 = vmatpush.msra.mxu0 %v3902
    %3925 = vmatpush.msra.mxu0 %v3901
    %3926 = vmatpush.msra.mxu0 %v3900
    %3927 = vmatpush.msra.mxu0 %v3899
    %3928 = vmatmul.f32.gmra.mxu0 %v3910
    %v3929 = vpop.f32.mrf.mxu0
    %v3930 = vadd.f32 %v3905, %v3929
    %3931 = vdwg.mxu0
    %vm3932 = vcmp.gt.f32.partialorder %v3930, 0.0
    %v3933 = vmul.f32 %v3930, 1.442695
    %v3934 = vpow.pop %v3933
    %v3935 = vsub.f32 %v3934, 1.0
    %v3936 = vsel %vm3932, %v3930, %v3935
    %v3937 = vld [vmem:[%s14] sm:$0xff]
    %v3938 = vld [vmem:[%s14 + $0x8] sm:$0xff]
    %v3939 = vld [vmem:[%s14 + $0x10] sm:$0xff]
    %v3940 = vld [vmem:[%s14 + $0x18] sm:$0xff]
    %v3941 = vld [vmem:[%s15] sm:$0x1]
    %v3943 = vperm.slane %v3941, 0
    %v3946 = vsel %vm203, %v3936, 0
    %3948 = vmatpush.msra.mxu0 0.0
    %3949 = vmatpush.msra.mxu0 0.0
    %3950 = vmatpush.msra.mxu0 0.0
    %3951 = vmatpush.msra.mxu0 0.0
    %3952 = vmatpush.msra.mxu0 0.0
    %3953 = vmatpush.msra.mxu0 0.0
    %3954 = vmatpush.msra.mxu0 0.0
    %3955 = vmatpush.msra.mxu0 0.0
    %3956 = vmatpush.msra.mxu0 0.0
    %3957 = vmatpush.msra.mxu0 0.0
    %3958 = vmatpush.msra.mxu0 0.0
    %3959 = vmatpush.msra.mxu0 0.0
    %3960 = vmatpush.msra.mxu0 %v3940
    %3961 = vmatpush.msra.mxu0 %v3939
    %3962 = vmatpush.msra.mxu0 %v3938
    %3963 = vmatpush.msra.mxu0 %v3937
    %3964 = vmatmul.f32.gmra.mxu0 %v3946
    %v3965 = vpop.f32.mrf.mxu0
    %v3966 = vadd.f32 %v3943, %v3965
    %3967 = vdwg.mxu0
    %vm3968 = vcmask 17408
    %v3969 = vsel %vm3968, %v3966, -inf
    %3970 = vmax.xlane.f32.xlu0 %v3969
    %v3971 = vpop.xlane.xlu0 %3970
    %v3972 = vsub.f32 %v3966, %v3971
    %v3973 = vmul.f32 %v3972, 1.442695
    %v3974 = vpow.pop %v3973
    %v3975 = vsel %vm3968, %v3974, 0.0
    %3976 = vadd.xlane.f32.xlu0 %v3975
    %v3977 = vpop.xlane.xlu0 %3976
    %v3978 = vrcp.pop %v3977
    %v3979 = vmul.f32 %v3974, %v3978
    %3980 = vst.msk [vmem:[#allocation14] sm:$0x3] %vm3968, %v3979
    // Predicated region
    $region94: #{dnalstm_forward.1} parent=1 // pred_check
      _
    $region95: #{dnalstm_forward.1} parent=1 // pred_check_branch
      %3982 = sbr.rel (0) target = $region97
    $region96: #{dnalstm_forward.1} parent=1 // pred_region
      %3984 = vsyncadd [#allocation4], 0
      %s3986 = sshll.u32 [#allocation14], 4
      %s3987 = int_to_ptr.vmem [resolvable:$true] %s3986
      %s3988 = sshll.u32 %s16, 4
      %s3989 = int_to_ptr.hbm [resolvable:$true] %s3988
      %3991 = dma.vmem_to_hbm [thread:$0]  %s3987, 32, %s3989, [#allocation4]
    $region97: #{dnalstm_forward.1} parent=1 // pred_fallthru
      _
    // Predicated region
    $region98: #{dnalstm_forward.1} parent=1 // pred_check
      _
    $region99: #{dnalstm_forward.1} parent=1 // pred_check_branch
      %3993 = sbr.rel (0) target = $region101
    $region100: #{dnalstm_forward.1} parent=1 // pred_region
      %3995 = dma.done [#allocation4], 32
    $region101: #{dnalstm_forward.1} parent=1 // pred_fallthru
      _
    %3996 = vsyncpa [#allocation3], 1
    %3997 = vsyncpa [#allocation6], 1
    %3998 = vsyncpa [#allocation9], 1
    %3999 = vsyncpa [#allocation12], 1
    %4000 = vsyncpa [#allocation4], 1

</llo_original>
